<compile_context>
chip_gen: v6e
topology: v6e:2x2x1
jax: 0.10.0
libtpu: 0.0.40
codegen_flags: <defaults>
</compile_context>

<pallas_src>
import functools
import math

import jax
import jax.numpy as jnp
from jax.experimental import pallas as pl
from jax.experimental.pallas import tpu as pltpu

_VMEM_LIMIT_BYTES = 32 * 1024 * 1024
_LEAKY_SLOPE = 0.2


def _leaky(x):
    return jnp.where(x >= 0, x, _LEAKY_SLOPE * x)


def _pick_time_tile(T, p, target):
    """Choose (TILE_T, HALO) for the time (lane) axis.

    TILE_T is a multiple of 128 that divides T (lane-dense blocks), capped at
    `target`; a single whole-sequence tile is used only when T <= target, so the
    per-tile working set stays bounded.  HALO is the thin neighbour-block width.
    """
    assert T >= p + 1, "sequence too short for this reflection pad"
    if T <= target:
        halo = 128 if T % 128 == 0 else T
        assert p <= halo
        return T, halo
    cap = (min(T, target) // 128) * 128
    for cand in range(cap, 127, -128):
        if T % cand == 0:
            assert p <= 128
            return cand, 128
    # TODO(synk): support a masked partial last tile instead of raising here.
    raise ValueError(
        f"T={T} > tile_target={target} has no multiple-of-128 time tile; "
        "pad T to a multiple of 128 or raise tile_target.")


def _halo_specs(T, tile_t, halo, c):
    """Thin halo blocks read from the neighbouring time tiles of the same array."""
    n_per = tile_t // halo
    max_hb = T // halo - 1
    left = pl.BlockSpec((1, c, halo),
                        lambda b, t: (b, 0, jnp.maximum(t * n_per - 1, 0)))
    right = pl.BlockSpec((1, c, halo),
                         lambda b, t: (b, 0, jnp.minimum((t + 1) * n_per, max_hb)))
    return left, right


def _assemble_window(t, x, lh, rh, *, p, tile_t, halo, n_t):
    """(C, TILE_T) block -> (C, TILE_T + 2p) conv window along the lane axis.

    Interior tiles take p lanes from each neighbour tile (halo blocks); the
    first / last tiles mirror lanes from inside the tile (ReflectionPad1d:
    lane -i mirrors lane i, lane (T-1)+i mirrors lane T-1-i)."""
    refl_l = jnp.concatenate([x[:, p - m:p - m + 1] for m in range(p)], axis=-1)
    refl_r = jnp.concatenate(
        [x[:, tile_t - 2 - m:tile_t - 1 - m] for m in range(p)], axis=-1)
    left = jnp.where(t == 0, refl_l, lh[:, halo - p:])
    right = jnp.where(t == n_t - 1, refl_r, rh[:, :p])
    return jnp.concatenate([left, x, right], axis=-1)


def _im2col(win, K, dil, tile_t):
    """K lane-shifted views stacked along the sublane axis: (K*C, TILE_T)."""
    return jnp.concatenate(
        [win[:, k * dil:k * dil + tile_t] for k in range(K)], axis=0)


# ---------------------------------------------------------------------------
# Pallas kernels
# ---------------------------------------------------------------------------
def _conv1d_kernel(x_ref, lh_ref, rh_ref, w_ref, b_ref, o_ref, *,
                   K, dil, p, tile_t, halo, n_t, pre_leaky, post_tanh):
    t = pl.program_id(1)
    win = _assemble_window(t, x_ref[0], lh_ref[0], rh_ref[0],
                           p=p, tile_t=tile_t, halo=halo, n_t=n_t)
    if pre_leaky:
        # Reflection/halo only copy values, so LeakyReLU after window assembly is
        # equivalent to PyTorch's LeakyReLU -> ReflectionPad -> Conv order.
        win = _leaky(win)
    stack = _im2col(win, K, dil, tile_t).astype(w_ref.dtype)      # (K*C_in, TILE_T)
    acc = jnp.dot(w_ref[...], stack, preferred_element_type=jnp.float32)
    acc = acc + b_ref[...]                                        # (C_out, 1) f32
    if post_tanh:
        acc = jnp.tanh(acc)
    o_ref[0] = acc.astype(o_ref.dtype)


def _resblock_kernel(x_ref, lh_ref, rh_ref, w3_ref, b3_ref, w1_ref, b1_ref,
                     ws_ref, bs_ref, o_ref, *, dil, tile_t, halo, n_t):
    t = pl.program_id(1)
    x = x_ref[0]                                                  # (C, TILE_T)
    # block path: LeakyReLU -> ReflPad(dil) -> conv(k=3, dil) -> LeakyReLU -> conv(k=1)
    win = _leaky(_assemble_window(t, x, lh_ref[0], rh_ref[0],
                                  p=dil, tile_t=tile_t, halo=halo, n_t=n_t))
    stack = _im2col(win, 3, dil, tile_t).astype(w3_ref.dtype)     # (3C, TILE_T)
    h = jnp.dot(w3_ref[...], stack, preferred_element_type=jnp.float32)
    h = _leaky(h + b3_ref[...])
    h = jnp.dot(w1_ref[...], h.astype(w1_ref.dtype),
                preferred_element_type=jnp.float32) + b1_ref[...]
    # shortcut path: conv(k=1) on the un-activated input
    s = jnp.dot(ws_ref[...], x.astype(ws_ref.dtype),
                preferred_element_type=jnp.float32) + bs_ref[...]
    o_ref[0] = (s + h).astype(o_ref.dtype)


# ---------------------------------------------------------------------------
# pallas_call wrappers
# ---------------------------------------------------------------------------
def conv1d_wn(x, w2, b2, *, K, dilation=1, pre_leaky=False, post_tanh=False,
              out_dtype=None, tile_target=2048):
    """x: (B, C_in, T) NCL; w2: (C_out, K*C_in) pre-reshaped; b2: (C_out, 1) f32."""
    B, c_in, T = x.shape
    c_out, kc = w2.shape
    assert kc == K * c_in
    p = dilation * (K - 1) // 2
    assert p >= 1
    out_dtype = x.dtype if out_dtype is None else out_dtype

    tile_t, halo = _pick_time_tile(T, p, tile_target)
    n_t = T // tile_t
    lspec, rspec = _halo_specs(T, tile_t, halo, c_in)

    kernel = functools.partial(
        _conv1d_kernel, K=K, dil=dilation, p=p, tile_t=tile_t, halo=halo,
        n_t=n_t, pre_leaky=pre_leaky, post_tanh=post_tanh)

    return pl.pallas_call(
        kernel,
        out_shape=jax.ShapeDtypeStruct((B, c_out, T), out_dtype),
        grid=(B, n_t),
        in_specs=[
            pl.BlockSpec((1, c_in, tile_t), lambda b, t: (b, 0, t)),
            lspec, rspec,
            pl.BlockSpec((c_out, kc), lambda b, t: (0, 0)),
            pl.BlockSpec((c_out, 1), lambda b, t: (0, 0)),
        ],
        out_specs=pl.BlockSpec((1, c_out, tile_t), lambda b, t: (b, 0, t)),
        compiler_params=pltpu.CompilerParams(
            dimension_semantics=("parallel", "parallel"),
            vmem_limit_bytes=_VMEM_LIMIT_BYTES),
    )(x, x, x, w2, b2)


def resnet_block(x, rp, *, dilation, tile_target=2048):
    """Fused MelGAN residual block: one pallas_call per time tile."""
    B, c, T = x.shape
    p = dilation
    tile_t, halo = _pick_time_tile(T, p, tile_target)
    n_t = T // tile_t
    lspec, rspec = _halo_specs(T, tile_t, halo, c)

    kernel = functools.partial(_resblock_kernel, dil=dilation, tile_t=tile_t,
                               halo=halo, n_t=n_t)
    full = lambda shape: pl.BlockSpec(shape, lambda b, t, _n=len(shape): (0,) * _n)

    return pl.pallas_call(
        kernel,
        out_shape=jax.ShapeDtypeStruct((B, c, T), x.dtype),
        grid=(B, n_t),
        in_specs=[
            pl.BlockSpec((1, c, tile_t), lambda b, t: (b, 0, t)),
            lspec, rspec,
            full(rp["w3"].shape), full(rp["b3"].shape),
            full(rp["w1"].shape), full(rp["b1"].shape),
            full(rp["ws"].shape), full(rp["bs"].shape),
        ],
        out_specs=pl.BlockSpec((1, c, tile_t), lambda b, t: (b, 0, t)),
        compiler_params=pltpu.CompilerParams(
            dimension_semantics=("parallel", "parallel"),
            vmem_limit_bytes=_VMEM_LIMIT_BYTES),
    )(x, x, x, rp["w3"], rp["b3"], rp["w1"], rp["b1"], rp["ws"], rp["bs"])


# ---------------------------------------------------------------------------
# Parameters (PyTorch-style init + folded weight norm), one-time kernel layout prep
# ---------------------------------------------------------------------------
def _wnconv_params(key, c_out, c_in, k):
    k1, k2, key = jax.random.split(key, 3)
    bound = 1.0 / math.sqrt(c_in * k)
    v = jax.random.uniform(k1, (c_out, c_in, k), jnp.float32, -bound, bound)
    b = jax.random.uniform(k2, (c_out,), jnp.float32, -bound, bound)
    norm = jnp.sqrt(jnp.sum(v * v, axis=(1, 2), keepdims=True))
    w = norm * v / norm            # weight_norm with g initialised to ||v|| -> w == v
    return {"w": w, "b": b}, key


def init_params(key, in_channels, depth, residual_layers, hidden, out_channels):
    params = {}
    params["in"], key = _wnconv_params(key, hidden, in_channels, 7)
    for i in range(depth):
        blk = {}
        blk["conv"], key = _wnconv_params(key, hidden, hidden, 7)
        for j in range(residual_layers):
            res = {}
            res["block0"], key = _wnconv_params(key, hidden, hidden, 3)
            res["block1"], key = _wnconv_params(key, hidden, hidden, 1)
            res["short"], key = _wnconv_params(key, hidden, hidden, 1)
            blk[f"res{j}"] = res
        params[f"d{i}"] = blk
    params["out"], key = _wnconv_params(key, out_channels, hidden, 7)
    return params, key


def _prep_conv(p, dtype):
    """(C_out, C_in, K) torch layout -> (C_out, K*C_in) matmul layout (+ (C_out,1) bias).

    Ordering matches the in-kernel im2col stack (tap-major, channel within tap)."""
    w = p["w"]
    c_out, c_in, k = w.shape
    w2 = jnp.transpose(w, (0, 2, 1)).reshape(c_out, k * c_in).astype(dtype)
    b2 = p["b"].reshape(c_out, 1).astype(jnp.float32)
    return {"w": w2, "b": b2}


def prepare_params(params, depth, residual_layers, compute_dtype=jnp.bfloat16):
    out = {"in": _prep_conv(params["in"], compute_dtype),
           "out": _prep_conv(params["out"], compute_dtype)}
    for i in range(depth):
        blk = {"conv": _prep_conv(params[f"d{i}"]["conv"], compute_dtype)}
        for j in range(residual_layers):
            r = params[f"d{i}"][f"res{j}"]
            b0 = _prep_conv(r["block0"], compute_dtype)
            b1 = _prep_conv(r["block1"], compute_dtype)
            sh = _prep_conv(r["short"], compute_dtype)
            blk[f"res{j}"] = {"w3": b0["w"], "b3": b0["b"],
                              "w1": b1["w"], "b1": b1["b"],
                              "ws": sh["w"], "bs": sh["b"]}
        out[f"d{i}"] = blk
    return out


# ---------------------------------------------------------------------------
# Forward pass (input/output stay in PyTorch NCL layout; no transposes needed)
# ---------------------------------------------------------------------------
def high_pass_forward(signal, kparams, depth, residual_layers, hr_shape=None,
                      compute_dtype=jnp.bfloat16, tile_target=2048):
    """signal: (B, C_in, T).  hr_shape is unused (as in the torch module)."""
    del hr_shape
    x = signal
    # ReflectionPad1d(3) -> WNConv1d(k=7) -> Tanh
    x = conv1d_wn(x, kparams["in"]["w"], kparams["in"]["b"], K=7,
                  post_tanh=True, out_dtype=compute_dtype, tile_target=tile_target)
    for i in range(depth):
        blk = kparams[f"d{i}"]
        # LeakyReLU -> ReflectionPad1d(3) -> WNConv1d(k=7)
        x = conv1d_wn(x, blk["conv"]["w"], blk["conv"]["b"], K=7,
                      pre_leaky=True, out_dtype=compute_dtype,
                      tile_target=tile_target)
        for j in range(residual_layers):
            x = resnet_block(x, blk[f"res{j}"], dilation=3 ** j,
                             tile_target=tile_target)
    # LeakyReLU -> ReflectionPad1d(3) -> WNConv1d(k=7)
    x = conv1d_wn(x, kparams["out"]["w"], kparams["out"]["b"], K=7,
                  pre_leaky=True, out_dtype=signal.dtype, tile_target=tile_target)
    return x


# ---------------------------------------------------------------------------
# Pure-JAX reference (for correctness validation only)
# ---------------------------------------------------------------------------
def _ref_conv(x, p, dilation=1, pad=0, pre_leaky=False, post_tanh=False):
    w, b = p["w"], p["b"]
    c_out, c_in, K = w.shape
    if pre_leaky:
        x = _leaky(x)
    if pad:
        x = jnp.pad(x, ((0, 0), (pad, pad), (0, 0)), mode="reflect")
    T_out = x.shape[1] - dilation * (K - 1)
    cols = [x[:, k * dilation:k * dilation + T_out, :] for k in range(K)]
    xcat = jnp.concatenate(cols, axis=-1)
    w2 = jnp.transpose(w, (2, 1, 0)).reshape(K * c_in, c_out)
    y = jnp.einsum("btc,cd->btd", xcat, w2,
                   precision=jax.lax.Precision.HIGHEST) + b
    return jnp.tanh(y) if post_tanh else y


def _ref_forward(signal, params, depth, residual_layers):
    x = jnp.transpose(signal, (0, 2, 1))
    x = _ref_conv(x, params["in"], pad=3, post_tanh=True)
    for i in range(depth):
        blk = params[f"d{i}"]
        x = _ref_conv(x, blk["conv"], pad=3, pre_leaky=True)
        for j in range(residual_layers):
            r, d = blk[f"res{j}"], 3 ** j
            h = _ref_conv(x, r["block0"], dilation=d, pad=d, pre_leaky=True)
            h = _ref_conv(h, r["block1"], pre_leaky=True)
            x = _ref_conv(x, r["short"]) + h
    x = _ref_conv(x, params["out"], pad=3, pre_leaky=True)
    return jnp.transpose(x, (0, 2, 1))


# ---------------------------------------------------------------------------
if __name__ == "__main__":
    B, C_in, T = 2, 4, 512
    hidden, C_out = 32, 4
    depth, residual_layers = 1, 2

    key = jax.random.PRNGKey(0)
    params, key = init_params(key, C_in, depth, residual_layers, hidden, C_out)
    key, sk = jax.random.split(key)
    signal = jax.random.normal(sk, (B, C_in, T), jnp.float32)

    # ---- correctness: f32-weight Pallas path vs pure-JAX reference ----------
    # small tiles so the multi-tile halo + reflection edge paths are exercised
    kparams_f32 = prepare_params(params, depth, residual_layers, jnp.float32)
    fwd_f32 = jax.jit(functools.partial(
        high_pass_forward, depth=depth, residual_layers=residual_layers,
        compute_dtype=jnp.float32, tile_target=128))
    out_f32 = jax.block_until_ready(fwd_f32(signal, kparams_f32))
    ref = jax.block_until_ready(_ref_forward(signal, params, depth, residual_layers))
    assert out_f32.shape == (B, C_out, T), out_f32.shape
    assert bool(jnp.allclose(out_f32, ref, atol=5e-2, rtol=5e-2)), (
        float(jnp.max(jnp.abs(out_f32 - ref))))

    # ---- production path: bf16 MXU operands + bf16 elementwise, f32 accumulate,
    # default (large, lane-dense) time tiles
    kparams = prepare_params(params, depth, residual_layers, jnp.bfloat16)
    fwd = jax.jit(functools.partial(
        high_pass_forward, depth=depth, residual_layers=residual_layers,
        compute_dtype=jnp.bfloat16))
    out = jax.block_until_ready(fwd(signal, kparams))
    assert out.shape == (B, C_out, T), out.shape
    assert bool(jnp.all(jnp.isfinite(out)))

    print("KERNEL_OK")
</pallas_src>

<mosaic_0001>
module attributes {stable_mosaic.version = 11 : i64} {
  func.func @_conv1d_kernel(%arg0: i32, %arg1: i32, %arg2: memref<1x4x128xf32, #tpu.memory_space<vmem>>, %arg3: memref<1x4x128xf32, #tpu.memory_space<vmem>>, %arg4: memref<1x4x128xf32, #tpu.memory_space<vmem>>, %arg5: memref<32x28xf32, #tpu.memory_space<vmem>>, %arg6: memref<32x1xf32, #tpu.memory_space<vmem>>, %arg7: memref<1x32x128xf32, #tpu.memory_space<vmem>>) attributes {dimension_semantics = [#tpu.dimension_semantics<parallel>, #tpu.dimension_semantics<parallel>], iteration_bounds = array<i64: 2, 4>, scalar_prefetch = 0 : i64, scratch_operands = 0 : i64, tpu.core_type = #tpu.core_type<tc>, window_params = [{transform_indices = @transform_0, window_bounds = array<i64: 1, 4, 128>}, {transform_indices = @transform_1, window_bounds = array<i64: 1, 4, 128>}, {transform_indices = @transform_2, window_bounds = array<i64: 1, 4, 128>}, {pipeline_mode = #tpu.pipeline_mode<synchronous>, transform_indices = @transform_3, window_bounds = array<i64: 32, 28>}, {pipeline_mode = #tpu.pipeline_mode<synchronous>, transform_indices = @transform_4, window_bounds = array<i64: 32, 1>}, {transform_indices = @transform_5, window_bounds = array<i64: 1, 32, 128>}]} {
    %c0 = arith.constant 0 : index
    %c0_0 = arith.constant 0 : index
    %c0_1 = arith.constant 0 : index
    %0 = vector.load %arg2[%c0, %c0_0, %c0_1] : memref<1x4x128xf32, #tpu.memory_space<vmem>>, vector<1x4x128xf32>
    %1 = vector.shape_cast %0 : vector<1x4x128xf32> to vector<4x128xf32>
    %c0_2 = arith.constant 0 : index
    %c0_3 = arith.constant 0 : index
    %c0_4 = arith.constant 0 : index
    %2 = vector.load %arg3[%c0_2, %c0_3, %c0_4] : memref<1x4x128xf32, #tpu.memory_space<vmem>>, vector<1x4x128xf32>
    %3 = vector.shape_cast %2 : vector<1x4x128xf32> to vector<4x128xf32>
    %c0_5 = arith.constant 0 : index
    %c0_6 = arith.constant 0 : index
    %c0_7 = arith.constant 0 : index
    %4 = vector.load %arg4[%c0_5, %c0_6, %c0_7] : memref<1x4x128xf32, #tpu.memory_space<vmem>>, vector<1x4x128xf32>
    %5 = vector.shape_cast %4 : vector<1x4x128xf32> to vector<4x128xf32>
    %6 = vector.extract_strided_slice %1 {offsets = [0, 3], sizes = [4, 1], strides = [1, 1]} : vector<4x128xf32> to vector<4x1xf32>
    %7 = vector.extract_strided_slice %1 {offsets = [0, 2], sizes = [4, 1], strides = [1, 1]} : vector<4x128xf32> to vector<4x1xf32>
    %8 = vector.extract_strided_slice %1 {offsets = [0, 1], sizes = [4, 1], strides = [1, 1]} : vector<4x128xf32> to vector<4x1xf32>
    %9 = tpu.concatenate %6, %7, %8 in 1 : vector<4x1xf32>, vector<4x1xf32>, vector<4x1xf32> -> vector<4x3xf32>
    %10 = vector.extract_strided_slice %1 {offsets = [0, 126], sizes = [4, 1], strides = [1, 1]} : vector<4x128xf32> to vector<4x1xf32>
    %11 = vector.extract_strided_slice %1 {offsets = [0, 125], sizes = [4, 1], strides = [1, 1]} : vector<4x128xf32> to vector<4x1xf32>
    %12 = vector.extract_strided_slice %1 {offsets = [0, 124], sizes = [4, 1], strides = [1, 1]} : vector<4x128xf32> to vector<4x1xf32>
    %13 = tpu.concatenate %10, %11, %12 in 1 : vector<4x1xf32>, vector<4x1xf32>, vector<4x1xf32> -> vector<4x3xf32>
    %c0_i32 = arith.constant 0 : i32
    %14 = arith.cmpi eq, %arg1, %c0_i32 : i32
    %15 = vector.extract_strided_slice %3 {offsets = [0, 125], sizes = [4, 3], strides = [1, 1]} : vector<4x128xf32> to vector<4x3xf32>
    %16 = arith.select %14, %9, %15 : vector<4x3xf32>
    %c3_i32 = arith.constant 3 : i32
    %17 = arith.cmpi eq, %arg1, %c3_i32 : i32
    %18 = vector.extract_strided_slice %5 {offsets = [0, 0], sizes = [4, 3], strides = [1, 1]} : vector<4x128xf32> to vector<4x3xf32>
    %19 = arith.select %17, %13, %18 : vector<4x3xf32>
    %20 = tpu.concatenate %16, %1, %19 in 1 : vector<4x3xf32>, vector<4x128xf32>, vector<4x3xf32> -> vector<4x134xf32>
    %21 = vector.extract_strided_slice %20 {offsets = [0, 0], sizes = [4, 128], strides = [1, 1]} : vector<4x134xf32> to vector<4x128xf32>
    %22 = vector.extract_strided_slice %20 {offsets = [0, 1], sizes = [4, 128], strides = [1, 1]} : vector<4x134xf32> to vector<4x128xf32>
    %23 = vector.extract_strided_slice %20 {offsets = [0, 2], sizes = [4, 128], strides = [1, 1]} : vector<4x134xf32> to vector<4x128xf32>
    %24 = vector.extract_strided_slice %20 {offsets = [0, 3], sizes = [4, 128], strides = [1, 1]} : vector<4x134xf32> to vector<4x128xf32>
    %25 = vector.extract_strided_slice %20 {offsets = [0, 4], sizes = [4, 128], strides = [1, 1]} : vector<4x134xf32> to vector<4x128xf32>
    %26 = vector.extract_strided_slice %20 {offsets = [0, 5], sizes = [4, 128], strides = [1, 1]} : vector<4x134xf32> to vector<4x128xf32>
    %27 = vector.extract_strided_slice %20 {offsets = [0, 6], sizes = [4, 128], strides = [1, 1]} : vector<4x134xf32> to vector<4x128xf32>
    %28 = tpu.concatenate %21, %22, %23, %24, %25, %26, %27 in 0 : vector<4x128xf32>, vector<4x128xf32>, vector<4x128xf32>, vector<4x128xf32>, vector<4x128xf32>, vector<4x128xf32>, vector<4x128xf32> -> vector<28x128xf32>
    %c0_8 = arith.constant 0 : index
    %c0_9 = arith.constant 0 : index
    %29 = vector.load %arg5[%c0_8, %c0_9] : memref<32x28xf32, #tpu.memory_space<vmem>>, vector<32x28xf32>
    %cst = arith.constant dense<0.000000e+00> : vector<32x128xf32>
    %30 = tpu.matmul %29, %28, %cst {dimension_numbers = #tpu.dot_dimension_numbers<[1], [0], [0], [1], [0, 0, 1, 1], [], []>} : vector<32x28xf32>, vector<28x128xf32>, vector<32x128xf32> -> vector<32x128xf32>
    %c0_10 = arith.constant 0 : index
    %c0_11 = arith.constant 0 : index
    %31 = vector.load %arg6[%c0_10, %c0_11] : memref<32x1xf32, #tpu.memory_space<vmem>>, vector<32x1xf32>
    %32 = vector.broadcast %31 : vector<32x1xf32> to vector<32x128xf32>
    %33 = arith.addf %30, %32 : vector<32x128xf32>
    %34 = math.tanh %33 : vector<32x128xf32>
    %c0_12 = arith.constant 0 : index
    %c0_13 = arith.constant 0 : index
    %c0_14 = arith.constant 0 : index
    %35 = vector.load %arg7[%c0_12, %c0_13, %c0_14] : memref<1x32x128xf32, #tpu.memory_space<vmem>>, vector<1x32x128xf32>
    %36 = vector.shape_cast %35 : vector<1x32x128xf32> to vector<32x128xf32>
    %37 = vector.shape_cast %34 : vector<32x128xf32> to vector<1x32x128xf32>
    tpu.vector_store %arg7[%c0_12, %c0_13, %c0_14], %37 {strides = array<i32>} : memref<1x32x128xf32, #tpu.memory_space<vmem>>, vector<1x32x128xf32>,
    return
  }
  func.func @transform_0(%arg0: i32, %arg1: i32) -> (i32, i32, i32) {
    %c0_i32 = arith.constant 0 : i32
    %c0_i32_0 = arith.constant 0 : i32
    return %arg0, %c0_i32, %arg1 : i32, i32, i32
  }
  func.func @transform_1(%arg0: i32, %arg1: i32) -> (i32, i32, i32) {
    %c1_i32 = arith.constant 1 : i32
    %0 = arith.muli %arg1, %c1_i32 : i32
    %c1_i32_0 = arith.constant 1 : i32
    %1 = arith.subi %0, %c1_i32_0 : i32
    %c0_i32 = arith.constant 0 : i32
    %2 = arith.maxsi %1, %c0_i32 : i32
    %c0_i32_1 = arith.constant 0 : i32
    %c0_i32_2 = arith.constant 0 : i32
    return %arg0, %c0_i32_1, %2 : i32, i32, i32
  }
  func.func @transform_2(%arg0: i32, %arg1: i32) -> (i32, i32, i32) {
    %c1_i32 = arith.constant 1 : i32
    %0 = arith.addi %arg1, %c1_i32 : i32
    %c1_i32_0 = arith.constant 1 : i32
    %1 = arith.muli %0, %c1_i32_0 : i32
    %c3_i32 = arith.constant 3 : i32
    %2 = arith.minsi %1, %c3_i32 : i32
    %c0_i32 = arith.constant 0 : i32
    %c0_i32_1 = arith.constant 0 : i32
    return %arg0, %c0_i32, %2 : i32, i32, i32
  }
  func.func @transform_3(%arg0: i32, %arg1: i32) -> (i32, i32) {
    %c0_i32 = arith.constant 0 : i32
    %c0_i32_0 = arith.constant 0 : i32
    %c0_i32_1 = arith.constant 0 : i32
    return %c0_i32, %c0_i32_0 : i32, i32
  }
  func.func @transform_4(%arg0: i32, %arg1: i32) -> (i32, i32) {
    %c0_i32 = arith.constant 0 : i32
    %c0_i32_0 = arith.constant 0 : i32
    %c0_i32_1 = arith.constant 0 : i32
    return %c0_i32, %c0_i32_0 : i32, i32
  }
  func.func @transform_5(%arg0: i32, %arg1: i32) -> (i32, i32, i32) {
    %c0_i32 = arith.constant 0 : i32
    %c0_i32_0 = arith.constant 0 : i32
    return %arg0, %c0_i32, %arg1 : i32, i32, i32
  }
}

module attributes {stable_mosaic.version = 11 : i64} {
  func.func @_resblock_kernel(%arg0: i32, %arg1: i32, %arg2: memref<1x32x128xf32, #tpu.memory_space<vmem>>, %arg3: memref<1x32x128xf32, #tpu.memory_space<vmem>>, %arg4: memref<1x32x128xf32, #tpu.memory_space<vmem>>, %arg5: memref<32x96xf32, #tpu.memory_space<vmem>>, %arg6: memref<32x1xf32, #tpu.memory_space<vmem>>, %arg7: memref<32x32xf32, #tpu.memory_space<vmem>>, %arg8: memref<32x1xf32, #tpu.memory_space<vmem>>, %arg9: memref<32x32xf32, #tpu.memory_space<vmem>>, %arg10: memref<32x1xf32, #tpu.memory_space<vmem>>, %arg11: memref<1x32x128xf32, #tpu.memory_space<vmem>>) attributes {dimension_semantics = [#tpu.dimension_semantics<parallel>, #tpu.dimension_semantics<parallel>], iteration_bounds = array<i64: 2, 4>, scalar_prefetch = 0 : i64, scratch_operands = 0 : i64, tpu.core_type = #tpu.core_type<tc>, window_params = [{transform_indices = @transform_0, window_bounds = array<i64: 1, 32, 128>}, {transform_indices = @transform_1, window_bounds = array<i64: 1, 32, 128>}, {transform_indices = @transform_2, window_bounds = array<i64: 1, 32, 128>}, {pipeline_mode = #tpu.pipeline_mode<synchronous>, transform_indices = @transform_3, window_bounds = array<i64: 32, 96>}, {pipeline_mode = #tpu.pipeline_mode<synchronous>, transform_indices = @transform_4, window_bounds = array<i64: 32, 1>}, {pipeline_mode = #tpu.pipeline_mode<synchronous>, transform_indices = @transform_5, window_bounds = array<i64: 32, 32>}, {pipeline_mode = #tpu.pipeline_mode<synchronous>, transform_indices = @transform_6, window_bounds = array<i64: 32, 1>}, {pipeline_mode = #tpu.pipeline_mode<synchronous>, transform_indices = @transform_7, window_bounds = array<i64: 32, 32>}, {pipeline_mode = #tpu.pipeline_mode<synchronous>, transform_indices = @transform_8, window_bounds = array<i64: 32, 1>}, {transform_indices = @transform_9, window_bounds = array<i64: 1, 32, 128>}]} {
    %c0 = arith.constant 0 : index
    %c0_0 = arith.constant 0 : index
    %c0_1 = arith.constant 0 : index
    %0 = vector.load %arg2[%c0, %c0_0, %c0_1] : memref<1x32x128xf32, #tpu.memory_space<vmem>>, vector<1x32x128xf32>
    %1 = vector.shape_cast %0 : vector<1x32x128xf32> to vector<32x128xf32>
    %c0_2 = arith.constant 0 : index
    %c0_3 = arith.constant 0 : index
    %c0_4 = arith.constant 0 : index
    %2 = vector.load %arg3[%c0_2, %c0_3, %c0_4] : memref<1x32x128xf32, #tpu.memory_space<vmem>>, vector<1x32x128xf32>
    %3 = vector.shape_cast %2 : vector<1x32x128xf32> to vector<32x128xf32>
    %c0_5 = arith.constant 0 : index
    %c0_6 = arith.constant 0 : index
    %c0_7 = arith.constant 0 : index
    %4 = vector.load %arg4[%c0_5, %c0_6, %c0_7] : memref<1x32x128xf32, #tpu.memory_space<vmem>>, vector<1x32x128xf32>
    %5 = vector.shape_cast %4 : vector<1x32x128xf32> to vector<32x128xf32>
    %6 = vector.extract_strided_slice %1 {offsets = [0, 1], sizes = [32, 1], strides = [1, 1]} : vector<32x128xf32> to vector<32x1xf32>
    %7 = vector.extract_strided_slice %1 {offsets = [0, 126], sizes = [32, 1], strides = [1, 1]} : vector<32x128xf32> to vector<32x1xf32>
    %c0_i32 = arith.constant 0 : i32
    %8 = arith.cmpi eq, %arg1, %c0_i32 : i32
    %9 = vector.extract_strided_slice %3 {offsets = [0, 127], sizes = [32, 1], strides = [1, 1]} : vector<32x128xf32> to vector<32x1xf32>
    %10 = arith.select %8, %6, %9 : vector<32x1xf32>
    %c3_i32 = arith.constant 3 : i32
    %11 = arith.cmpi eq, %arg1, %c3_i32 : i32
    %12 = vector.extract_strided_slice %5 {offsets = [0, 0], sizes = [32, 1], strides = [1, 1]} : vector<32x128xf32> to vector<32x1xf32>
    %13 = arith.select %11, %7, %12 : vector<32x1xf32>
    %14 = tpu.concatenate %10, %1, %13 in 1 : vector<32x1xf32>, vector<32x128xf32>, vector<32x1xf32> -> vector<32x130xf32>
    %cst = arith.constant 0.000000e+00 : f32
    %15 = vector.broadcast %cst : f32 to vector<32x130xf32>
    %16 = arith.cmpf oge, %14, %15 : vector<32x130xf32>
    %cst_8 = arith.constant 2.000000e-01 : f32
    %17 = vector.broadcast %cst_8 : f32 to vector<32x130xf32>
    %18 = arith.mulf %17, %14 : vector<32x130xf32>
    %19 = arith.select %16, %14, %18 : vector<32x130xi1>, vector<32x130xf32>
    %20 = vector.extract_strided_slice %19 {offsets = [0, 0], sizes = [32, 128], strides = [1, 1]} : vector<32x130xf32> to vector<32x128xf32>
    %21 = vector.extract_strided_slice %19 {offsets = [0, 1], sizes = [32, 128], strides = [1, 1]} : vector<32x130xf32> to vector<32x128xf32>
    %22 = vector.extract_strided_slice %19 {offsets = [0, 2], sizes = [32, 128], strides = [1, 1]} : vector<32x130xf32> to vector<32x128xf32>
    %23 = tpu.concatenate %20, %21, %22 in 0 : vector<32x128xf32>, vector<32x128xf32>, vector<32x128xf32> -> vector<96x128xf32>
    %c0_9 = arith.constant 0 : index
    %c0_10 = arith.constant 0 : index
    %24 = vector.load %arg5[%c0_9, %c0_10] : memref<32x96xf32, #tpu.memory_space<vmem>>, vector<32x96xf32>
    %cst_11 = arith.constant dense<0.000000e+00> : vector<32x128xf32>
    %25 = tpu.matmul %24, %23, %cst_11 {dimension_numbers = #tpu.dot_dimension_numbers<[1], [0], [0], [1], [0, 0, 1, 1], [], []>} : vector<32x96xf32>, vector<96x128xf32>, vector<32x128xf32> -> vector<32x128xf32>
    %c0_12 = arith.constant 0 : index
    %c0_13 = arith.constant 0 : index
    %26 = vector.load %arg6[%c0_12, %c0_13] : memref<32x1xf32, #tpu.memory_space<vmem>>, vector<32x1xf32>
    %27 = vector.broadcast %26 : vector<32x1xf32> to vector<32x128xf32>
    %28 = arith.addf %25, %27 : vector<32x128xf32>
    %cst_14 = arith.constant 0.000000e+00 : f32
    %29 = vector.broadcast %cst_14 : f32 to vector<32x128xf32>
    %30 = arith.cmpf oge, %28, %29 : vector<32x128xf32>
    %cst_15 = arith.constant 2.000000e-01 : f32
    %31 = vector.broadcast %cst_15 : f32 to vector<32x128xf32>
    %32 = arith.mulf %31, %28 : vector<32x128xf32>
    %33 = arith.select %30, %28, %32 : vector<32x128xi1>, vector<32x128xf32>
    %c0_16 = arith.constant 0 : index
    %c0_17 = arith.constant 0 : index
    %34 = vector.load %arg7[%c0_16, %c0_17] : memref<32x32xf32, #tpu.memory_space<vmem>>, vector<32x32xf32>
    %cst_18 = arith.constant dense<0.000000e+00> : vector<32x128xf32>
    %35 = tpu.matmul %34, %33, %cst_18 {dimension_numbers = #tpu.dot_dimension_numbers<[1], [0], [0], [1], [0, 0, 1, 1], [], []>} : vector<32x32xf32>, vector<32x128xf32>, vector<32x128xf32> -> vector<32x128xf32>
    %c0_19 = arith.constant 0 : index
    %c0_20 = arith.constant 0 : index
    %36 = vector.load %arg8[%c0_19, %c0_20] : memref<32x1xf32, #tpu.memory_space<vmem>>, vector<32x1xf32>
    %37 = vector.broadcast %36 : vector<32x1xf32> to vector<32x128xf32>
    %38 = arith.addf %35, %37 : vector<32x128xf32>
    %c0_21 = arith.constant 0 : index
    %c0_22 = arith.constant 0 : index
    %39 = vector.load %arg9[%c0_21, %c0_22] : memref<32x32xf32, #tpu.memory_space<vmem>>, vector<32x32xf32>
    %cst_23 = arith.constant dense<0.000000e+00> : vector<32x128xf32>
    %40 = tpu.matmul %39, %1, %cst_23 {dimension_numbers = #tpu.dot_dimension_numbers<[1], [0], [0], [1], [0, 0, 1, 1], [], []>} : vector<32x32xf32>, vector<32x128xf32>, vector<32x128xf32> -> vector<32x128xf32>
    %c0_24 = arith.constant 0 : index
    %c0_25 = arith.constant 0 : index
    %41 = vector.load %arg10[%c0_24, %c0_25] : memref<32x1xf32, #tpu.memory_space<vmem>>, vector<32x1xf32>
    %42 = vector.broadcast %41 : vector<32x1xf32> to vector<32x128xf32>
    %43 = arith.addf %40, %42 : vector<32x128xf32>
    %44 = arith.addf %43, %38 : vector<32x128xf32>
    %c0_26 = arith.constant 0 : index
    %c0_27 = arith.constant 0 : index
    %c0_28 = arith.constant 0 : index
    %45 = vector.load %arg11[%c0_26, %c0_27, %c0_28] : memref<1x32x128xf32, #tpu.memory_space<vmem>>, vector<1x32x128xf32>
    %46 = vector.shape_cast %45 : vector<1x32x128xf32> to vector<32x128xf32>
    %47 = vector.shape_cast %44 : vector<32x128xf32> to vector<1x32x128xf32>
    tpu.vector_store %arg11[%c0_26, %c0_27, %c0_28], %47 {strides = array<i32>} : memref<1x32x128xf32, #tpu.memory_space<vmem>>, vector<1x32x128xf32>,
    return
  }
  func.func @transform_0(%arg0: i32, %arg1: i32) -> (i32, i32, i32) {
    %c0_i32 = arith.constant 0 : i32
    %c0_i32_0 = arith.constant 0 : i32
    return %arg0, %c0_i32, %arg1 : i32, i32, i32
  }
  func.func @transform_1(%arg0: i32, %arg1: i32) -> (i32, i32, i32) {
    %c1_i32 = arith.constant 1 : i32
    %0 = arith.muli %arg1, %c1_i32 : i32
    %c1_i32_0 = arith.constant 1 : i32
    %1 = arith.subi %0, %c1_i32_0 : i32
    %c0_i32 = arith.constant 0 : i32
    %2 = arith.maxsi %1, %c0_i32 : i32
    %c0_i32_1 = arith.constant 0 : i32
    %c0_i32_2 = arith.constant 0 : i32
    return %arg0, %c0_i32_1, %2 : i32, i32, i32
  }
  func.func @transform_2(%arg0: i32, %arg1: i32) -> (i32, i32, i32) {
    %c1_i32 = arith.constant 1 : i32
    %0 = arith.addi %arg1, %c1_i32 : i32
    %c1_i32_0 = arith.constant 1 : i32
    %1 = arith.muli %0, %c1_i32_0 : i32
    %c3_i32 = arith.constant 3 : i32
    %2 = arith.minsi %1, %c3_i32 : i32
    %c0_i32 = arith.constant 0 : i32
    %c0_i32_1 = arith.constant 0 : i32
    return %arg0, %c0_i32, %2 : i32, i32, i32
  }
  func.func @transform_3(%arg0: i32, %arg1: i32) -> (i32, i32) {
    %c0_i32 = arith.constant 0 : i32
    %c0_i32_0 = arith.constant 0 : i32
    %c0_i32_1 = arith.constant 0 : i32
    return %c0_i32, %c0_i32_0 : i32, i32
  }
  func.func @transform_4(%arg0: i32, %arg1: i32) -> (i32, i32) {
    %c0_i32 = arith.constant 0 : i32
    %c0_i32_0 = arith.constant 0 : i32
    %c0_i32_1 = arith.constant 0 : i32
    return %c0_i32, %c0_i32_0 : i32, i32
  }
  func.func @transform_5(%arg0: i32, %arg1: i32) -> (i32, i32) {
    %c0_i32 = arith.constant 0 : i32
    %c0_i32_0 = arith.constant 0 : i32
    %c0_i32_1 = arith.constant 0 : i32
    return %c0_i32, %c0_i32_0 : i32, i32
  }
  func.func @transform_6(%arg0: i32, %arg1: i32) -> (i32, i32) {
    %c0_i32 = arith.constant 0 : i32
    %c0_i32_0 = arith.constant 0 : i32
    %c0_i32_1 = arith.constant 0 : i32
    return %c0_i32, %c0_i32_0 : i32, i32
  }
  func.func @transform_7(%arg0: i32, %arg1: i32) -> (i32, i32) {
    %c0_i32 = arith.constant 0 : i32
    %c0_i32_0 = arith.constant 0 : i32
    %c0_i32_1 = arith.constant 0 : i32
    return %c0_i32, %c0_i32_0 : i32, i32
  }
  func.func @transform_8(%arg0: i32, %arg1: i32) -> (i32, i32) {
    %c0_i32 = arith.constant 0 : i32
    %c0_i32_0 = arith.constant 0 : i32
    %c0_i32_1 = arith.constant 0 : i32
    return %c0_i32, %c0_i32_0 : i32, i32
  }
  func.func @transform_9(%arg0: i32, %arg1: i32) -> (i32, i32, i32) {
    %c0_i32 = arith.constant 0 : i32
    %c0_i32_0 = arith.constant 0 : i32
    return %arg0, %c0_i32, %arg1 : i32, i32, i32
  }
}

module attributes {stable_mosaic.version = 11 : i64} {
  func.func @_conv1d_kernel(%arg0: i32, %arg1: i32, %arg2: memref<1x32x128xf32, #tpu.memory_space<vmem>>, %arg3: memref<1x32x128xf32, #tpu.memory_space<vmem>>, %arg4: memref<1x32x128xf32, #tpu.memory_space<vmem>>, %arg5: memref<32x224xf32, #tpu.memory_space<vmem>>, %arg6: memref<32x1xf32, #tpu.memory_space<vmem>>, %arg7: memref<1x32x128xf32, #tpu.memory_space<vmem>>) attributes {dimension_semantics = [#tpu.dimension_semantics<parallel>, #tpu.dimension_semantics<parallel>], iteration_bounds = array<i64: 2, 4>, scalar_prefetch = 0 : i64, scratch_operands = 0 : i64, tpu.core_type = #tpu.core_type<tc>, window_params = [{transform_indices = @transform_0, window_bounds = array<i64: 1, 32, 128>}, {transform_indices = @transform_1, window_bounds = array<i64: 1, 32, 128>}, {transform_indices = @transform_2, window_bounds = array<i64: 1, 32, 128>}, {pipeline_mode = #tpu.pipeline_mode<synchronous>, transform_indices = @transform_3, window_bounds = array<i64: 32, 224>}, {pipeline_mode = #tpu.pipeline_mode<synchronous>, transform_indices = @transform_4, window_bounds = array<i64: 32, 1>}, {transform_indices = @transform_5, window_bounds = array<i64: 1, 32, 128>}]} {
    %c0 = arith.constant 0 : index
    %c0_0 = arith.constant 0 : index
    %c0_1 = arith.constant 0 : index
    %0 = vector.load %arg2[%c0, %c0_0, %c0_1] : memref<1x32x128xf32, #tpu.memory_space<vmem>>, vector<1x32x128xf32>
    %1 = vector.shape_cast %0 : vector<1x32x128xf32> to vector<32x128xf32>
    %c0_2 = arith.constant 0 : index
    %c0_3 = arith.constant 0 : index
    %c0_4 = arith.constant 0 : index
    %2 = vector.load %arg3[%c0_2, %c0_3, %c0_4] : memref<1x32x128xf32, #tpu.memory_space<vmem>>, vector<1x32x128xf32>
    %3 = vector.shape_cast %2 : vector<1x32x128xf32> to vector<32x128xf32>
    %c0_5 = arith.constant 0 : index
    %c0_6 = arith.constant 0 : index
    %c0_7 = arith.constant 0 : index
    %4 = vector.load %arg4[%c0_5, %c0_6, %c0_7] : memref<1x32x128xf32, #tpu.memory_space<vmem>>, vector<1x32x128xf32>
    %5 = vector.shape_cast %4 : vector<1x32x128xf32> to vector<32x128xf32>
    %6 = vector.extract_strided_slice %1 {offsets = [0, 3], sizes = [32, 1], strides = [1, 1]} : vector<32x128xf32> to vector<32x1xf32>
    %7 = vector.extract_strided_slice %1 {offsets = [0, 2], sizes = [32, 1], strides = [1, 1]} : vector<32x128xf32> to vector<32x1xf32>
    %8 = vector.extract_strided_slice %1 {offsets = [0, 1], sizes = [32, 1], strides = [1, 1]} : vector<32x128xf32> to vector<32x1xf32>
    %9 = tpu.concatenate %6, %7, %8 in 1 : vector<32x1xf32>, vector<32x1xf32>, vector<32x1xf32> -> vector<32x3xf32>
    %10 = vector.extract_strided_slice %1 {offsets = [0, 126], sizes = [32, 1], strides = [1, 1]} : vector<32x128xf32> to vector<32x1xf32>
    %11 = vector.extract_strided_slice %1 {offsets = [0, 125], sizes = [32, 1], strides = [1, 1]} : vector<32x128xf32> to vector<32x1xf32>
    %12 = vector.extract_strided_slice %1 {offsets = [0, 124], sizes = [32, 1], strides = [1, 1]} : vector<32x128xf32> to vector<32x1xf32>
    %13 = tpu.concatenate %10, %11, %12 in 1 : vector<32x1xf32>, vector<32x1xf32>, vector<32x1xf32> -> vector<32x3xf32>
    %c0_i32 = arith.constant 0 : i32
    %14 = arith.cmpi eq, %arg1, %c0_i32 : i32
    %15 = vector.extract_strided_slice %3 {offsets = [0, 125], sizes = [32, 3], strides = [1, 1]} : vector<32x128xf32> to vector<32x3xf32>
    %16 = arith.select %14, %9, %15 : vector<32x3xf32>
    %c3_i32 = arith.constant 3 : i32
    %17 = arith.cmpi eq, %arg1, %c3_i32 : i32
    %18 = vector.extract_strided_slice %5 {offsets = [0, 0], sizes = [32, 3], strides = [1, 1]} : vector<32x128xf32> to vector<32x3xf32>
    %19 = arith.select %17, %13, %18 : vector<32x3xf32>
    %20 = tpu.concatenate %16, %1, %19 in 1 : vector<32x3xf32>, vector<32x128xf32>, vector<32x3xf32> -> vector<32x134xf32>
    %cst = arith.constant 0.000000e+00 : f32
    %21 = vector.broadcast %cst : f32 to vector<32x134xf32>
    %22 = arith.cmpf oge, %20, %21 : vector<32x134xf32>
    %cst_8 = arith.constant 2.000000e-01 : f32
    %23 = vector.broadcast %cst_8 : f32 to vector<32x134xf32>
    %24 = arith.mulf %23, %20 : vector<32x134xf32>
    %25 = arith.select %22, %20, %24 : vector<32x134xi1>, vector<32x134xf32>
    %26 = vector.extract_strided_slice %25 {offsets = [0, 0], sizes = [32, 128], strides = [1, 1]} : vector<32x134xf32> to vector<32x128xf32>
    %27 = vector.extract_strided_slice %25 {offsets = [0, 1], sizes = [32, 128], strides = [1, 1]} : vector<32x134xf32> to vector<32x128xf32>
    %28 = vector.extract_strided_slice %25 {offsets = [0, 2], sizes = [32, 128], strides = [1, 1]} : vector<32x134xf32> to vector<32x128xf32>
    %29 = vector.extract_strided_slice %25 {offsets = [0, 3], sizes = [32, 128], strides = [1, 1]} : vector<32x134xf32> to vector<32x128xf32>
    %30 = vector.extract_strided_slice %25 {offsets = [0, 4], sizes = [32, 128], strides = [1, 1]} : vector<32x134xf32> to vector<32x128xf32>
    %31 = vector.extract_strided_slice %25 {offsets = [0, 5], sizes = [32, 128], strides = [1, 1]} : vector<32x134xf32> to vector<32x128xf32>
    %32 = vector.extract_strided_slice %25 {offsets = [0, 6], sizes = [32, 128], strides = [1, 1]} : vector<32x134xf32> to vector<32x128xf32>
    %33 = tpu.concatenate %26, %27, %28, %29, %30, %31, %32 in 0 : vector<32x128xf32>, vector<32x128xf32>, vector<32x128xf32>, vector<32x128xf32>, vector<32x128xf32>, vector<32x128xf32>, vector<32x128xf32> -> vector<224x128xf32>
    %c0_9 = arith.constant 0 : index
    %c0_10 = arith.constant 0 : index
    %34 = vector.load %arg5[%c0_9, %c0_10] : memref<32x224xf32, #tpu.memory_space<vmem>>, vector<32x224xf32>
    %cst_11 = arith.constant dense<0.000000e+00> : vector<32x128xf32>
    %35 = tpu.matmul %34, %33, %cst_11 {dimension_numbers = #tpu.dot_dimension_numbers<[1], [0], [0], [1], [0, 0, 1, 1], [], []>} : vector<32x224xf32>, vector<224x128xf32>, vector<32x128xf32> -> vector<32x128xf32>
    %c0_12 = arith.constant 0 : index
    %c0_13 = arith.constant 0 : index
    %36 = vector.load %arg6[%c0_12, %c0_13] : memref<32x1xf32, #tpu.memory_space<vmem>>, vector<32x1xf32>
    %37 = vector.broadcast %36 : vector<32x1xf32> to vector<32x128xf32>
    %38 = arith.addf %35, %37 : vector<32x128xf32>
    %c0_14 = arith.constant 0 : index
    %c0_15 = arith.constant 0 : index
    %c0_16 = arith.constant 0 : index
    %39 = vector.load %arg7[%c0_14, %c0_15, %c0_16] : memref<1x32x128xf32, #tpu.memory_space<vmem>>, vector<1x32x128xf32>
    %40 = vector.shape_cast %39 : vector<1x32x128xf32> to vector<32x128xf32>
    %41 = vector.shape_cast %38 : vector<32x128xf32> to vector<1x32x128xf32>
    tpu.vector_store %arg7[%c0_14, %c0_15, %c0_16], %41 {strides = array<i32>} : memref<1x32x128xf32, #tpu.memory_space<vmem>>, vector<1x32x128xf32>,
    return
  }
  func.func @transform_0(%arg0: i32, %arg1: i32) -> (i32, i32, i32) {
    %c0_i32 = arith.constant 0 : i32
    %c0_i32_0 = arith.constant 0 : i32
    return %arg0, %c0_i32, %arg1 : i32, i32, i32
  }
  func.func @transform_1(%arg0: i32, %arg1: i32) -> (i32, i32, i32) {
    %c1_i32 = arith.constant 1 : i32
    %0 = arith.muli %arg1, %c1_i32 : i32
    %c1_i32_0 = arith.constant 1 : i32
    %1 = arith.subi %0, %c1_i32_0 : i32
    %c0_i32 = arith.constant 0 : i32
    %2 = arith.maxsi %1, %c0_i32 : i32
    %c0_i32_1 = arith.constant 0 : i32
    %c0_i32_2 = arith.constant 0 : i32
    return %arg0, %c0_i32_1, %2 : i32, i32, i32
  }
  func.func @transform_2(%arg0: i32, %arg1: i32) -> (i32, i32, i32) {
    %c1_i32 = arith.constant 1 : i32
    %0 = arith.addi %arg1, %c1_i32 : i32
    %c1_i32_0 = arith.constant 1 : i32
    %1 = arith.muli %0, %c1_i32_0 : i32
    %c3_i32 = arith.constant 3 : i32
    %2 = arith.minsi %1, %c3_i32 : i32
    %c0_i32 = arith.constant 0 : i32
    %c0_i32_1 = arith.constant 0 : i32
    return %arg0, %c0_i32, %2 : i32, i32, i32
  }
  func.func @transform_3(%arg0: i32, %arg1: i32) -> (i32, i32) {
    %c0_i32 = arith.constant 0 : i32
    %c0_i32_0 = arith.constant 0 : i32
    %c0_i32_1 = arith.constant 0 : i32
    return %c0_i32, %c0_i32_0 : i32, i32
  }
  func.func @transform_4(%arg0: i32, %arg1: i32) -> (i32, i32) {
    %c0_i32 = arith.constant 0 : i32
    %c0_i32_0 = arith.constant 0 : i32
    %c0_i32_1 = arith.constant 0 : i32
    return %c0_i32, %c0_i32_0 : i32, i32
  }
  func.func @transform_5(%arg0: i32, %arg1: i32) -> (i32, i32, i32) {
    %c0_i32 = arith.constant 0 : i32
    %c0_i32_0 = arith.constant 0 : i32
    return %arg0, %c0_i32, %arg1 : i32, i32, i32
  }
}

module attributes {stable_mosaic.version = 11 : i64} {
  func.func @_resblock_kernel(%arg0: i32, %arg1: i32, %arg2: memref<1x32x128xf32, #tpu.memory_space<vmem>>, %arg3: memref<1x32x128xf32, #tpu.memory_space<vmem>>, %arg4: memref<1x32x128xf32, #tpu.memory_space<vmem>>, %arg5: memref<32x96xf32, #tpu.memory_space<vmem>>, %arg6: memref<32x1xf32, #tpu.memory_space<vmem>>, %arg7: memref<32x32xf32, #tpu.memory_space<vmem>>, %arg8: memref<32x1xf32, #tpu.memory_space<vmem>>, %arg9: memref<32x32xf32, #tpu.memory_space<vmem>>, %arg10: memref<32x1xf32, #tpu.memory_space<vmem>>, %arg11: memref<1x32x128xf32, #tpu.memory_space<vmem>>) attributes {dimension_semantics = [#tpu.dimension_semantics<parallel>, #tpu.dimension_semantics<parallel>], iteration_bounds = array<i64: 2, 4>, scalar_prefetch = 0 : i64, scratch_operands = 0 : i64, tpu.core_type = #tpu.core_type<tc>, window_params = [{transform_indices = @transform_0, window_bounds = array<i64: 1, 32, 128>}, {transform_indices = @transform_1, window_bounds = array<i64: 1, 32, 128>}, {transform_indices = @transform_2, window_bounds = array<i64: 1, 32, 128>}, {pipeline_mode = #tpu.pipeline_mode<synchronous>, transform_indices = @transform_3, window_bounds = array<i64: 32, 96>}, {pipeline_mode = #tpu.pipeline_mode<synchronous>, transform_indices = @transform_4, window_bounds = array<i64: 32, 1>}, {pipeline_mode = #tpu.pipeline_mode<synchronous>, transform_indices = @transform_5, window_bounds = array<i64: 32, 32>}, {pipeline_mode = #tpu.pipeline_mode<synchronous>, transform_indices = @transform_6, window_bounds = array<i64: 32, 1>}, {pipeline_mode = #tpu.pipeline_mode<synchronous>, transform_indices = @transform_7, window_bounds = array<i64: 32, 32>}, {pipeline_mode = #tpu.pipeline_mode<synchronous>, transform_indices = @transform_8, window_bounds = array<i64: 32, 1>}, {transform_indices = @transform_9, window_bounds = array<i64: 1, 32, 128>}]} {
    %c0 = arith.constant 0 : index
    %c0_0 = arith.constant 0 : index
    %c0_1 = arith.constant 0 : index
    %0 = vector.load %arg2[%c0, %c0_0, %c0_1] : memref<1x32x128xf32, #tpu.memory_space<vmem>>, vector<1x32x128xf32>
    %1 = vector.shape_cast %0 : vector<1x32x128xf32> to vector<32x128xf32>
    %c0_2 = arith.constant 0 : index
    %c0_3 = arith.constant 0 : index
    %c0_4 = arith.constant 0 : index
    %2 = vector.load %arg3[%c0_2, %c0_3, %c0_4] : memref<1x32x128xf32, #tpu.memory_space<vmem>>, vector<1x32x128xf32>
    %3 = vector.shape_cast %2 : vector<1x32x128xf32> to vector<32x128xf32>
    %c0_5 = arith.constant 0 : index
    %c0_6 = arith.constant 0 : index
    %c0_7 = arith.constant 0 : index
    %4 = vector.load %arg4[%c0_5, %c0_6, %c0_7] : memref<1x32x128xf32, #tpu.memory_space<vmem>>, vector<1x32x128xf32>
    %5 = vector.shape_cast %4 : vector<1x32x128xf32> to vector<32x128xf32>
    %6 = vector.extract_strided_slice %1 {offsets = [0, 3], sizes = [32, 1], strides = [1, 1]} : vector<32x128xf32> to vector<32x1xf32>
    %7 = vector.extract_strided_slice %1 {offsets = [0, 2], sizes = [32, 1], strides = [1, 1]} : vector<32x128xf32> to vector<32x1xf32>
    %8 = vector.extract_strided_slice %1 {offsets = [0, 1], sizes = [32, 1], strides = [1, 1]} : vector<32x128xf32> to vector<32x1xf32>
    %9 = tpu.concatenate %6, %7, %8 in 1 : vector<32x1xf32>, vector<32x1xf32>, vector<32x1xf32> -> vector<32x3xf32>
    %10 = vector.extract_strided_slice %1 {offsets = [0, 126], sizes = [32, 1], strides = [1, 1]} : vector<32x128xf32> to vector<32x1xf32>
    %11 = vector.extract_strided_slice %1 {offsets = [0, 125], sizes = [32, 1], strides = [1, 1]} : vector<32x128xf32> to vector<32x1xf32>
    %12 = vector.extract_strided_slice %1 {offsets = [0, 124], sizes = [32, 1], strides = [1, 1]} : vector<32x128xf32> to vector<32x1xf32>
    %13 = tpu.concatenate %10, %11, %12 in 1 : vector<32x1xf32>, vector<32x1xf32>, vector<32x1xf32> -> vector<32x3xf32>
    %c0_i32 = arith.constant 0 : i32
    %14 = arith.cmpi eq, %arg1, %c0_i32 : i32
    %15 = vector.extract_strided_slice %3 {offsets = [0, 125], sizes = [32, 3], strides = [1, 1]} : vector<32x128xf32> to vector<32x3xf32>
    %16 = arith.select %14, %9, %15 : vector<32x3xf32>
    %c3_i32 = arith.constant 3 : i32
    %17 = arith.cmpi eq, %arg1, %c3_i32 : i32
    %18 = vector.extract_strided_slice %5 {offsets = [0, 0], sizes = [32, 3], strides = [1, 1]} : vector<32x128xf32> to vector<32x3xf32>
    %19 = arith.select %17, %13, %18 : vector<32x3xf32>
    %20 = tpu.concatenate %16, %1, %19 in 1 : vector<32x3xf32>, vector<32x128xf32>, vector<32x3xf32> -> vector<32x134xf32>
    %cst = arith.constant 0.000000e+00 : f32
    %21 = vector.broadcast %cst : f32 to vector<32x134xf32>
    %22 = arith.cmpf oge, %20, %21 : vector<32x134xf32>
    %cst_8 = arith.constant 2.000000e-01 : f32
    %23 = vector.broadcast %cst_8 : f32 to vector<32x134xf32>
    %24 = arith.mulf %23, %20 : vector<32x134xf32>
    %25 = arith.select %22, %20, %24 : vector<32x134xi1>, vector<32x134xf32>
    %26 = vector.extract_strided_slice %25 {offsets = [0, 0], sizes = [32, 128], strides = [1, 1]} : vector<32x134xf32> to vector<32x128xf32>
    %27 = vector.extract_strided_slice %25 {offsets = [0, 3], sizes = [32, 128], strides = [1, 1]} : vector<32x134xf32> to vector<32x128xf32>
    %28 = vector.extract_strided_slice %25 {offsets = [0, 6], sizes = [32, 128], strides = [1, 1]} : vector<32x134xf32> to vector<32x128xf32>
    %29 = tpu.concatenate %26, %27, %28 in 0 : vector<32x128xf32>, vector<32x128xf32>, vector<32x128xf32> -> vector<96x128xf32>
    %c0_9 = arith.constant 0 : index
    %c0_10 = arith.constant 0 : index
    %30 = vector.load %arg5[%c0_9, %c0_10] : memref<32x96xf32, #tpu.memory_space<vmem>>, vector<32x96xf32>
    %cst_11 = arith.constant dense<0.000000e+00> : vector<32x128xf32>
    %31 = tpu.matmul %30, %29, %cst_11 {dimension_numbers = #tpu.dot_dimension_numbers<[1], [0], [0], [1], [0, 0, 1, 1], [], []>} : vector<32x96xf32>, vector<96x128xf32>, vector<32x128xf32> -> vector<32x128xf32>
    %c0_12 = arith.constant 0 : index
    %c0_13 = arith.constant 0 : index
    %32 = vector.load %arg6[%c0_12, %c0_13] : memref<32x1xf32, #tpu.memory_space<vmem>>, vector<32x1xf32>
    %33 = vector.broadcast %32 : vector<32x1xf32> to vector<32x128xf32>
    %34 = arith.addf %31, %33 : vector<32x128xf32>
    %cst_14 = arith.constant 0.000000e+00 : f32
    %35 = vector.broadcast %cst_14 : f32 to vector<32x128xf32>
    %36 = arith.cmpf oge, %34, %35 : vector<32x128xf32>
    %cst_15 = arith.constant 2.000000e-01 : f32
    %37 = vector.broadcast %cst_15 : f32 to vector<32x128xf32>
    %38 = arith.mulf %37, %34 : vector<32x128xf32>
    %39 = arith.select %36, %34, %38 : vector<32x128xi1>, vector<32x128xf32>
    %c0_16 = arith.constant 0 : index
    %c0_17 = arith.constant 0 : index
    %40 = vector.load %arg7[%c0_16, %c0_17] : memref<32x32xf32, #tpu.memory_space<vmem>>, vector<32x32xf32>
    %cst_18 = arith.constant dense<0.000000e+00> : vector<32x128xf32>
    %41 = tpu.matmul %40, %39, %cst_18 {dimension_numbers = #tpu.dot_dimension_numbers<[1], [0], [0], [1], [0, 0, 1, 1], [], []>} : vector<32x32xf32>, vector<32x128xf32>, vector<32x128xf32> -> vector<32x128xf32>
    %c0_19 = arith.constant 0 : index
    %c0_20 = arith.constant 0 : index
    %42 = vector.load %arg8[%c0_19, %c0_20] : memref<32x1xf32, #tpu.memory_space<vmem>>, vector<32x1xf32>
    %43 = vector.broadcast %42 : vector<32x1xf32> to vector<32x128xf32>
    %44 = arith.addf %41, %43 : vector<32x128xf32>
    %c0_21 = arith.constant 0 : index
    %c0_22 = arith.constant 0 : index
    %45 = vector.load %arg9[%c0_21, %c0_22] : memref<32x32xf32, #tpu.memory_space<vmem>>, vector<32x32xf32>
    %cst_23 = arith.constant dense<0.000000e+00> : vector<32x128xf32>
    %46 = tpu.matmul %45, %1, %cst_23 {dimension_numbers = #tpu.dot_dimension_numbers<[1], [0], [0], [1], [0, 0, 1, 1], [], []>} : vector<32x32xf32>, vector<32x128xf32>, vector<32x128xf32> -> vector<32x128xf32>
    %c0_24 = arith.constant 0 : index
    %c0_25 = arith.constant 0 : index
    %47 = vector.load %arg10[%c0_24, %c0_25] : memref<32x1xf32, #tpu.memory_space<vmem>>, vector<32x1xf32>
    %48 = vector.broadcast %47 : vector<32x1xf32> to vector<32x128xf32>
    %49 = arith.addf %46, %48 : vector<32x128xf32>
    %50 = arith.addf %49, %44 : vector<32x128xf32>
    %c0_26 = arith.constant 0 : index
    %c0_27 = arith.constant 0 : index
    %c0_28 = arith.constant 0 : index
    %51 = vector.load %arg11[%c0_26, %c0_27, %c0_28] : memref<1x32x128xf32, #tpu.memory_space<vmem>>, vector<1x32x128xf32>
    %52 = vector.shape_cast %51 : vector<1x32x128xf32> to vector<32x128xf32>
    %53 = vector.shape_cast %50 : vector<32x128xf32> to vector<1x32x128xf32>
    tpu.vector_store %arg11[%c0_26, %c0_27, %c0_28], %53 {strides = array<i32>} : memref<1x32x128xf32, #tpu.memory_space<vmem>>, vector<1x32x128xf32>,
    return
  }
  func.func @transform_0(%arg0: i32, %arg1: i32) -> (i32, i32, i32) {
    %c0_i32 = arith.constant 0 : i32
    %c0_i32_0 = arith.constant 0 : i32
    return %arg0, %c0_i32, %arg1 : i32, i32, i32
  }
  func.func @transform_1(%arg0: i32, %arg1: i32) -> (i32, i32, i32) {
    %c1_i32 = arith.constant 1 : i32
    %0 = arith.muli %arg1, %c1_i32 : i32
    %c1_i32_0 = arith.constant 1 : i32
    %1 = arith.subi %0, %c1_i32_0 : i32
    %c0_i32 = arith.constant 0 : i32
    %2 = arith.maxsi %1, %c0_i32 : i32
    %c0_i32_1 = arith.constant 0 : i32
    %c0_i32_2 = arith.constant 0 : i32
    return %arg0, %c0_i32_1, %2 : i32, i32, i32
  }
  func.func @transform_2(%arg0: i32, %arg1: i32) -> (i32, i32, i32) {
    %c1_i32 = arith.constant 1 : i32
    %0 = arith.addi %arg1, %c1_i32 : i32
    %c1_i32_0 = arith.constant 1 : i32
    %1 = arith.muli %0, %c1_i32_0 : i32
    %c3_i32 = arith.constant 3 : i32
    %2 = arith.minsi %1, %c3_i32 : i32
    %c0_i32 = arith.constant 0 : i32
    %c0_i32_1 = arith.constant 0 : i32
    return %arg0, %c0_i32, %2 : i32, i32, i32
  }
  func.func @transform_3(%arg0: i32, %arg1: i32) -> (i32, i32) {
    %c0_i32 = arith.constant 0 : i32
    %c0_i32_0 = arith.constant 0 : i32
    %c0_i32_1 = arith.constant 0 : i32
    return %c0_i32, %c0_i32_0 : i32, i32
  }
  func.func @transform_4(%arg0: i32, %arg1: i32) -> (i32, i32) {
    %c0_i32 = arith.constant 0 : i32
    %c0_i32_0 = arith.constant 0 : i32
    %c0_i32_1 = arith.constant 0 : i32
    return %c0_i32, %c0_i32_0 : i32, i32
  }
  func.func @transform_5(%arg0: i32, %arg1: i32) -> (i32, i32) {
    %c0_i32 = arith.constant 0 : i32
    %c0_i32_0 = arith.constant 0 : i32
    %c0_i32_1 = arith.constant 0 : i32
    return %c0_i32, %c0_i32_0 : i32, i32
  }
  func.func @transform_6(%arg0: i32, %arg1: i32) -> (i32, i32) {
    %c0_i32 = arith.constant 0 : i32
    %c0_i32_0 = arith.constant 0 : i32
    %c0_i32_1 = arith.constant 0 : i32
    return %c0_i32, %c0_i32_0 : i32, i32
  }
  func.func @transform_7(%arg0: i32, %arg1: i32) -> (i32, i32) {
    %c0_i32 = arith.constant 0 : i32
    %c0_i32_0 = arith.constant 0 : i32
    %c0_i32_1 = arith.constant 0 : i32
    return %c0_i32, %c0_i32_0 : i32, i32
  }
  func.func @transform_8(%arg0: i32, %arg1: i32) -> (i32, i32) {
    %c0_i32 = arith.constant 0 : i32
    %c0_i32_0 = arith.constant 0 : i32
    %c0_i32_1 = arith.constant 0 : i32
    return %c0_i32, %c0_i32_0 : i32, i32
  }
  func.func @transform_9(%arg0: i32, %arg1: i32) -> (i32, i32, i32) {
    %c0_i32 = arith.constant 0 : i32
    %c0_i32_0 = arith.constant 0 : i32
    return %arg0, %c0_i32, %arg1 : i32, i32, i32
  }
}

module attributes {stable_mosaic.version = 11 : i64} {
  func.func @_conv1d_kernel(%arg0: i32, %arg1: i32, %arg2: memref<1x32x128xf32, #tpu.memory_space<vmem>>, %arg3: memref<1x32x128xf32, #tpu.memory_space<vmem>>, %arg4: memref<1x32x128xf32, #tpu.memory_space<vmem>>, %arg5: memref<4x224xf32, #tpu.memory_space<vmem>>, %arg6: memref<4x1xf32, #tpu.memory_space<vmem>>, %arg7: memref<1x4x128xf32, #tpu.memory_space<vmem>>) attributes {dimension_semantics = [#tpu.dimension_semantics<parallel>, #tpu.dimension_semantics<parallel>], iteration_bounds = array<i64: 2, 4>, scalar_prefetch = 0 : i64, scratch_operands = 0 : i64, tpu.core_type = #tpu.core_type<tc>, window_params = [{transform_indices = @transform_0, window_bounds = array<i64: 1, 32, 128>}, {transform_indices = @transform_1, window_bounds = array<i64: 1, 32, 128>}, {transform_indices = @transform_2, window_bounds = array<i64: 1, 32, 128>}, {pipeline_mode = #tpu.pipeline_mode<synchronous>, transform_indices = @transform_3, window_bounds = array<i64: 4, 224>}, {pipeline_mode = #tpu.pipeline_mode<synchronous>, transform_indices = @transform_4, window_bounds = array<i64: 4, 1>}, {transform_indices = @transform_5, window_bounds = array<i64: 1, 4, 128>}]} {
    %c0 = arith.constant 0 : index
    %c0_0 = arith.constant 0 : index
    %c0_1 = arith.constant 0 : index
    %0 = vector.load %arg2[%c0, %c0_0, %c0_1] : memref<1x32x128xf32, #tpu.memory_space<vmem>>, vector<1x32x128xf32>
    %1 = vector.shape_cast %0 : vector<1x32x128xf32> to vector<32x128xf32>
    %c0_2 = arith.constant 0 : index
    %c0_3 = arith.constant 0 : index
    %c0_4 = arith.constant 0 : index
    %2 = vector.load %arg3[%c0_2, %c0_3, %c0_4] : memref<1x32x128xf32, #tpu.memory_space<vmem>>, vector<1x32x128xf32>
    %3 = vector.shape_cast %2 : vector<1x32x128xf32> to vector<32x128xf32>
    %c0_5 = arith.constant 0 : index
    %c0_6 = arith.constant 0 : index
    %c0_7 = arith.constant 0 : index
    %4 = vector.load %arg4[%c0_5, %c0_6, %c0_7] : memref<1x32x128xf32, #tpu.memory_space<vmem>>, vector<1x32x128xf32>
    %5 = vector.shape_cast %4 : vector<1x32x128xf32> to vector<32x128xf32>
    %6 = vector.extract_strided_slice %1 {offsets = [0, 3], sizes = [32, 1], strides = [1, 1]} : vector<32x128xf32> to vector<32x1xf32>
    %7 = vector.extract_strided_slice %1 {offsets = [0, 2], sizes = [32, 1], strides = [1, 1]} : vector<32x128xf32> to vector<32x1xf32>
    %8 = vector.extract_strided_slice %1 {offsets = [0, 1], sizes = [32, 1], strides = [1, 1]} : vector<32x128xf32> to vector<32x1xf32>
    %9 = tpu.concatenate %6, %7, %8 in 1 : vector<32x1xf32>, vector<32x1xf32>, vector<32x1xf32> -> vector<32x3xf32>
    %10 = vector.extract_strided_slice %1 {offsets = [0, 126], sizes = [32, 1], strides = [1, 1]} : vector<32x128xf32> to vector<32x1xf32>
    %11 = vector.extract_strided_slice %1 {offsets = [0, 125], sizes = [32, 1], strides = [1, 1]} : vector<32x128xf32> to vector<32x1xf32>
    %12 = vector.extract_strided_slice %1 {offsets = [0, 124], sizes = [32, 1], strides = [1, 1]} : vector<32x128xf32> to vector<32x1xf32>
    %13 = tpu.concatenate %10, %11, %12 in 1 : vector<32x1xf32>, vector<32x1xf32>, vector<32x1xf32> -> vector<32x3xf32>
    %c0_i32 = arith.constant 0 : i32
    %14 = arith.cmpi eq, %arg1, %c0_i32 : i32
    %15 = vector.extract_strided_slice %3 {offsets = [0, 125], sizes = [32, 3], strides = [1, 1]} : vector<32x128xf32> to vector<32x3xf32>
    %16 = arith.select %14, %9, %15 : vector<32x3xf32>
    %c3_i32 = arith.constant 3 : i32
    %17 = arith.cmpi eq, %arg1, %c3_i32 : i32
    %18 = vector.extract_strided_slice %5 {offsets = [0, 0], sizes = [32, 3], strides = [1, 1]} : vector<32x128xf32> to vector<32x3xf32>
    %19 = arith.select %17, %13, %18 : vector<32x3xf32>
    %20 = tpu.concatenate %16, %1, %19 in 1 : vector<32x3xf32>, vector<32x128xf32>, vector<32x3xf32> -> vector<32x134xf32>
    %cst = arith.constant 0.000000e+00 : f32
    %21 = vector.broadcast %cst : f32 to vector<32x134xf32>
    %22 = arith.cmpf oge, %20, %21 : vector<32x134xf32>
    %cst_8 = arith.constant 2.000000e-01 : f32
    %23 = vector.broadcast %cst_8 : f32 to vector<32x134xf32>
    %24 = arith.mulf %23, %20 : vector<32x134xf32>
    %25 = arith.select %22, %20, %24 : vector<32x134xi1>, vector<32x134xf32>
    %26 = vector.extract_strided_slice %25 {offsets = [0, 0], sizes = [32, 128], strides = [1, 1]} : vector<32x134xf32> to vector<32x128xf32>
    %27 = vector.extract_strided_slice %25 {offsets = [0, 1], sizes = [32, 128], strides = [1, 1]} : vector<32x134xf32> to vector<32x128xf32>
    %28 = vector.extract_strided_slice %25 {offsets = [0, 2], sizes = [32, 128], strides = [1, 1]} : vector<32x134xf32> to vector<32x128xf32>
    %29 = vector.extract_strided_slice %25 {offsets = [0, 3], sizes = [32, 128], strides = [1, 1]} : vector<32x134xf32> to vector<32x128xf32>
    %30 = vector.extract_strided_slice %25 {offsets = [0, 4], sizes = [32, 128], strides = [1, 1]} : vector<32x134xf32> to vector<32x128xf32>
    %31 = vector.extract_strided_slice %25 {offsets = [0, 5], sizes = [32, 128], strides = [1, 1]} : vector<32x134xf32> to vector<32x128xf32>
    %32 = vector.extract_strided_slice %25 {offsets = [0, 6], sizes = [32, 128], strides = [1, 1]} : vector<32x134xf32> to vector<32x128xf32>
    %33 = tpu.concatenate %26, %27, %28, %29, %30, %31, %32 in 0 : vector<32x128xf32>, vector<32x128xf32>, vector<32x128xf32>, vector<32x128xf32>, vector<32x128xf32>, vector<32x128xf32>, vector<32x128xf32> -> vector<224x128xf32>
    %c0_9 = arith.constant 0 : index
    %c0_10 = arith.constant 0 : index
    %34 = vector.load %arg5[%c0_9, %c0_10] : memref<4x224xf32, #tpu.memory_space<vmem>>, vector<4x224xf32>
    %cst_11 = arith.constant dense<0.000000e+00> : vector<4x128xf32>
    %35 = tpu.matmul %34, %33, %cst_11 {dimension_numbers = #tpu.dot_dimension_numbers<[1], [0], [0], [1], [0, 0, 1, 1], [], []>} : vector<4x224xf32>, vector<224x128xf32>, vector<4x128xf32> -> vector<4x128xf32>
    %c0_12 = arith.constant 0 : index
    %c0_13 = arith.constant 0 : index
    %36 = vector.load %arg6[%c0_12, %c0_13] : memref<4x1xf32, #tpu.memory_space<vmem>>, vector<4x1xf32>
    %37 = vector.broadcast %36 : vector<4x1xf32> to vector<4x128xf32>
    %38 = arith.addf %35, %37 : vector<4x128xf32>
    %c0_14 = arith.constant 0 : index
    %c0_15 = arith.constant 0 : index
    %c0_16 = arith.constant 0 : index
    %39 = vector.load %arg7[%c0_14, %c0_15, %c0_16] : memref<1x4x128xf32, #tpu.memory_space<vmem>>, vector<1x4x128xf32>
    %40 = vector.shape_cast %39 : vector<1x4x128xf32> to vector<4x128xf32>
    %41 = vector.shape_cast %38 : vector<4x128xf32> to vector<1x4x128xf32>
    tpu.vector_store %arg7[%c0_14, %c0_15, %c0_16], %41 {strides = array<i32>} : memref<1x4x128xf32, #tpu.memory_space<vmem>>, vector<1x4x128xf32>,
    return
  }
  func.func @transform_0(%arg0: i32, %arg1: i32) -> (i32, i32, i32) {
    %c0_i32 = arith.constant 0 : i32
    %c0_i32_0 = arith.constant 0 : i32
    return %arg0, %c0_i32, %arg1 : i32, i32, i32
  }
  func.func @transform_1(%arg0: i32, %arg1: i32) -> (i32, i32, i32) {
    %c1_i32 = arith.constant 1 : i32
    %0 = arith.muli %arg1, %c1_i32 : i32
    %c1_i32_0 = arith.constant 1 : i32
    %1 = arith.subi %0, %c1_i32_0 : i32
    %c0_i32 = arith.constant 0 : i32
    %2 = arith.maxsi %1, %c0_i32 : i32
    %c0_i32_1 = arith.constant 0 : i32
    %c0_i32_2 = arith.constant 0 : i32
    return %arg0, %c0_i32_1, %2 : i32, i32, i32
  }
  func.func @transform_2(%arg0: i32, %arg1: i32) -> (i32, i32, i32) {
    %c1_i32 = arith.constant 1 : i32
    %0 = arith.addi %arg1, %c1_i32 : i32
    %c1_i32_0 = arith.constant 1 : i32
    %1 = arith.muli %0, %c1_i32_0 : i32
    %c3_i32 = arith.constant 3 : i32
    %2 = arith.minsi %1, %c3_i32 : i32
    %c0_i32 = arith.constant 0 : i32
    %c0_i32_1 = arith.constant 0 : i32
    return %arg0, %c0_i32, %2 : i32, i32, i32
  }
  func.func @transform_3(%arg0: i32, %arg1: i32) -> (i32, i32) {
    %c0_i32 = arith.constant 0 : i32
    %c0_i32_0 = arith.constant 0 : i32
    %c0_i32_1 = arith.constant 0 : i32
    return %c0_i32, %c0_i32_0 : i32, i32
  }
  func.func @transform_4(%arg0: i32, %arg1: i32) -> (i32, i32) {
    %c0_i32 = arith.constant 0 : i32
    %c0_i32_0 = arith.constant 0 : i32
    %c0_i32_1 = arith.constant 0 : i32
    return %c0_i32, %c0_i32_0 : i32, i32
  }
  func.func @transform_5(%arg0: i32, %arg1: i32) -> (i32, i32, i32) {
    %c0_i32 = arith.constant 0 : i32
    %c0_i32_0 = arith.constant 0 : i32
    return %arg0, %c0_i32, %arg1 : i32, i32, i32
  }
}

</mosaic_0001>

<llo_original>
// kernel: high_pass_forward.5
$region0: #{high_pass_forward.5}
  #allocation0 [shape = 'u32[]', space=smem, size = 0x4, offset = 0x4, fixed_abs, tag = 'smem constant byte address 0x4 - core index']
  #allocation1 [shape = 'u32[144,128]{1,0:T(1,128)}', space=vmem, size = 0x12000, scoped, tag = 'internal scratch']
  %s0 = inlined_call_operand.vmem [shape: f32[2,4,512], index: 0, kind: input, shape index: {}, may-alias: {0,1,2}]
  %s1 = inlined_call_operand.vmem [shape: f32[2,4,512], index: 1, kind: input, shape index: {}, may-alias: {0,1,2}]
  %s2 = inlined_call_operand.vmem [shape: f32[2,4,512], index: 2, kind: input, shape index: {}, may-alias: {0,1,2}]
  %s3 = inlined_call_operand.vmem [shape: f32[32,28], index: 3, kind: input, shape index: {}]
  %s4 = inlined_call_operand.vmem [shape: f32[32,1], index: 4, kind: input, shape index: {}]
  %s5 = inlined_call_operand.vmem [shape: f32[2,32,512], index: 5, kind: output, shape index: {}]
  %s6 = sld [smem:[#allocation0]]
  $region87: #{high_pass_forward.5} parent=0
    _
  %s8 = ssub.s32 1, %s6
  %s9 = scalar_select 0, %s8, %s6
  $region1: #{high_pass_forward.5} parent=0
    #allocation2 [shape = 'u8[32768]{0}', space=vmem, size = 0x8000, scoped, tag = 'output window, operand 0']
    loop: start=0, step=1, limit=10
    $region2: #{high_pass_forward.5} parent=1 // loop_pre_header
      _
    $region3: #{high_pass_forward.5} parent=1 // loop_header
      %s11 = sphi 0, %s15
      %p12 = scmp.ge.s32.totalorder %s11, 10
      %s18 = sphi 0, %s30
      %s19 = sphi 0, %s26
      %s20 = sphi 0, %s18
      %s21 = sphi 0, %s19
      %s22 = sphi 0, %s20
      %s23 = sphi 0, %s21
      %s35 = sphi 0, %s37
      %s38 = sphi 0, %s35
      %s39 = sphi 0, %s38
      %s55 = sphi 0, %s39
      %s69 = sphi 0, %s71
      %s72 = sphi 0, %s69
      %s73 = sphi 0, %s72
      %s89 = sphi 0, %s73
      %s103 = sphi 0, %s105
      %s106 = sphi 0, %s103
      %s107 = sphi 0, %s106
      %s123 = sphi 0, %s107
      %s127 = sphi 0, %s127
      %s129 = sphi 0, %s127
      %s130 = sphi 0, %s129
      %s144 = sphi 0, %s130
      %s148 = sphi 0, %s148
      %s150 = sphi 0, %s148
      %s151 = sphi 0, %s150
      %s165 = sphi 0, %s151
      %s173 = sphi 0, %s175
      %s176 = sphi 0, %s173
      %s177 = sphi 0, %s176
      %s193 = sphi 0, %s177
    $region4: #{high_pass_forward.5} parent=1 // loop_header_branch
      %14 = sbr.rel (%p12) target = $region8
    $region5: #{high_pass_forward.5} parent=1 // loop_body
      %s16 = ssub.s32 %s11, 1
      %s17 = ssub.s32 %s11, 2
      %s24 = sadd.s32 1, %s19
      %p25 = scmp.ge.s32.totalorder %s24, 4
      %s26 = scalar_select %p25, 0, %s24
      %s27 = sadd.s32 1, %s18
      %s28 = scalar_select %p25, %s27, %s18
      %p29 = scmp.ge.s32.totalorder %s28, 2
      %s30 = scalar_select %p29, 0, %s28
      %s31 = ssub.s32 %s18, %s30
      %s32 = ssub.s32 %s19, %s26
      %s33 = sor.u32 %s31, %s32
      %p34 = scmp.eq.s32.totalorder %s33, 0
      %s36 = sadd.s32 %s35, 1
      %s37 = scalar_select %p34, %s35, %s36
      %p40 = pneg %p34
      %p41 = scmp.eq.s32.totalorder %s11, 7
      %p42 = por %p40, %p41
      %p43 = scmp.ne.s32.totalorder %s35, %s38
      %p44 = scmp.eq.s32.totalorder %s11, 0
      %p45 = por %p43, %p44
      %p46 = scmp.ne.s32.totalorder %s35, %s38
      %p47 = scmp.eq.s32.totalorder %s16, 7
      %p48 = por %p46, %p47
      %p49 = scmp.ne.s32.totalorder %s38, %s39
      %p50 = scmp.eq.s32.totalorder %s16, 0
      %p51 = por %p49, %p50
      %p52 = scmp.ne.s32.totalorder %s38, %s39
      %p53 = scmp.eq.s32.totalorder %s17, 7
      %p54 = por %p52, %p53
      %p56 = scmp.ne.s32.totalorder %s39, %s55
      %p57 = scmp.eq.s32.totalorder %s17, 0
      %p58 = por %p56, %p57
      %s59 = ssub.s32 %s19, 1
      %p60 = scmp.gt.s32.totalorder %s59, 0
      %s61 = scalar_select %p60, %s59, 0
      %s62 = ssub.s32 %s26, 1
      %p63 = scmp.gt.s32.totalorder %s62, 0
      %s64 = scalar_select %p63, %s62, 0
      %s65 = ssub.s32 %s18, %s30
      %s66 = ssub.s32 %s61, %s64
      %s67 = sor.u32 %s65, %s66
      %p68 = scmp.eq.s32.totalorder %s67, 0
      %s70 = sadd.s32 %s69, 1
      %s71 = scalar_select %p68, %s69, %s70
      %p74 = pneg %p68
      %p75 = scmp.eq.s32.totalorder %s11, 7
      %p76 = por %p74, %p75
      %p77 = scmp.ne.s32.totalorder %s69, %s72
      %p78 = scmp.eq.s32.totalorder %s11, 0
      %p79 = por %p77, %p78
      %p80 = scmp.ne.s32.totalorder %s69, %s72
      %p81 = scmp.eq.s32.totalorder %s16, 7
      %p82 = por %p80, %p81
      %p83 = scmp.ne.s32.totalorder %s72, %s73
      %p84 = scmp.eq.s32.totalorder %s16, 0
      %p85 = por %p83, %p84
      %p86 = scmp.ne.s32.totalorder %s72, %s73
      %p87 = scmp.eq.s32.totalorder %s17, 7
      %p88 = por %p86, %p87
      %p90 = scmp.ne.s32.totalorder %s73, %s89
      %p91 = scmp.eq.s32.totalorder %s17, 0
      %p92 = por %p90, %p91
      %s93 = sadd.s32 %s19, 1
      %p94 = scmp.lt.s32.totalorder %s93, 3
      %s95 = scalar_select %p94, %s93, 3
      %s96 = sadd.s32 %s26, 1
      %p97 = scmp.lt.s32.totalorder %s96, 3
      %s98 = scalar_select %p97, %s96, 3
      %s99 = ssub.s32 %s18, %s30
      %s100 = ssub.s32 %s95, %s98
      %s101 = sor.u32 %s99, %s100
      %p102 = scmp.eq.s32.totalorder %s101, 0
      %s104 = sadd.s32 %s103, 1
      %s105 = scalar_select %p102, %s103, %s104
      %p108 = pneg %p102
      %p109 = scmp.eq.s32.totalorder %s11, 7
      %p110 = por %p108, %p109
      %p111 = scmp.ne.s32.totalorder %s103, %s106
      %p112 = scmp.eq.s32.totalorder %s11, 0
      %p113 = por %p111, %p112
      %p114 = scmp.ne.s32.totalorder %s103, %s106
      %p115 = scmp.eq.s32.totalorder %s16, 7
      %p116 = por %p114, %p115
      %p117 = scmp.ne.s32.totalorder %s106, %s107
      %p118 = scmp.eq.s32.totalorder %s16, 0
      %p119 = por %p117, %p118
      %p120 = scmp.ne.s32.totalorder %s106, %s107
      %p121 = scmp.eq.s32.totalorder %s17, 7
      %p122 = por %p120, %p121
      %p124 = scmp.ne.s32.totalorder %s107, %s123
      %p125 = scmp.eq.s32.totalorder %s17, 0
      %p126 = por %p124, %p125
      %s128 = sadd.s32 %s127, 1
      %p131 = scmp.eq.s32.totalorder %s11, 7
      %p132 = scmp.ne.s32.totalorder %s127, %s129
      %p133 = scmp.eq.s32.totalorder %s11, 0
      %p134 = por %p132, %p133
      %p135 = scmp.ne.s32.totalorder %s127, %s129
      %p136 = scmp.eq.s32.totalorder %s16, 7
      %p137 = por %p135, %p136
      %p138 = scmp.ne.s32.totalorder %s129, %s130
      %p139 = scmp.eq.s32.totalorder %s16, 0
      %p140 = por %p138, %p139
      %p141 = scmp.ne.s32.totalorder %s129, %s130
      %p142 = scmp.eq.s32.totalorder %s17, 7
      %p143 = por %p141, %p142
      %p145 = scmp.ne.s32.totalorder %s130, %s144
      %p146 = scmp.eq.s32.totalorder %s17, 0
      %p147 = por %p145, %p146
      %s149 = sadd.s32 %s148, 1
      %p152 = scmp.eq.s32.totalorder %s11, 7
      %p153 = scmp.ne.s32.totalorder %s148, %s150
      %p154 = scmp.eq.s32.totalorder %s11, 0
      %p155 = por %p153, %p154
      %p156 = scmp.ne.s32.totalorder %s148, %s150
      %p157 = scmp.eq.s32.totalorder %s16, 7
      %p158 = por %p156, %p157
      %p159 = scmp.ne.s32.totalorder %s150, %s151
      %p160 = scmp.eq.s32.totalorder %s16, 0
      %p161 = por %p159, %p160
      %p162 = scmp.ne.s32.totalorder %s150, %s151
      %p163 = scmp.eq.s32.totalorder %s17, 7
      %p164 = por %p162, %p163
      %p166 = scmp.ne.s32.totalorder %s151, %s165
      %p167 = scmp.eq.s32.totalorder %s17, 0
      %p168 = por %p166, %p167
      %s169 = ssub.s32 %s18, %s30
      %s170 = ssub.s32 %s19, %s26
      %s171 = sor.u32 %s169, %s170
      %p172 = scmp.eq.s32.totalorder %s171, 0
      %s174 = sadd.s32 %s173, 1
      %s175 = scalar_select %p172, %s173, %s174
      %p178 = pneg %p172
      %p179 = scmp.eq.s32.totalorder %s11, 7
      %p180 = por %p178, %p179
      %p181 = scmp.ne.s32.totalorder %s173, %s176
      %p182 = scmp.eq.s32.totalorder %s11, 0
      %p183 = por %p181, %p182
      %p184 = scmp.ne.s32.totalorder %s173, %s176
      %p185 = scmp.eq.s32.totalorder %s16, 7
      %p186 = por %p184, %p185
      %p187 = scmp.ne.s32.totalorder %s176, %s177
      %p188 = scmp.eq.s32.totalorder %s16, 0
      %p189 = por %p187, %p188
      %p190 = scmp.ne.s32.totalorder %s176, %s177
      %p191 = scmp.eq.s32.totalorder %s17, 7
      %p192 = por %p190, %p191
      %p194 = scmp.ne.s32.totalorder %s177, %s193
      %p195 = scmp.eq.s32.totalorder %s17, 0
      %p196 = por %p194, %p195
      %p197 = scmp.le.s32.totalorder 1, %s11
      %p198 = scmp.lt.s32.totalorder %s11, 9
      %p199 = pnand %p197, %p198
      %p200 = pneg %p199
      // Predicated region
      $region9: #{high_pass_forward.5} parent=5 // pred_check
        _
      $region10: #{high_pass_forward.5} parent=5 // pred_check_branch
        %202 = sbr.rel (%p199) target = $region12
      $region11: #{high_pass_forward.5} parent=5 // pred_region
        %s203 = ssub.s32 %s11, 1
        // Predicated region
        $region13: #{high_pass_forward.5} parent=11 // pred_check
          %p204 = pneg %p140
        $region14: #{high_pass_forward.5} parent=11 // pred_check_branch
          %206 = sbr.rel (%p204) target = $region16
        $region15: #{high_pass_forward.5} parent=11 // pred_region
          _
        $region16: #{high_pass_forward.5} parent=11 // pred_fallthru
          _
        // Predicated region
        $region17: #{high_pass_forward.5} parent=11 // pred_check
          %p207 = pneg %p161
        $region18: #{high_pass_forward.5} parent=11 // pred_check_branch
          %209 = sbr.rel (%p207) target = $region20
        $region19: #{high_pass_forward.5} parent=11 // pred_region
          _
        $region20: #{high_pass_forward.5} parent=11 // pred_fallthru
          _
      $region12: #{high_pass_forward.5} parent=5 // pred_fallthru
        _
      %p210 = scmp.lt.s32.totalorder %s11, 8
      // Predicated region
      $region21: #{high_pass_forward.5} parent=5 // pred_check
        %p211 = pneg %p210
      $region22: #{high_pass_forward.5} parent=5 // pred_check_branch
        %213 = sbr.rel (%p211) target = $region24
      $region23: #{high_pass_forward.5} parent=5 // pred_region
        // Predicated region
        $region25: #{high_pass_forward.5} parent=23 // pred_check
          %p214 = pneg %p45
        $region26: #{high_pass_forward.5} parent=23 // pred_check_branch
          %216 = sbr.rel (%p214) target = $region28
        $region27: #{high_pass_forward.5} parent=23 // pred_region
          %p217 = scmp.lt.s32.totalorder %s18, 1
          %s218 = scalar_select %p217, %s18, 1
          %p219 = scmp.lt.s32.totalorder %s19, 3
          %s220 = scalar_select %p219, %s19, 3
          %s221 = smul.addr %s218, 4
          %s222 = sadd.s32 %s220, %s221
          %s223 = smul.addr %s222, 4
          %s224 = scalar_lea.vmem %s0, %s223
        $region28: #{high_pass_forward.5} parent=23 // pred_fallthru
          _
        // Predicated region
        $region29: #{high_pass_forward.5} parent=23 // pred_check
          %p225 = pneg %p79
        $region30: #{high_pass_forward.5} parent=23 // pred_check_branch
          %227 = sbr.rel (%p225) target = $region32
        $region31: #{high_pass_forward.5} parent=23 // pred_region
          %s228 = ssub.s32 %s19, 1
          %p229 = scmp.gt.s32.totalorder %s228, 0
          %s230 = scalar_select %p229, %s228, 0
          %p231 = scmp.lt.s32.totalorder %s18, 1
          %s232 = scalar_select %p231, %s18, 1
          %p233 = scmp.lt.s32.totalorder %s230, 3
          %s234 = scalar_select %p233, %s230, 3
          %s235 = smul.addr %s232, 4
          %s236 = sadd.s32 %s234, %s235
          %s237 = smul.addr %s236, 4
          %s238 = scalar_lea.vmem %s1, %s237
          %s239 = ssub.s32 %s19, 1
          %p240 = scmp.gt.s32.totalorder %s239, 0
          %s241 = scalar_select %p240, %s239, 0
        $region32: #{high_pass_forward.5} parent=23 // pred_fallthru
          _
        // Predicated region
        $region33: #{high_pass_forward.5} parent=23 // pred_check
          %p242 = pneg %p113
        $region34: #{high_pass_forward.5} parent=23 // pred_check_branch
          %244 = sbr.rel (%p242) target = $region36
        $region35: #{high_pass_forward.5} parent=23 // pred_region
          %s245 = sadd.s32 %s19, 1
          %p246 = scmp.lt.s32.totalorder %s245, 3
          %s247 = scalar_select %p246, %s245, 3
          %p248 = scmp.lt.s32.totalorder %s18, 1
          %s249 = scalar_select %p248, %s18, 1
          %p250 = scmp.lt.s32.totalorder %s247, 3
          %s251 = scalar_select %p250, %s247, 3
          %s252 = smul.addr %s249, 4
          %s253 = sadd.s32 %s251, %s252
          %s254 = smul.addr %s253, 4
          %s255 = scalar_lea.vmem %s2, %s254
          %s256 = sadd.s32 %s19, 1
          %p257 = scmp.lt.s32.totalorder %s256, 3
          %s258 = scalar_select %p257, %s256, 3
        $region36: #{high_pass_forward.5} parent=23 // pred_fallthru
          _
      $region24: #{high_pass_forward.5} parent=5 // pred_fallthru
        _
      %p259 = scmp.le.s32.totalorder 1, %s11
      %p260 = scmp.lt.s32.totalorder %s11, 9
      %p261 = pnand %p259, %p260
      %p262 = pneg %p261
      // Predicated region
      $region37: #{high_pass_forward.5} parent=5 // pred_check
        _
      $region38: #{high_pass_forward.5} parent=5 // pred_check_branch
        %264 = sbr.rel (%p261) target = $region40
      $region39: #{high_pass_forward.5} parent=5 // pred_region
        %s265 = ssub.s32 %s11, 1
        %p266 = scmp.lt.s32.totalorder %s20, 1
        %s267 = scalar_select %p266, %s20, 1
        %p268 = scmp.lt.s32.totalorder %s21, 3
        %s269 = scalar_select %p268, %s21, 3
        %s270 = smul.addr %s267, 4
        %s271 = sadd.s32 %s269, %s270
        %s272 = smul.addr %s271, 4
        %s273 = scalar_lea.vmem %s0, %s272
        %p274 = pneg %p51
        %p275 = pneg %p48
        %s276 = ssub.s32 %s21, 1
        %p277 = scmp.gt.s32.totalorder %s276, 0
        %s278 = scalar_select %p277, %s276, 0
        %p279 = scmp.lt.s32.totalorder %s20, 1
        %s280 = scalar_select %p279, %s20, 1
        %p281 = scmp.lt.s32.totalorder %s278, 3
        %s282 = scalar_select %p281, %s278, 3
        %s283 = smul.addr %s280, 4
        %s284 = sadd.s32 %s282, %s283
        %s285 = smul.addr %s284, 4
        %s286 = scalar_lea.vmem %s1, %s285
        %p287 = pneg %p85
        %p288 = pneg %p82
        %s289 = sadd.s32 %s21, 1
        %p290 = scmp.lt.s32.totalorder %s289, 3
        %s291 = scalar_select %p290, %s289, 3
        %p292 = scmp.lt.s32.totalorder %s20, 1
        %s293 = scalar_select %p292, %s20, 1
        %p294 = scmp.lt.s32.totalorder %s291, 3
        %s295 = scalar_select %p294, %s291, 3
        %s296 = smul.addr %s293, 4
        %s297 = sadd.s32 %s295, %s296
        %s298 = smul.addr %s297, 4
        %s299 = scalar_lea.vmem %s2, %s298
        %p300 = pneg %p119
        %p301 = pneg %p116
        %p302 = pneg %p140
        %p303 = pneg %p137
        %p304 = pneg %p161
        %p305 = pneg %p158
        %p306 = pneg %p189
        %p307 = pneg %p186
        %s308 = sand.u32 %s176, 1
        %s309 = sand.u32 %s176, 1
        %s310 = smul.addr %s309, 32
        %s311 = scalar_lea.vmem [#allocation2], %s310
        %p312 = scmp.lt.s32.totalorder %s20, 1
        %s313 = scalar_select %p312, %s20, 1
        %p314 = scmp.lt.s32.totalorder %s21, 3
        %s315 = scalar_select %p314, %s21, 3
        %s316 = smul.addr %s313, 4
        %s317 = sadd.s32 %s315, %s316
        %s318 = smul.addr %s317, 4
        %s319 = scalar_lea.vmem %s0, %s318
        %s320 = ssub.s32 %s21, 1
        %p321 = scmp.gt.s32.totalorder %s320, 0
        %s322 = scalar_select %p321, %s320, 0
        %p323 = scmp.lt.s32.totalorder %s20, 1
        %s324 = scalar_select %p323, %s20, 1
        %p325 = scmp.lt.s32.totalorder %s322, 3
        %s326 = scalar_select %p325, %s322, 3
        %s327 = smul.addr %s324, 4
        %s328 = sadd.s32 %s326, %s327
        %s329 = smul.addr %s328, 4
        %s330 = scalar_lea.vmem %s1, %s329
        %s331 = ssub.s32 %s21, 1
        %p332 = scmp.gt.s32.totalorder %s331, 0
        %s333 = scalar_select %p332, %s331, 0
        %s334 = sadd.s32 %s21, 1
        %p335 = scmp.lt.s32.totalorder %s334, 3
        %s336 = scalar_select %p335, %s334, 3
        %p337 = scmp.lt.s32.totalorder %s20, 1
        %s338 = scalar_select %p337, %s20, 1
        %p339 = scmp.lt.s32.totalorder %s336, 3
        %s340 = scalar_select %p339, %s336, 3
        %s341 = smul.addr %s338, 4
        %s342 = sadd.s32 %s340, %s341
        %s343 = smul.addr %s342, 4
        %s344 = scalar_lea.vmem %s2, %s343
        %s345 = sadd.s32 %s21, 1
        %p346 = scmp.lt.s32.totalorder %s345, 3
        %s347 = scalar_select %p346, %s345, 3
        %v348 = vld [vmem:[%s319] sm:$0xf]
        %v349 = vld [vmem:[%s330] sm:$0xf]
        %v350 = vld [vmem:[%s344] sm:$0xf]
        %352 = vrot.lane.b32.xlu0 %v348, 125
        %v353 = vpop.permute.xlu0 %352
        %355 = vrot.lane.b32.xlu0 %v348, 127
        %v356 = vpop.permute.xlu0 %355
        %358 = vrot.lane.b32.xlu0 %v348, 1
        %v359 = vpop.permute.xlu0 %358
        %vm361 = vcmask 7168
        %v362 = vsel %vm361, %v353, %v356
        %vm363 = vcmask 15360
        %v364 = vsel %vm363, %v362, %v359
        %365 = vrot.lane.b32.xlu0 %v348, 2
        %v366 = vpop.permute.xlu0 %365
        %368 = vrot.lane.b32.xlu0 %v348, 4
        %v369 = vpop.permute.xlu0 %368
        %371 = vrot.lane.b32.xlu0 %v348, 6
        %v372 = vpop.permute.xlu0 %371
        %v374 = vsel %vm361, %v366, %v369
        %v375 = vsel %vm363, %v374, %v372
        %p376 = scmp.eq.s32.totalorder %s21, 0
        %s377 = scalar_select %p376, 1, 0
        %v378 = vstv %s377
        %vm379 = vcmp.eq.s32.totalorder %v378, 1
        %381 = vrot.lane.b32.xlu0 %v349, 3
        %v382 = vpop.permute.xlu0 %381
        %v384 = vsel %vm379, %v364, %v382
        %p385 = scmp.eq.s32.totalorder %s21, 3
        %s386 = scalar_select %p385, 1, 0
        %v387 = vstv %s386
        %vm388 = vcmp.eq.s32.totalorder %v387, 1
        %v389 = vsel %vm388, %v375, %v350
        %390 = vrot.lane.b32.xlu0 %v348, 3
        %v391 = vpop.permute.xlu0 %390
        %394 = vrot.lane.b32.xlu0 %v389, 3
        %v395 = vpop.permute.xlu0 %394
        %vm397 = vcmask 23552
        %v398 = vsel %vm397, %v384, %v391
        %v399 = vsel %vm397, %v391, %v395
        %v402 = vrot.slane %v398, 4
        %v403 = vrot.slane %v399, 4
        %404 = vrot.lane.b32.xlu0 %v402, 127
        %v405 = vpop.permute.xlu0 %404
        %406 = vrot.lane.b32.xlu0 %v403, 127
        %v407 = vpop.permute.xlu0 %406
        %vm408 = vcmask 1039360
        %v409 = vsel %vm408, %v405, %v407
        %411 = vrot.lane.b32.xlu0 %v398, 126
        %v412 = vpop.permute.xlu0 %411
        %413 = vrot.lane.b32.xlu0 %v399, 126
        %v414 = vpop.permute.xlu0 %413
        %vm415 = vcmask 1031168
        %v416 = vsel %vm415, %v412, %v414
        %418 = vrot.lane.b32.xlu0 %v402, 125
        %v419 = vpop.permute.xlu0 %418
        %420 = vrot.lane.b32.xlu0 %v403, 125
        %v421 = vpop.permute.xlu0 %420
        %vm422 = vcmask 1022976
        %v423 = vsel %vm422, %v419, %v421
        %425 = vrot.lane.b32.xlu0 %v398, 124
        %v426 = vpop.permute.xlu0 %425
        %427 = vrot.lane.b32.xlu0 %v399, 124
        %v428 = vpop.permute.xlu0 %427
        %vm429 = vcmask 1014784
        %v430 = vsel %vm429, %v426, %v428
        %432 = vrot.lane.b32.xlu0 %v402, 123
        %v433 = vpop.permute.xlu0 %432
        %434 = vrot.lane.b32.xlu0 %v403, 123
        %v435 = vpop.permute.xlu0 %434
        %vm436 = vcmask 1006592
        %v437 = vsel %vm436, %v433, %v435
        %439 = vrot.lane.b32.xlu0 %v398, 122
        %v440 = vpop.permute.xlu0 %439
        %441 = vrot.lane.b32.xlu0 %v399, 122
        %v442 = vpop.permute.xlu0 %441
        %vm443 = vcmask 998400
        %v444 = vsel %vm443, %v440, %v442
        %vm445 = vcmask 1043456
        %v446 = vsel %vm445, %v398, %v409
        %v447 = vsel %vm445, %v416, %v423
        %v448 = vsel %vm445, %v430, %v437
        %v449 = vld [vmem:[%s3] sm:$0xff]
        %v450 = vld [vmem:[%s3 + $0x8] sm:$0xff]
        %v451 = vld [vmem:[%s3 + $0x10] sm:$0xff]
        %v452 = vld [vmem:[%s3 + $0x18] sm:$0xff]
        %v453 = vld [vmem:[%s4] sm:$0xff]
        %v454 = vld [vmem:[%s4 + $0x8] sm:$0xff]
        %v455 = vld [vmem:[%s4 + $0x10] sm:$0xff]
        %v456 = vld [vmem:[%s4 + $0x18] sm:$0xff]
        %458 = vset.pattern.permute.xlu0 0
        %459 = vperm.xlu0 %458, %v453
        %v460 = vpop.permute.xlu0 %459
        %463 = vset.pattern.permute.xlu0 0
        %464 = vperm.xlu0 %463, %v454
        %v465 = vpop.permute.xlu0 %464
        %468 = vset.pattern.permute.xlu0 0
        %469 = vperm.xlu0 %468, %v455
        %v470 = vpop.permute.xlu0 %469
        %473 = vset.pattern.permute.xlu0 0
        %474 = vperm.xlu0 %473, %v456
        %v475 = vpop.permute.xlu0 %474
        %vm477 = vcmask 228352
        %v479 = vsel %vm477, %v449, 0
        %v482 = vsel %vm477, %v450, 0
        %v485 = vsel %vm477, %v451, 0
        %v488 = vsel %vm477, %v452, 0
        %v490 = vsel %vm445, %v444, 0
        %492 = vmatprep.subr.mxu0 0.0
        %493 = vmatpush1.msra.mxu0 0.0
        %494 = vmatprep.subr.mxu0 0.0
        %495 = vmatpush1.msra.mxu0 0.0
        %496 = vmatprep.subr.mxu0 0.0
        %497 = vmatpush1.msra.mxu0 0.0
        %498 = vmatprep.subr.mxu0 0.0
        %499 = vmatpush1.msra.mxu0 0.0
        %500 = vmatprep.subr.mxu0 0.0
        %501 = vmatpush1.msra.mxu0 0.0
        %502 = vmatprep.subr.mxu0 0.0
        %503 = vmatpush1.msra.mxu0 0.0
        %504 = vmatprep.subr.mxu0 0.0
        %505 = vmatpush1.msra.mxu0 0.0
        %506 = vmatprep.subr.mxu0 0.0
        %507 = vmatpush1.msra.mxu0 0.0
        %508 = vmatprep.subr.mxu0 0.0
        %509 = vmatpush1.msra.mxu0 0.0
        %510 = vmatprep.subr.mxu0 0.0
        %511 = vmatpush1.msra.mxu0 0.0
        %512 = vmatprep.subr.mxu0 0.0
        %513 = vmatpush1.msra.mxu0 0.0
        %514 = vmatprep.subr.mxu0 0.0
        %515 = vmatpush1.msra.mxu0 0.0
        %516 = vmatprep.subr.mxu0 0.0
        %517 = vmatpush1.msra.mxu0 %v490
        %518 = vmatprep.subr.mxu0 0.0
        %519 = vmatpush1.msra.mxu0 %v448
        %520 = vmatprep.subr.mxu0 0.0
        %521 = vmatpush1.msra.mxu0 %v447
        %522 = vmatprep.subr.mxu0 0.0
        %523 = vmatpush1.msra.mxu0 %v446
        %524 = vmatprep.subr.mxu0 0.0
        %525 = vmatpush2.msra.mxu0 0.0
        %526 = vmatprep.subr.mxu0 0.0
        %527 = vmatpush2.msra.mxu0 0.0
        %528 = vmatprep.subr.mxu0 0.0
        %529 = vmatpush2.msra.mxu0 0.0
        %530 = vmatprep.subr.mxu0 0.0
        %531 = vmatpush2.msra.mxu0 0.0
        %532 = vmatprep.subr.mxu0 0.0
        %533 = vmatpush2.msra.mxu0 0.0
        %534 = vmatprep.subr.mxu0 0.0
        %535 = vmatpush2.msra.mxu0 0.0
        %536 = vmatprep.subr.mxu0 0.0
        %537 = vmatpush2.msra.mxu0 0.0
        %538 = vmatprep.subr.mxu0 0.0
        %539 = vmatpush2.msra.mxu0 0.0
        %540 = vmatprep.subr.mxu0 0.0
        %541 = vmatpush2.msra.mxu0 0.0
        %542 = vmatprep.subr.mxu0 0.0
        %543 = vmatpush2.msra.mxu0 0.0
        %544 = vmatprep.subr.mxu0 0.0
        %545 = vmatpush2.msra.mxu0 0.0
        %546 = vmatprep.subr.mxu0 0.0
        %547 = vmatpush2.msra.mxu0 0.0
        %548 = vmatprep.subr.mxu0 0.0
        %549 = vmatpush2.msra.mxu0 0.0
        %550 = vmatprep.subr.mxu0 0.0
        %551 = vmatpush2.msra.mxu0 0.0
        %552 = vmatprep.subr.mxu0 0.0
        %553 = vmatpush2.msra.mxu0 0.0
        %554 = vmatprep.subr.mxu0 0.0
        %555 = vmatpush2.msra.mxu0 0.0
        %556 = vmatprep.mubr.f32.mxu0 0.0
        %557 = vmatmul.mubr.f32.gmra.mxu0 %v479
        %v558 = vpop.f32.mrf.mxu0
        %v559 = vadd.f32 %v460, %v558
        %v560 = vpop.f32.mrf.mxu0
        %561 = vmatprep.mubr.f32.mxu0 0.0
        %562 = vmatmul.mubr.f32.gmra.mxu0 %v482
        %v563 = vpop.f32.mrf.mxu0
        %v564 = vadd.f32 %v465, %v563
        %v565 = vpop.f32.mrf.mxu0
        %566 = vmatprep.mubr.f32.mxu0 0.0
        %567 = vmatmul.mubr.f32.gmra.mxu0 %v485
        %v568 = vpop.f32.mrf.mxu0
        %v569 = vadd.f32 %v470, %v568
        %v570 = vpop.f32.mrf.mxu0
        %571 = vmatprep.mubr.f32.mxu0 0.0
        %572 = vmatmul.mubr.f32.gmra.mxu0 %v488
        %v573 = vpop.f32.mrf.mxu0
        %v574 = vadd.f32 %v475, %v573
        %v575 = vpop.f32.mrf.mxu0
        %576 = vdwg.mxu0
        %v577 = vtanh.pop %v559
        %v578 = vtanh.pop %v564
        %v579 = vtanh.pop %v569
        %v580 = vtanh.pop %v574
        %581 = vst [vmem:[%s311] sm:$0xff] %v577
        %582 = vst [vmem:[%s311 + $0x8] sm:$0xff] %v578
        %583 = vst [vmem:[%s311 + $0x10] sm:$0xff] %v579
        %584 = vst [vmem:[%s311 + $0x18] sm:$0xff] %v580
        %s585 = sand.u32 %s176, 1
        %s586 = sand.u32 %s176, 1
        %s587 = smul.addr %s586, 32
        %s588 = scalar_lea.vmem [#allocation2], %s587
        // Predicated region
        $region41: #{high_pass_forward.5} parent=39 // pred_check
          %p589 = pneg %p186
        $region42: #{high_pass_forward.5} parent=39 // pred_check_branch
          %591 = sbr.rel (%p589) target = $region44
        $region43: #{high_pass_forward.5} parent=39 // pred_region
          %s592 = smul.addr %s20, 16
          %s593 = sadd.s32 %s21, %s592
          %s594 = smul.addr %s593, 8
          %s595 = scalar_lea.vmem %s5, %s594
          // Predicated region
          $region45: #{high_pass_forward.5} parent=43 // pred_check
            _
          $region46: #{high_pass_forward.5} parent=43 // pred_check_branch
            %597 = sbr.rel (0) target = $region48
          $region47: #{high_pass_forward.5} parent=43 // pred_region
            // Predicated region
            $region49: #{high_pass_forward.5} parent=47 // pred_check
              _
            $region50: #{high_pass_forward.5} parent=47 // pred_check_branch
              %599 = sbr.rel (0) target = $region52
            $region51: #{high_pass_forward.5} parent=47 // pred_region
              // Predicated region
              $region64: #{high_pass_forward.5} parent=51 // pred_check
                _
              $region65: #{high_pass_forward.5} parent=51 // pred_check_branch
                %621 = sbr.rel (0) target = $region67
              $region66: #{high_pass_forward.5} parent=51 // pred_region
                loop: start=0, step=1, limit=1
                $region68: #{high_pass_forward.5} parent=66 // loop_pre_header
                  _
                $region69: #{high_pass_forward.5} parent=66 // loop_header
                  %s623 = sphi 0, %s627
                  %p624 = scmp.ge.s32.totalorder %s623, 1
                  %s628 = sphi %s588, %s588
                  %s629 = sphi %s595, %s595
                $region70: #{high_pass_forward.5} parent=66 // loop_header_branch
                  %626 = sbr.rel (%p624) target = $region74
                $region71: #{high_pass_forward.5} parent=66 // loop_body
                  %v630 = vld [vmem:[%s628] sm:$0xff]
                  %631 = vst [vmem:[%s629] sm:$0xff] %v630
                  %v632 = vld [vmem:[%s628 + $0x8] sm:$0xff]
                  %633 = vst [vmem:[%s629 + $0x20] sm:$0xff] %v632
                  %v634 = vld [vmem:[%s628 + $0x10] sm:$0xff]
                  %635 = vst [vmem:[%s629 + $0x40] sm:$0xff] %v634
                  %v636 = vld [vmem:[%s628 + $0x18] sm:$0xff]
                  %637 = vst [vmem:[%s629 + $0x60] sm:$0xff] %v636
                $region72: #{high_pass_forward.5} parent=66 // loop_footer
                  %s627 = sadd.s32 1, %s623
                $region73: #{high_pass_forward.5} parent=66 // loop_footer_branch
                  %622 = sbr.rel target = $region69
                $region74: #{high_pass_forward.5} parent=66 // loop_exit
                  _
              $region67: #{high_pass_forward.5} parent=51 // pred_fallthru
                _
              // Predicated region
              $region75: #{high_pass_forward.5} parent=51 // pred_check
                _
              $region76: #{high_pass_forward.5} parent=51 // pred_check_branch
                %639 = sbr.rel target = $region78
              $region77: #{high_pass_forward.5} parent=51 // pred_region
                _
              $region78: #{high_pass_forward.5} parent=51 // pred_fallthru
                _
            $region52: #{high_pass_forward.5} parent=47 // pred_fallthru
              _
            // Predicated region
            $region53: #{high_pass_forward.5} parent=47 // pred_check
              _
            $region54: #{high_pass_forward.5} parent=47 // pred_check_branch
              %601 = sbr.rel target = $region56
            $region55: #{high_pass_forward.5} parent=47 // pred_region
              %s603 = ssub.s32 256, 1
              loop: start=0, step=1, limit=1
              $region57: #{high_pass_forward.5} parent=55 // loop_pre_header
                _
              $region58: #{high_pass_forward.5} parent=55 // loop_header
                %s605 = sphi 0, %s609
                %p606 = scmp.ge.s32.totalorder %s605, 1
                %s610 = sphi %s588, %s588
                %s611 = sphi %s595, %s595
              $region59: #{high_pass_forward.5} parent=55 // loop_header_branch
                %608 = sbr.rel (%p606) target = $region63
              $region60: #{high_pass_forward.5} parent=55 // loop_body
                %v612 = vld [vmem:[%s610] sm:%s603]
                %613 = vst [vmem:[%s611] sm:%s603] %v612
                %v614 = vld [vmem:[%s610 + $0x8] sm:%s603]
                %615 = vst [vmem:[%s611 + $0x20] sm:%s603] %v614
                %v616 = vld [vmem:[%s610 + $0x10] sm:%s603]
                %617 = vst [vmem:[%s611 + $0x40] sm:%s603] %v616
                %v618 = vld [vmem:[%s610 + $0x18] sm:%s603]
                %619 = vst [vmem:[%s611 + $0x60] sm:%s603] %v618
              $region61: #{high_pass_forward.5} parent=55 // loop_footer
                %s609 = sadd.s32 1, %s605
              $region62: #{high_pass_forward.5} parent=55 // loop_footer_branch
                %604 = sbr.rel target = $region58
              $region63: #{high_pass_forward.5} parent=55 // loop_exit
                _
            $region56: #{high_pass_forward.5} parent=47 // pred_fallthru
              _
          $region48: #{high_pass_forward.5} parent=43 // pred_fallthru
            _
          %640 = vnop
        $region44: #{high_pass_forward.5} parent=39 // pred_fallthru
          _
      $region40: #{high_pass_forward.5} parent=5 // pred_fallthru
        _
      %p641 = scmp.le.s32.totalorder 2, %s11
      // Predicated region
      $region79: #{high_pass_forward.5} parent=5 // pred_check
        %p642 = pneg %p641
      $region80: #{high_pass_forward.5} parent=5 // pred_check_branch
        %644 = sbr.rel (%p642) target = $region82
      $region81: #{high_pass_forward.5} parent=5 // pred_region
        %s645 = ssub.s32 %s11, 2
        // Predicated region
        $region83: #{high_pass_forward.5} parent=81 // pred_check
          %p646 = pneg %p192
        $region84: #{high_pass_forward.5} parent=81 // pred_check_branch
          %648 = sbr.rel (%p646) target = $region86
        $region85: #{high_pass_forward.5} parent=81 // pred_region
          %s649 = sand.u32 %s177, 1
          %s650 = sand.u32 %s177, 1
          %s651 = smul.addr %s650, 32
          %s652 = scalar_lea.vmem [#allocation2], %s651
        $region86: #{high_pass_forward.5} parent=81 // pred_fallthru
          _
      $region82: #{high_pass_forward.5} parent=5 // pred_fallthru
        _
    $region6: #{high_pass_forward.5} parent=1 // loop_footer
      %s15 = sadd.s32 1, %s11
    $region7: #{high_pass_forward.5} parent=1 // loop_footer_branch
      %10 = sbr.rel target = $region3
    $region8: #{high_pass_forward.5} parent=1 // loop_exit
      _

// kernel: high_pass_forward.7
$region0: #{high_pass_forward.7}
  #allocation0 [shape = 'u32[]', space=smem, size = 0x4, offset = 0x4, fixed_abs, tag = 'smem constant byte address 0x4 - core index']
  #allocation1 [shape = 'u32[144,128]{1,0:T(1,128)}', space=vmem, size = 0x12000, scoped, tag = 'internal scratch']
  %s0 = inlined_call_operand.vmem [shape: f32[2,32,512], index: 0, kind: input, shape index: {}, may-alias: {0,1,2}]
  %s1 = inlined_call_operand.vmem [shape: f32[2,32,512], index: 1, kind: input, shape index: {}, may-alias: {0,1,2}]
  %s2 = inlined_call_operand.vmem [shape: f32[2,32,512], index: 2, kind: input, shape index: {}, may-alias: {0,1,2}]
  %s3 = inlined_call_operand.vmem [shape: f32[32,96], index: 3, kind: input, shape index: {}]
  %s4 = inlined_call_operand.vmem [shape: f32[32,1], index: 4, kind: input, shape index: {}]
  %s5 = inlined_call_operand.vmem [shape: f32[32,32], index: 5, kind: input, shape index: {}]
  %s6 = inlined_call_operand.vmem [shape: f32[32,1], index: 6, kind: input, shape index: {}]
  %s7 = inlined_call_operand.vmem [shape: f32[32,32], index: 7, kind: input, shape index: {}]
  %s8 = inlined_call_operand.vmem [shape: f32[32,1], index: 8, kind: input, shape index: {}]
  %s9 = inlined_call_operand.vmem [shape: f32[2,32,512], index: 9, kind: output, shape index: {}]
  %s10 = sld [smem:[#allocation0]]
  $region217: #{high_pass_forward.7} parent=0
    _
  %s12 = ssub.s32 1, %s10
  %s13 = scalar_select 0, %s12, %s10
  $region1: #{high_pass_forward.7} parent=0
    #allocation2 [shape = 'u8[32768]{0}', space=vmem, size = 0x8000, scoped, tag = 'input window, operand 0']
    #allocation3 [shape = 'u8[32768]{0}', space=vmem, size = 0x8000, scoped, tag = 'input window, operand 1']
    #allocation4 [shape = 'u8[32768]{0}', space=vmem, size = 0x8000, scoped, tag = 'input window, operand 2']
    #allocation5 [shape = 'u8[32768]{0}', space=vmem, size = 0x8000, scoped, tag = 'output window, operand 0']
    loop: start=0, step=1, limit=10
    $region2: #{high_pass_forward.7} parent=1 // loop_pre_header
      _
    $region3: #{high_pass_forward.7} parent=1 // loop_header
      %s15 = sphi 0, %s19
      %p16 = scmp.ge.s32.totalorder %s15, 10
      %s22 = sphi 0, %s34
      %s23 = sphi 0, %s30
      %s24 = sphi 0, %s22
      %s25 = sphi 0, %s23
      %s26 = sphi 0, %s24
      %s27 = sphi 0, %s25
      %s39 = sphi 0, %s41
      %s42 = sphi 0, %s39
      %s43 = sphi 0, %s42
      %s59 = sphi 0, %s43
      %s73 = sphi 0, %s75
      %s76 = sphi 0, %s73
      %s77 = sphi 0, %s76
      %s93 = sphi 0, %s77
      %s107 = sphi 0, %s109
      %s110 = sphi 0, %s107
      %s111 = sphi 0, %s110
      %s127 = sphi 0, %s111
      %s131 = sphi 0, %s131
      %s133 = sphi 0, %s131
      %s134 = sphi 0, %s133
      %s148 = sphi 0, %s134
      %s152 = sphi 0, %s152
      %s154 = sphi 0, %s152
      %s155 = sphi 0, %s154
      %s169 = sphi 0, %s155
      %s173 = sphi 0, %s173
      %s175 = sphi 0, %s173
      %s176 = sphi 0, %s175
      %s190 = sphi 0, %s176
      %s194 = sphi 0, %s194
      %s196 = sphi 0, %s194
      %s197 = sphi 0, %s196
      %s211 = sphi 0, %s197
      %s215 = sphi 0, %s215
      %s217 = sphi 0, %s215
      %s218 = sphi 0, %s217
      %s232 = sphi 0, %s218
      %s236 = sphi 0, %s236
      %s238 = sphi 0, %s236
      %s239 = sphi 0, %s238
      %s253 = sphi 0, %s239
      %s261 = sphi 0, %s263
      %s264 = sphi 0, %s261
      %s265 = sphi 0, %s264
      %s281 = sphi 0, %s265
    $region4: #{high_pass_forward.7} parent=1 // loop_header_branch
      %18 = sbr.rel (%p16) target = $region8
    $region5: #{high_pass_forward.7} parent=1 // loop_body
      %s20 = ssub.s32 %s15, 1
      %s21 = ssub.s32 %s15, 2
      %s28 = sadd.s32 1, %s23
      %p29 = scmp.ge.s32.totalorder %s28, 4
      %s30 = scalar_select %p29, 0, %s28
      %s31 = sadd.s32 1, %s22
      %s32 = scalar_select %p29, %s31, %s22
      %p33 = scmp.ge.s32.totalorder %s32, 2
      %s34 = scalar_select %p33, 0, %s32
      %s35 = ssub.s32 %s22, %s34
      %s36 = ssub.s32 %s23, %s30
      %s37 = sor.u32 %s35, %s36
      %p38 = scmp.eq.s32.totalorder %s37, 0
      %s40 = sadd.s32 %s39, 1
      %s41 = scalar_select %p38, %s39, %s40
      %p44 = pneg %p38
      %p45 = scmp.eq.s32.totalorder %s15, 7
      %p46 = por %p44, %p45
      %p47 = scmp.ne.s32.totalorder %s39, %s42
      %p48 = scmp.eq.s32.totalorder %s15, 0
      %p49 = por %p47, %p48
      %p50 = scmp.ne.s32.totalorder %s39, %s42
      %p51 = scmp.eq.s32.totalorder %s20, 7
      %p52 = por %p50, %p51
      %p53 = scmp.ne.s32.totalorder %s42, %s43
      %p54 = scmp.eq.s32.totalorder %s20, 0
      %p55 = por %p53, %p54
      %p56 = scmp.ne.s32.totalorder %s42, %s43
      %p57 = scmp.eq.s32.totalorder %s21, 7
      %p58 = por %p56, %p57
      %p60 = scmp.ne.s32.totalorder %s43, %s59
      %p61 = scmp.eq.s32.totalorder %s21, 0
      %p62 = por %p60, %p61
      %s63 = ssub.s32 %s23, 1
      %p64 = scmp.gt.s32.totalorder %s63, 0
      %s65 = scalar_select %p64, %s63, 0
      %s66 = ssub.s32 %s30, 1
      %p67 = scmp.gt.s32.totalorder %s66, 0
      %s68 = scalar_select %p67, %s66, 0
      %s69 = ssub.s32 %s22, %s34
      %s70 = ssub.s32 %s65, %s68
      %s71 = sor.u32 %s69, %s70
      %p72 = scmp.eq.s32.totalorder %s71, 0
      %s74 = sadd.s32 %s73, 1
      %s75 = scalar_select %p72, %s73, %s74
      %p78 = pneg %p72
      %p79 = scmp.eq.s32.totalorder %s15, 7
      %p80 = por %p78, %p79
      %p81 = scmp.ne.s32.totalorder %s73, %s76
      %p82 = scmp.eq.s32.totalorder %s15, 0
      %p83 = por %p81, %p82
      %p84 = scmp.ne.s32.totalorder %s73, %s76
      %p85 = scmp.eq.s32.totalorder %s20, 7
      %p86 = por %p84, %p85
      %p87 = scmp.ne.s32.totalorder %s76, %s77
      %p88 = scmp.eq.s32.totalorder %s20, 0
      %p89 = por %p87, %p88
      %p90 = scmp.ne.s32.totalorder %s76, %s77
      %p91 = scmp.eq.s32.totalorder %s21, 7
      %p92 = por %p90, %p91
      %p94 = scmp.ne.s32.totalorder %s77, %s93
      %p95 = scmp.eq.s32.totalorder %s21, 0
      %p96 = por %p94, %p95
      %s97 = sadd.s32 %s23, 1
      %p98 = scmp.lt.s32.totalorder %s97, 3
      %s99 = scalar_select %p98, %s97, 3
      %s100 = sadd.s32 %s30, 1
      %p101 = scmp.lt.s32.totalorder %s100, 3
      %s102 = scalar_select %p101, %s100, 3
      %s103 = ssub.s32 %s22, %s34
      %s104 = ssub.s32 %s99, %s102
      %s105 = sor.u32 %s103, %s104
      %p106 = scmp.eq.s32.totalorder %s105, 0
      %s108 = sadd.s32 %s107, 1
      %s109 = scalar_select %p106, %s107, %s108
      %p112 = pneg %p106
      %p113 = scmp.eq.s32.totalorder %s15, 7
      %p114 = por %p112, %p113
      %p115 = scmp.ne.s32.totalorder %s107, %s110
      %p116 = scmp.eq.s32.totalorder %s15, 0
      %p117 = por %p115, %p116
      %p118 = scmp.ne.s32.totalorder %s107, %s110
      %p119 = scmp.eq.s32.totalorder %s20, 7
      %p120 = por %p118, %p119
      %p121 = scmp.ne.s32.totalorder %s110, %s111
      %p122 = scmp.eq.s32.totalorder %s20, 0
      %p123 = por %p121, %p122
      %p124 = scmp.ne.s32.totalorder %s110, %s111
      %p125 = scmp.eq.s32.totalorder %s21, 7
      %p126 = por %p124, %p125
      %p128 = scmp.ne.s32.totalorder %s111, %s127
      %p129 = scmp.eq.s32.totalorder %s21, 0
      %p130 = por %p128, %p129
      %s132 = sadd.s32 %s131, 1
      %p135 = scmp.eq.s32.totalorder %s15, 7
      %p136 = scmp.ne.s32.totalorder %s131, %s133
      %p137 = scmp.eq.s32.totalorder %s15, 0
      %p138 = por %p136, %p137
      %p139 = scmp.ne.s32.totalorder %s131, %s133
      %p140 = scmp.eq.s32.totalorder %s20, 7
      %p141 = por %p139, %p140
      %p142 = scmp.ne.s32.totalorder %s133, %s134
      %p143 = scmp.eq.s32.totalorder %s20, 0
      %p144 = por %p142, %p143
      %p145 = scmp.ne.s32.totalorder %s133, %s134
      %p146 = scmp.eq.s32.totalorder %s21, 7
      %p147 = por %p145, %p146
      %p149 = scmp.ne.s32.totalorder %s134, %s148
      %p150 = scmp.eq.s32.totalorder %s21, 0
      %p151 = por %p149, %p150
      %s153 = sadd.s32 %s152, 1
      %p156 = scmp.eq.s32.totalorder %s15, 7
      %p157 = scmp.ne.s32.totalorder %s152, %s154
      %p158 = scmp.eq.s32.totalorder %s15, 0
      %p159 = por %p157, %p158
      %p160 = scmp.ne.s32.totalorder %s152, %s154
      %p161 = scmp.eq.s32.totalorder %s20, 7
      %p162 = por %p160, %p161
      %p163 = scmp.ne.s32.totalorder %s154, %s155
      %p164 = scmp.eq.s32.totalorder %s20, 0
      %p165 = por %p163, %p164
      %p166 = scmp.ne.s32.totalorder %s154, %s155
      %p167 = scmp.eq.s32.totalorder %s21, 7
      %p168 = por %p166, %p167
      %p170 = scmp.ne.s32.totalorder %s155, %s169
      %p171 = scmp.eq.s32.totalorder %s21, 0
      %p172 = por %p170, %p171
      %s174 = sadd.s32 %s173, 1
      %p177 = scmp.eq.s32.totalorder %s15, 7
      %p178 = scmp.ne.s32.totalorder %s173, %s175
      %p179 = scmp.eq.s32.totalorder %s15, 0
      %p180 = por %p178, %p179
      %p181 = scmp.ne.s32.totalorder %s173, %s175
      %p182 = scmp.eq.s32.totalorder %s20, 7
      %p183 = por %p181, %p182
      %p184 = scmp.ne.s32.totalorder %s175, %s176
      %p185 = scmp.eq.s32.totalorder %s20, 0
      %p186 = por %p184, %p185
      %p187 = scmp.ne.s32.totalorder %s175, %s176
      %p188 = scmp.eq.s32.totalorder %s21, 7
      %p189 = por %p187, %p188
      %p191 = scmp.ne.s32.totalorder %s176, %s190
      %p192 = scmp.eq.s32.totalorder %s21, 0
      %p193 = por %p191, %p192
      %s195 = sadd.s32 %s194, 1
      %p198 = scmp.eq.s32.totalorder %s15, 7
      %p199 = scmp.ne.s32.totalorder %s194, %s196
      %p200 = scmp.eq.s32.totalorder %s15, 0
      %p201 = por %p199, %p200
      %p202 = scmp.ne.s32.totalorder %s194, %s196
      %p203 = scmp.eq.s32.totalorder %s20, 7
      %p204 = por %p202, %p203
      %p205 = scmp.ne.s32.totalorder %s196, %s197
      %p206 = scmp.eq.s32.totalorder %s20, 0
      %p207 = por %p205, %p206
      %p208 = scmp.ne.s32.totalorder %s196, %s197
      %p209 = scmp.eq.s32.totalorder %s21, 7
      %p210 = por %p208, %p209
      %p212 = scmp.ne.s32.totalorder %s197, %s211
      %p213 = scmp.eq.s32.totalorder %s21, 0
      %p214 = por %p212, %p213
      %s216 = sadd.s32 %s215, 1
      %p219 = scmp.eq.s32.totalorder %s15, 7
      %p220 = scmp.ne.s32.totalorder %s215, %s217
      %p221 = scmp.eq.s32.totalorder %s15, 0
      %p222 = por %p220, %p221
      %p223 = scmp.ne.s32.totalorder %s215, %s217
      %p224 = scmp.eq.s32.totalorder %s20, 7
      %p225 = por %p223, %p224
      %p226 = scmp.ne.s32.totalorder %s217, %s218
      %p227 = scmp.eq.s32.totalorder %s20, 0
      %p228 = por %p226, %p227
      %p229 = scmp.ne.s32.totalorder %s217, %s218
      %p230 = scmp.eq.s32.totalorder %s21, 7
      %p231 = por %p229, %p230
      %p233 = scmp.ne.s32.totalorder %s218, %s232
      %p234 = scmp.eq.s32.totalorder %s21, 0
      %p235 = por %p233, %p234
      %s237 = sadd.s32 %s236, 1
      %p240 = scmp.eq.s32.totalorder %s15, 7
      %p241 = scmp.ne.s32.totalorder %s236, %s238
      %p242 = scmp.eq.s32.totalorder %s15, 0
      %p243 = por %p241, %p242
      %p244 = scmp.ne.s32.totalorder %s236, %s238
      %p245 = scmp.eq.s32.totalorder %s20, 7
      %p246 = por %p244, %p245
      %p247 = scmp.ne.s32.totalorder %s238, %s239
      %p248 = scmp.eq.s32.totalorder %s20, 0
      %p249 = por %p247, %p248
      %p250 = scmp.ne.s32.totalorder %s238, %s239
      %p251 = scmp.eq.s32.totalorder %s21, 7
      %p252 = por %p250, %p251
      %p254 = scmp.ne.s32.totalorder %s239, %s253
      %p255 = scmp.eq.s32.totalorder %s21, 0
      %p256 = por %p254, %p255
      %s257 = ssub.s32 %s22, %s34
      %s258 = ssub.s32 %s23, %s30
      %s259 = sor.u32 %s257, %s258
      %p260 = scmp.eq.s32.totalorder %s259, 0
      %s262 = sadd.s32 %s261, 1
      %s263 = scalar_select %p260, %s261, %s262
      %p266 = pneg %p260
      %p267 = scmp.eq.s32.totalorder %s15, 7
      %p268 = por %p266, %p267
      %p269 = scmp.ne.s32.totalorder %s261, %s264
      %p270 = scmp.eq.s32.totalorder %s15, 0
      %p271 = por %p269, %p270
      %p272 = scmp.ne.s32.totalorder %s261, %s264
      %p273 = scmp.eq.s32.totalorder %s20, 7
      %p274 = por %p272, %p273
      %p275 = scmp.ne.s32.totalorder %s264, %s265
      %p276 = scmp.eq.s32.totalorder %s20, 0
      %p277 = por %p275, %p276
      %p278 = scmp.ne.s32.totalorder %s264, %s265
      %p279 = scmp.eq.s32.totalorder %s21, 7
      %p280 = por %p278, %p279
      %p282 = scmp.ne.s32.totalorder %s265, %s281
      %p283 = scmp.eq.s32.totalorder %s21, 0
      %p284 = por %p282, %p283
      %p285 = scmp.le.s32.totalorder 1, %s15
      %p286 = scmp.lt.s32.totalorder %s15, 9
      %p287 = pnand %p285, %p286
      %p288 = pneg %p287
      // Predicated region
      $region9: #{high_pass_forward.7} parent=5 // pred_check
        _
      $region10: #{high_pass_forward.7} parent=5 // pred_check_branch
        %290 = sbr.rel (%p287) target = $region12
      $region11: #{high_pass_forward.7} parent=5 // pred_region
        %s291 = ssub.s32 %s15, 1
        // Predicated region
        $region13: #{high_pass_forward.7} parent=11 // pred_check
          %p292 = pneg %p144
        $region14: #{high_pass_forward.7} parent=11 // pred_check_branch
          %294 = sbr.rel (%p292) target = $region16
        $region15: #{high_pass_forward.7} parent=11 // pred_region
          _
        $region16: #{high_pass_forward.7} parent=11 // pred_fallthru
          _
        // Predicated region
        $region17: #{high_pass_forward.7} parent=11 // pred_check
          %p295 = pneg %p165
        $region18: #{high_pass_forward.7} parent=11 // pred_check_branch
          %297 = sbr.rel (%p295) target = $region20
        $region19: #{high_pass_forward.7} parent=11 // pred_region
          _
        $region20: #{high_pass_forward.7} parent=11 // pred_fallthru
          _
        // Predicated region
        $region21: #{high_pass_forward.7} parent=11 // pred_check
          %p298 = pneg %p186
        $region22: #{high_pass_forward.7} parent=11 // pred_check_branch
          %300 = sbr.rel (%p298) target = $region24
        $region23: #{high_pass_forward.7} parent=11 // pred_region
          _
        $region24: #{high_pass_forward.7} parent=11 // pred_fallthru
          _
        // Predicated region
        $region25: #{high_pass_forward.7} parent=11 // pred_check
          %p301 = pneg %p207
        $region26: #{high_pass_forward.7} parent=11 // pred_check_branch
          %303 = sbr.rel (%p301) target = $region28
        $region27: #{high_pass_forward.7} parent=11 // pred_region
          _
        $region28: #{high_pass_forward.7} parent=11 // pred_fallthru
          _
        // Predicated region
        $region29: #{high_pass_forward.7} parent=11 // pred_check
          %p304 = pneg %p228
        $region30: #{high_pass_forward.7} parent=11 // pred_check_branch
          %306 = sbr.rel (%p304) target = $region32
        $region31: #{high_pass_forward.7} parent=11 // pred_region
          _
        $region32: #{high_pass_forward.7} parent=11 // pred_fallthru
          _
        // Predicated region
        $region33: #{high_pass_forward.7} parent=11 // pred_check
          %p307 = pneg %p249
        $region34: #{high_pass_forward.7} parent=11 // pred_check_branch
          %309 = sbr.rel (%p307) target = $region36
        $region35: #{high_pass_forward.7} parent=11 // pred_region
          _
        $region36: #{high_pass_forward.7} parent=11 // pred_fallthru
          _
      $region12: #{high_pass_forward.7} parent=5 // pred_fallthru
        _
      %p310 = scmp.lt.s32.totalorder %s15, 8
      // Predicated region
      $region37: #{high_pass_forward.7} parent=5 // pred_check
        %p311 = pneg %p310
      $region38: #{high_pass_forward.7} parent=5 // pred_check_branch
        %313 = sbr.rel (%p311) target = $region40
      $region39: #{high_pass_forward.7} parent=5 // pred_region
        // Predicated region
        $region41: #{high_pass_forward.7} parent=39 // pred_check
          %p314 = pneg %p49
        $region42: #{high_pass_forward.7} parent=39 // pred_check_branch
          %316 = sbr.rel (%p314) target = $region44
        $region43: #{high_pass_forward.7} parent=39 // pred_region
          %s317 = sand.u32 %s39, 1
          %s318 = sand.u32 %s39, 1
          %s319 = smul.addr %s318, 32
          %s320 = scalar_lea.vmem [#allocation2], %s319
          %s321 = smul.addr %s22, 16
          %s322 = sadd.s32 %s23, %s321
          %s323 = smul.addr %s322, 8
          %s324 = scalar_lea.vmem %s0, %s323
          // Predicated region
          $region45: #{high_pass_forward.7} parent=43 // pred_check
            _
          $region46: #{high_pass_forward.7} parent=43 // pred_check_branch
            %326 = sbr.rel (0) target = $region48
          $region47: #{high_pass_forward.7} parent=43 // pred_region
            // Predicated region
            $region49: #{high_pass_forward.7} parent=47 // pred_check
              _
            $region50: #{high_pass_forward.7} parent=47 // pred_check_branch
              %328 = sbr.rel (0) target = $region52
            $region51: #{high_pass_forward.7} parent=47 // pred_region
              // Predicated region
              $region64: #{high_pass_forward.7} parent=51 // pred_check
                _
              $region65: #{high_pass_forward.7} parent=51 // pred_check_branch
                %350 = sbr.rel (0) target = $region67
              $region66: #{high_pass_forward.7} parent=51 // pred_region
                loop: start=0, step=1, limit=1
                $region68: #{high_pass_forward.7} parent=66 // loop_pre_header
                  _
                $region69: #{high_pass_forward.7} parent=66 // loop_header
                  %s352 = sphi 0, %s356
                  %p353 = scmp.ge.s32.totalorder %s352, 1
                  %s357 = sphi %s324, %s324
                  %s358 = sphi %s320, %s320
                $region70: #{high_pass_forward.7} parent=66 // loop_header_branch
                  %355 = sbr.rel (%p353) target = $region74
                $region71: #{high_pass_forward.7} parent=66 // loop_body
                  %v359 = vld [vmem:[%s357] sm:$0xff]
                  %360 = vst [vmem:[%s358] sm:$0xff] %v359
                  %v361 = vld [vmem:[%s357 + $0x20] sm:$0xff]
                  %362 = vst [vmem:[%s358 + $0x8] sm:$0xff] %v361
                  %v363 = vld [vmem:[%s357 + $0x40] sm:$0xff]
                  %364 = vst [vmem:[%s358 + $0x10] sm:$0xff] %v363
                  %v365 = vld [vmem:[%s357 + $0x60] sm:$0xff]
                  %366 = vst [vmem:[%s358 + $0x18] sm:$0xff] %v365
                $region72: #{high_pass_forward.7} parent=66 // loop_footer
                  %s356 = sadd.s32 1, %s352
                $region73: #{high_pass_forward.7} parent=66 // loop_footer_branch
                  %351 = sbr.rel target = $region69
                $region74: #{high_pass_forward.7} parent=66 // loop_exit
                  _
              $region67: #{high_pass_forward.7} parent=51 // pred_fallthru
                _
              // Predicated region
              $region75: #{high_pass_forward.7} parent=51 // pred_check
                _
              $region76: #{high_pass_forward.7} parent=51 // pred_check_branch
                %368 = sbr.rel target = $region78
              $region77: #{high_pass_forward.7} parent=51 // pred_region
                _
              $region78: #{high_pass_forward.7} parent=51 // pred_fallthru
                _
            $region52: #{high_pass_forward.7} parent=47 // pred_fallthru
              _
            // Predicated region
            $region53: #{high_pass_forward.7} parent=47 // pred_check
              _
            $region54: #{high_pass_forward.7} parent=47 // pred_check_branch
              %330 = sbr.rel target = $region56
            $region55: #{high_pass_forward.7} parent=47 // pred_region
              %s332 = ssub.s32 256, 1
              loop: start=0, step=1, limit=1
              $region57: #{high_pass_forward.7} parent=55 // loop_pre_header
                _
              $region58: #{high_pass_forward.7} parent=55 // loop_header
                %s334 = sphi 0, %s338
                %p335 = scmp.ge.s32.totalorder %s334, 1
                %s339 = sphi %s324, %s324
                %s340 = sphi %s320, %s320
              $region59: #{high_pass_forward.7} parent=55 // loop_header_branch
                %337 = sbr.rel (%p335) target = $region63
              $region60: #{high_pass_forward.7} parent=55 // loop_body
                %v341 = vld [vmem:[%s339] sm:%s332]
                %342 = vst [vmem:[%s340] sm:%s332] %v341
                %v343 = vld [vmem:[%s339 + $0x20] sm:%s332]
                %344 = vst [vmem:[%s340 + $0x8] sm:%s332] %v343
                %v345 = vld [vmem:[%s339 + $0x40] sm:%s332]
                %346 = vst [vmem:[%s340 + $0x10] sm:%s332] %v345
                %v347 = vld [vmem:[%s339 + $0x60] sm:%s332]
                %348 = vst [vmem:[%s340 + $0x18] sm:%s332] %v347
              $region61: #{high_pass_forward.7} parent=55 // loop_footer
                %s338 = sadd.s32 1, %s334
              $region62: #{high_pass_forward.7} parent=55 // loop_footer_branch
                %333 = sbr.rel target = $region58
              $region63: #{high_pass_forward.7} parent=55 // loop_exit
                _
            $region56: #{high_pass_forward.7} parent=47 // pred_fallthru
              _
          $region48: #{high_pass_forward.7} parent=43 // pred_fallthru
            _
          %369 = vnop
        $region44: #{high_pass_forward.7} parent=39 // pred_fallthru
          _
        // Predicated region
        $region79: #{high_pass_forward.7} parent=39 // pred_check
          %p370 = pneg %p83
        $region80: #{high_pass_forward.7} parent=39 // pred_check_branch
          %372 = sbr.rel (%p370) target = $region82
        $region81: #{high_pass_forward.7} parent=39 // pred_region
          %s373 = sand.u32 %s73, 1
          %s374 = sand.u32 %s73, 1
          %s375 = smul.addr %s374, 32
          %s376 = scalar_lea.vmem [#allocation3], %s375
          %s377 = ssub.s32 %s23, 1
          %p378 = scmp.gt.s32.totalorder %s377, 0
          %s379 = scalar_select %p378, %s377, 0
          %s380 = smul.addr %s22, 16
          %s381 = sadd.s32 %s379, %s380
          %s382 = smul.addr %s381, 8
          %s383 = scalar_lea.vmem %s1, %s382
          // Predicated region
          $region83: #{high_pass_forward.7} parent=81 // pred_check
            _
          $region84: #{high_pass_forward.7} parent=81 // pred_check_branch
            %385 = sbr.rel (0) target = $region86
          $region85: #{high_pass_forward.7} parent=81 // pred_region
            // Predicated region
            $region87: #{high_pass_forward.7} parent=85 // pred_check
              _
            $region88: #{high_pass_forward.7} parent=85 // pred_check_branch
              %387 = sbr.rel (0) target = $region90
            $region89: #{high_pass_forward.7} parent=85 // pred_region
              // Predicated region
              $region102: #{high_pass_forward.7} parent=89 // pred_check
                _
              $region103: #{high_pass_forward.7} parent=89 // pred_check_branch
                %409 = sbr.rel (0) target = $region105
              $region104: #{high_pass_forward.7} parent=89 // pred_region
                loop: start=0, step=1, limit=1
                $region106: #{high_pass_forward.7} parent=104 // loop_pre_header
                  _
                $region107: #{high_pass_forward.7} parent=104 // loop_header
                  %s411 = sphi 0, %s415
                  %p412 = scmp.ge.s32.totalorder %s411, 1
                  %s416 = sphi %s383, %s383
                  %s417 = sphi %s376, %s376
                $region108: #{high_pass_forward.7} parent=104 // loop_header_branch
                  %414 = sbr.rel (%p412) target = $region112
                $region109: #{high_pass_forward.7} parent=104 // loop_body
                  %v418 = vld [vmem:[%s416] sm:$0xff]
                  %419 = vst [vmem:[%s417] sm:$0xff] %v418
                  %v420 = vld [vmem:[%s416 + $0x20] sm:$0xff]
                  %421 = vst [vmem:[%s417 + $0x8] sm:$0xff] %v420
                  %v422 = vld [vmem:[%s416 + $0x40] sm:$0xff]
                  %423 = vst [vmem:[%s417 + $0x10] sm:$0xff] %v422
                  %v424 = vld [vmem:[%s416 + $0x60] sm:$0xff]
                  %425 = vst [vmem:[%s417 + $0x18] sm:$0xff] %v424
                $region110: #{high_pass_forward.7} parent=104 // loop_footer
                  %s415 = sadd.s32 1, %s411
                $region111: #{high_pass_forward.7} parent=104 // loop_footer_branch
                  %410 = sbr.rel target = $region107
                $region112: #{high_pass_forward.7} parent=104 // loop_exit
                  _
              $region105: #{high_pass_forward.7} parent=89 // pred_fallthru
                _
              // Predicated region
              $region113: #{high_pass_forward.7} parent=89 // pred_check
                _
              $region114: #{high_pass_forward.7} parent=89 // pred_check_branch
                %427 = sbr.rel target = $region116
              $region115: #{high_pass_forward.7} parent=89 // pred_region
                _
              $region116: #{high_pass_forward.7} parent=89 // pred_fallthru
                _
            $region90: #{high_pass_forward.7} parent=85 // pred_fallthru
              _
            // Predicated region
            $region91: #{high_pass_forward.7} parent=85 // pred_check
              _
            $region92: #{high_pass_forward.7} parent=85 // pred_check_branch
              %389 = sbr.rel target = $region94
            $region93: #{high_pass_forward.7} parent=85 // pred_region
              %s391 = ssub.s32 256, 1
              loop: start=0, step=1, limit=1
              $region95: #{high_pass_forward.7} parent=93 // loop_pre_header
                _
              $region96: #{high_pass_forward.7} parent=93 // loop_header
                %s393 = sphi 0, %s397
                %p394 = scmp.ge.s32.totalorder %s393, 1
                %s398 = sphi %s383, %s383
                %s399 = sphi %s376, %s376
              $region97: #{high_pass_forward.7} parent=93 // loop_header_branch
                %396 = sbr.rel (%p394) target = $region101
              $region98: #{high_pass_forward.7} parent=93 // loop_body
                %v400 = vld [vmem:[%s398] sm:%s391]
                %401 = vst [vmem:[%s399] sm:%s391] %v400
                %v402 = vld [vmem:[%s398 + $0x20] sm:%s391]
                %403 = vst [vmem:[%s399 + $0x8] sm:%s391] %v402
                %v404 = vld [vmem:[%s398 + $0x40] sm:%s391]
                %405 = vst [vmem:[%s399 + $0x10] sm:%s391] %v404
                %v406 = vld [vmem:[%s398 + $0x60] sm:%s391]
                %407 = vst [vmem:[%s399 + $0x18] sm:%s391] %v406
              $region99: #{high_pass_forward.7} parent=93 // loop_footer
                %s397 = sadd.s32 1, %s393
              $region100: #{high_pass_forward.7} parent=93 // loop_footer_branch
                %392 = sbr.rel target = $region96
              $region101: #{high_pass_forward.7} parent=93 // loop_exit
                _
            $region94: #{high_pass_forward.7} parent=85 // pred_fallthru
              _
          $region86: #{high_pass_forward.7} parent=81 // pred_fallthru
            _
          %428 = vnop
        $region82: #{high_pass_forward.7} parent=39 // pred_fallthru
          _
        // Predicated region
        $region117: #{high_pass_forward.7} parent=39 // pred_check
          %p429 = pneg %p117
        $region118: #{high_pass_forward.7} parent=39 // pred_check_branch
          %431 = sbr.rel (%p429) target = $region120
        $region119: #{high_pass_forward.7} parent=39 // pred_region
          %s432 = sand.u32 %s107, 1
          %s433 = sand.u32 %s107, 1
          %s434 = smul.addr %s433, 32
          %s435 = scalar_lea.vmem [#allocation4], %s434
          %s436 = sadd.s32 %s23, 1
          %p437 = scmp.lt.s32.totalorder %s436, 3
          %s438 = scalar_select %p437, %s436, 3
          %s439 = smul.addr %s22, 16
          %s440 = sadd.s32 %s438, %s439
          %s441 = smul.addr %s440, 8
          %s442 = scalar_lea.vmem %s2, %s441
          // Predicated region
          $region121: #{high_pass_forward.7} parent=119 // pred_check
            _
          $region122: #{high_pass_forward.7} parent=119 // pred_check_branch
            %444 = sbr.rel (0) target = $region124
          $region123: #{high_pass_forward.7} parent=119 // pred_region
            // Predicated region
            $region125: #{high_pass_forward.7} parent=123 // pred_check
              _
            $region126: #{high_pass_forward.7} parent=123 // pred_check_branch
              %446 = sbr.rel (0) target = $region128
            $region127: #{high_pass_forward.7} parent=123 // pred_region
              // Predicated region
              $region140: #{high_pass_forward.7} parent=127 // pred_check
                _
              $region141: #{high_pass_forward.7} parent=127 // pred_check_branch
                %468 = sbr.rel (0) target = $region143
              $region142: #{high_pass_forward.7} parent=127 // pred_region
                loop: start=0, step=1, limit=1
                $region144: #{high_pass_forward.7} parent=142 // loop_pre_header
                  _
                $region145: #{high_pass_forward.7} parent=142 // loop_header
                  %s470 = sphi 0, %s474
                  %p471 = scmp.ge.s32.totalorder %s470, 1
                  %s475 = sphi %s442, %s442
                  %s476 = sphi %s435, %s435
                $region146: #{high_pass_forward.7} parent=142 // loop_header_branch
                  %473 = sbr.rel (%p471) target = $region150
                $region147: #{high_pass_forward.7} parent=142 // loop_body
                  %v477 = vld [vmem:[%s475] sm:$0xff]
                  %478 = vst [vmem:[%s476] sm:$0xff] %v477
                  %v479 = vld [vmem:[%s475 + $0x20] sm:$0xff]
                  %480 = vst [vmem:[%s476 + $0x8] sm:$0xff] %v479
                  %v481 = vld [vmem:[%s475 + $0x40] sm:$0xff]
                  %482 = vst [vmem:[%s476 + $0x10] sm:$0xff] %v481
                  %v483 = vld [vmem:[%s475 + $0x60] sm:$0xff]
                  %484 = vst [vmem:[%s476 + $0x18] sm:$0xff] %v483
                $region148: #{high_pass_forward.7} parent=142 // loop_footer
                  %s474 = sadd.s32 1, %s470
                $region149: #{high_pass_forward.7} parent=142 // loop_footer_branch
                  %469 = sbr.rel target = $region145
                $region150: #{high_pass_forward.7} parent=142 // loop_exit
                  _
              $region143: #{high_pass_forward.7} parent=127 // pred_fallthru
                _
              // Predicated region
              $region151: #{high_pass_forward.7} parent=127 // pred_check
                _
              $region152: #{high_pass_forward.7} parent=127 // pred_check_branch
                %486 = sbr.rel target = $region154
              $region153: #{high_pass_forward.7} parent=127 // pred_region
                _
              $region154: #{high_pass_forward.7} parent=127 // pred_fallthru
                _
            $region128: #{high_pass_forward.7} parent=123 // pred_fallthru
              _
            // Predicated region
            $region129: #{high_pass_forward.7} parent=123 // pred_check
              _
            $region130: #{high_pass_forward.7} parent=123 // pred_check_branch
              %448 = sbr.rel target = $region132
            $region131: #{high_pass_forward.7} parent=123 // pred_region
              %s450 = ssub.s32 256, 1
              loop: start=0, step=1, limit=1
              $region133: #{high_pass_forward.7} parent=131 // loop_pre_header
                _
              $region134: #{high_pass_forward.7} parent=131 // loop_header
                %s452 = sphi 0, %s456
                %p453 = scmp.ge.s32.totalorder %s452, 1
                %s457 = sphi %s442, %s442
                %s458 = sphi %s435, %s435
              $region135: #{high_pass_forward.7} parent=131 // loop_header_branch
                %455 = sbr.rel (%p453) target = $region139
              $region136: #{high_pass_forward.7} parent=131 // loop_body
                %v459 = vld [vmem:[%s457] sm:%s450]
                %460 = vst [vmem:[%s458] sm:%s450] %v459
                %v461 = vld [vmem:[%s457 + $0x20] sm:%s450]
                %462 = vst [vmem:[%s458 + $0x8] sm:%s450] %v461
                %v463 = vld [vmem:[%s457 + $0x40] sm:%s450]
                %464 = vst [vmem:[%s458 + $0x10] sm:%s450] %v463
                %v465 = vld [vmem:[%s457 + $0x60] sm:%s450]
                %466 = vst [vmem:[%s458 + $0x18] sm:%s450] %v465
              $region137: #{high_pass_forward.7} parent=131 // loop_footer
                %s456 = sadd.s32 1, %s452
              $region138: #{high_pass_forward.7} parent=131 // loop_footer_branch
                %451 = sbr.rel target = $region134
              $region139: #{high_pass_forward.7} parent=131 // loop_exit
                _
            $region132: #{high_pass_forward.7} parent=123 // pred_fallthru
              _
          $region124: #{high_pass_forward.7} parent=119 // pred_fallthru
            _
          %487 = vnop
        $region120: #{high_pass_forward.7} parent=39 // pred_fallthru
          _
      $region40: #{high_pass_forward.7} parent=5 // pred_fallthru
        _
      %p488 = scmp.le.s32.totalorder 1, %s15
      %p489 = scmp.lt.s32.totalorder %s15, 9
      %p490 = pnand %p488, %p489
      %p491 = pneg %p490
      // Predicated region
      $region155: #{high_pass_forward.7} parent=5 // pred_check
        _
      $region156: #{high_pass_forward.7} parent=5 // pred_check_branch
        %493 = sbr.rel (%p490) target = $region158
      $region157: #{high_pass_forward.7} parent=5 // pred_region
        %s494 = ssub.s32 %s15, 1
        %s495 = sand.u32 %s42, 1
        %s496 = sand.u32 %s42, 1
        %s497 = smul.addr %s496, 32
        %s498 = scalar_lea.vmem [#allocation2], %s497
        // Predicated region
        $region159: #{high_pass_forward.7} parent=157 // pred_check
          %p499 = pneg %p55
        $region160: #{high_pass_forward.7} parent=157 // pred_check_branch
          %501 = sbr.rel (%p499) target = $region162
        $region161: #{high_pass_forward.7} parent=157 // pred_region
          _
        $region162: #{high_pass_forward.7} parent=157 // pred_fallthru
          _
        %s502 = sand.u32 %s76, 1
        %s503 = sand.u32 %s76, 1
        %s504 = smul.addr %s503, 32
        %s505 = scalar_lea.vmem [#allocation3], %s504
        // Predicated region
        $region163: #{high_pass_forward.7} parent=157 // pred_check
          %p506 = pneg %p89
        $region164: #{high_pass_forward.7} parent=157 // pred_check_branch
          %508 = sbr.rel (%p506) target = $region166
        $region165: #{high_pass_forward.7} parent=157 // pred_region
          _
        $region166: #{high_pass_forward.7} parent=157 // pred_fallthru
          _
        %s509 = sand.u32 %s110, 1
        %s510 = sand.u32 %s110, 1
        %s511 = smul.addr %s510, 32
        %s512 = scalar_lea.vmem [#allocation4], %s511
        // Predicated region
        $region167: #{high_pass_forward.7} parent=157 // pred_check
          %p513 = pneg %p123
        $region168: #{high_pass_forward.7} parent=157 // pred_check_branch
          %515 = sbr.rel (%p513) target = $region170
        $region169: #{high_pass_forward.7} parent=157 // pred_region
          _
        $region170: #{high_pass_forward.7} parent=157 // pred_fallthru
          _
        %s516 = sand.u32 %s42, 1
        %s517 = sand.u32 %s42, 1
        %s518 = smul.addr %s517, 32
        %s519 = scalar_lea.vmem [#allocation2], %s518
        %p520 = pneg %p55
        %p521 = pneg %p52
        %s522 = sand.u32 %s76, 1
        %s523 = sand.u32 %s76, 1
        %s524 = smul.addr %s523, 32
        %s525 = scalar_lea.vmem [#allocation3], %s524
        %p526 = pneg %p89
        %p527 = pneg %p86
        %s528 = sand.u32 %s110, 1
        %s529 = sand.u32 %s110, 1
        %s530 = smul.addr %s529, 32
        %s531 = scalar_lea.vmem [#allocation4], %s530
        %p532 = pneg %p123
        %p533 = pneg %p120
        %p534 = pneg %p144
        %p535 = pneg %p141
        %p536 = pneg %p165
        %p537 = pneg %p162
        %p538 = pneg %p186
        %p539 = pneg %p183
        %p540 = pneg %p207
        %p541 = pneg %p204
        %p542 = pneg %p228
        %p543 = pneg %p225
        %p544 = pneg %p249
        %p545 = pneg %p246
        %p546 = pneg %p277
        %p547 = pneg %p274
        %s548 = sand.u32 %s264, 1
        %s549 = sand.u32 %s264, 1
        %s550 = smul.addr %s549, 32
        %s551 = scalar_lea.vmem [#allocation5], %s550
        %s552 = ssub.s32 %s25, 1
        %p553 = scmp.gt.s32.totalorder %s552, 0
        %s554 = scalar_select %p553, %s552, 0
        %s555 = sadd.s32 %s25, 1
        %p556 = scmp.lt.s32.totalorder %s555, 3
        %s557 = scalar_select %p556, %s555, 3
        %v558 = vld [vmem:[%s498] sm:$0xff]
        %v559 = vld [vmem:[%s498 + $0x8] sm:$0xff]
        %v560 = vld [vmem:[%s498 + $0x10] sm:$0xff]
        %v561 = vld [vmem:[%s498 + $0x18] sm:$0xff]
        %v562 = vld [vmem:[%s505] sm:$0xff]
        %v563 = vld [vmem:[%s505 + $0x8] sm:$0xff]
        %v564 = vld [vmem:[%s505 + $0x10] sm:$0xff]
        %v565 = vld [vmem:[%s505 + $0x18] sm:$0xff]
        %v566 = vld [vmem:[%s512] sm:$0xff]
        %v567 = vld [vmem:[%s512 + $0x8] sm:$0xff]
        %v568 = vld [vmem:[%s512 + $0x10] sm:$0xff]
        %v569 = vld [vmem:[%s512 + $0x18] sm:$0xff]
        %p570 = scmp.eq.s32.totalorder %s25, 0
        %s571 = scalar_select %p570, 1, 0
        %v572 = vstv %s571
        %vm573 = vcmp.eq.s32.totalorder %v572, 1
        %578 = vrot.lane.b32.xlu0 %v562, 2
        %v579 = vpop.permute.xlu0 %578
        %580 = vrot.lane.b32.xlu0 %v563, 2
        %v581 = vpop.permute.xlu0 %580
        %582 = vrot.lane.b32.xlu0 %v564, 2
        %v583 = vpop.permute.xlu0 %582
        %584 = vrot.lane.b32.xlu0 %v565, 2
        %v585 = vpop.permute.xlu0 %584
        %v590 = vsel %vm573, %v558, %v579
        %v591 = vsel %vm573, %v559, %v581
        %v592 = vsel %vm573, %v560, %v583
        %v593 = vsel %vm573, %v561, %v585
        %p594 = scmp.eq.s32.totalorder %s25, 3
        %s595 = scalar_select %p594, 1, 0
        %v596 = vstv %s595
        %vm597 = vcmp.eq.s32.totalorder %v596, 1
        %602 = vrot.lane.b32.xlu0 %v566, 126
        %v603 = vpop.permute.xlu0 %602
        %604 = vrot.lane.b32.xlu0 %v567, 126
        %v605 = vpop.permute.xlu0 %604
        %606 = vrot.lane.b32.xlu0 %v568, 126
        %v607 = vpop.permute.xlu0 %606
        %608 = vrot.lane.b32.xlu0 %v569, 126
        %v609 = vpop.permute.xlu0 %608
        %v614 = vsel %vm597, %v558, %v603
        %v615 = vsel %vm597, %v559, %v605
        %v616 = vsel %vm597, %v560, %v607
        %v617 = vsel %vm597, %v561, %v609
        %622 = vrot.lane.b32.xlu0 %v590, 127
        %v623 = vpop.permute.xlu0 %622
        %624 = vrot.lane.b32.xlu0 %v591, 127
        %v625 = vpop.permute.xlu0 %624
        %626 = vrot.lane.b32.xlu0 %v592, 127
        %v627 = vpop.permute.xlu0 %626
        %628 = vrot.lane.b32.xlu0 %v593, 127
        %v629 = vpop.permute.xlu0 %628
        %638 = vrot.lane.b32.xlu0 %v558, 1
        %v639 = vpop.permute.xlu0 %638
        %640 = vrot.lane.b32.xlu0 %v559, 1
        %v641 = vpop.permute.xlu0 %640
        %642 = vrot.lane.b32.xlu0 %v560, 1
        %v643 = vpop.permute.xlu0 %642
        %644 = vrot.lane.b32.xlu0 %v561, 1
        %v645 = vpop.permute.xlu0 %644
        %654 = vrot.lane.b32.xlu0 %v614, 3
        %v655 = vpop.permute.xlu0 %654
        %656 = vrot.lane.b32.xlu0 %v615, 3
        %v657 = vpop.permute.xlu0 %656
        %658 = vrot.lane.b32.xlu0 %v616, 3
        %v659 = vpop.permute.xlu0 %658
        %660 = vrot.lane.b32.xlu0 %v617, 3
        %v661 = vpop.permute.xlu0 %660
        %vm666 = vcmask 7168
        %v667 = vsel %vm666, %v623, %v639
        %v668 = vsel %vm666, %v625, %v641
        %v669 = vsel %vm666, %v627, %v643
        %v670 = vsel %vm666, %v629, %v645
        %v671 = vsel %vm666, %v639, %v655
        %v672 = vsel %vm666, %v641, %v657
        %v673 = vsel %vm666, %v643, %v659
        %v674 = vsel %vm666, %v645, %v661
        %vm675 = vcmp.ge.f32.partialorder %v667, 0.0
        %vm676 = vcmp.ge.f32.partialorder %v671, 0.0
        %vm677 = vcmp.ge.f32.partialorder %v668, 0.0
        %vm678 = vcmp.ge.f32.partialorder %v672, 0.0
        %vm679 = vcmp.ge.f32.partialorder %v669, 0.0
        %vm680 = vcmp.ge.f32.partialorder %v673, 0.0
        %vm681 = vcmp.ge.f32.partialorder %v670, 0.0
        %vm682 = vcmp.ge.f32.partialorder %v674, 0.0
        %v683 = vmul.f32 %v667, 0.2
        %v684 = vmul.f32 %v671, 0.2
        %v685 = vmul.f32 %v668, 0.2
        %v686 = vmul.f32 %v672, 0.2
        %v687 = vmul.f32 %v669, 0.2
        %v688 = vmul.f32 %v673, 0.2
        %v689 = vmul.f32 %v670, 0.2
        %v690 = vmul.f32 %v674, 0.2
        %v691 = vsel %vm675, %v667, %v683
        %v692 = vsel %vm676, %v671, %v684
        %v693 = vsel %vm677, %v668, %v685
        %v694 = vsel %vm678, %v672, %v686
        %v695 = vsel %vm679, %v669, %v687
        %v696 = vsel %vm680, %v673, %v688
        %v697 = vsel %vm681, %v670, %v689
        %v698 = vsel %vm682, %v674, %v690
        %707 = vrot.lane.b32.xlu0 %v691, 127
        %v708 = vpop.permute.xlu0 %707
        %709 = vrot.lane.b32.xlu0 %v692, 127
        %v710 = vpop.permute.xlu0 %709
        %711 = vrot.lane.b32.xlu0 %v693, 127
        %v712 = vpop.permute.xlu0 %711
        %713 = vrot.lane.b32.xlu0 %v694, 127
        %v714 = vpop.permute.xlu0 %713
        %715 = vrot.lane.b32.xlu0 %v695, 127
        %v716 = vpop.permute.xlu0 %715
        %717 = vrot.lane.b32.xlu0 %v696, 127
        %v718 = vpop.permute.xlu0 %717
        %719 = vrot.lane.b32.xlu0 %v697, 127
        %v720 = vpop.permute.xlu0 %719
        %721 = vrot.lane.b32.xlu0 %v698, 127
        %v722 = vpop.permute.xlu0 %721
        %vm723 = vcmask 1039360
        %v724 = vsel %vm723, %v708, %v710
        %v725 = vsel %vm723, %v712, %v714
        %v726 = vsel %vm723, %v716, %v718
        %v727 = vsel %vm723, %v720, %v722
        %732 = vrot.lane.b32.xlu0 %v691, 126
        %v733 = vpop.permute.xlu0 %732
        %734 = vrot.lane.b32.xlu0 %v692, 126
        %v735 = vpop.permute.xlu0 %734
        %736 = vrot.lane.b32.xlu0 %v693, 126
        %v737 = vpop.permute.xlu0 %736
        %738 = vrot.lane.b32.xlu0 %v694, 126
        %v739 = vpop.permute.xlu0 %738
        %740 = vrot.lane.b32.xlu0 %v695, 126
        %v741 = vpop.permute.xlu0 %740
        %742 = vrot.lane.b32.xlu0 %v696, 126
        %v743 = vpop.permute.xlu0 %742
        %744 = vrot.lane.b32.xlu0 %v697, 126
        %v745 = vpop.permute.xlu0 %744
        %746 = vrot.lane.b32.xlu0 %v698, 126
        %v747 = vpop.permute.xlu0 %746
        %vm748 = vcmask 1031168
        %v749 = vsel %vm748, %v733, %v735
        %v750 = vsel %vm748, %v737, %v739
        %v751 = vsel %vm748, %v741, %v743
        %v752 = vsel %vm748, %v745, %v747
        %v757 = vld [vmem:[%s3] sm:$0xff]
        %v758 = vld [vmem:[%s3 + $0x8] sm:$0xff]
        %v759 = vld [vmem:[%s3 + $0x10] sm:$0xff]
        %v760 = vld [vmem:[%s3 + $0x18] sm:$0xff]
        %v761 = vld [vmem:[%s4] sm:$0xff]
        %v762 = vld [vmem:[%s4 + $0x8] sm:$0xff]
        %v763 = vld [vmem:[%s4 + $0x10] sm:$0xff]
        %v764 = vld [vmem:[%s4 + $0x18] sm:$0xff]
        %766 = vset.pattern.permute.xlu0 0
        %767 = vperm.xlu0 %766, %v761
        %v768 = vpop.permute.xlu0 %767
        %771 = vset.pattern.permute.xlu0 0
        %772 = vperm.xlu0 %771, %v762
        %v773 = vpop.permute.xlu0 %772
        %776 = vset.pattern.permute.xlu0 0
        %777 = vperm.xlu0 %776, %v763
        %v778 = vpop.permute.xlu0 %777
        %781 = vset.pattern.permute.xlu0 0
        %782 = vperm.xlu0 %781, %v764
        %v783 = vpop.permute.xlu0 %782
        %vm785 = vcmask 785408
        %v787 = vsel %vm785, %v757, 0
        %v790 = vsel %vm785, %v758, 0
        %v793 = vsel %vm785, %v759, 0
        %v796 = vsel %vm785, %v760, 0
        %798 = vmatprep.subr.mxu0 0.0
        %799 = vmatpush1.msra.mxu0 0.0
        %800 = vmatprep.subr.mxu0 0.0
        %801 = vmatpush1.msra.mxu0 0.0
        %802 = vmatprep.subr.mxu0 0.0
        %803 = vmatpush1.msra.mxu0 0.0
        %804 = vmatprep.subr.mxu0 0.0
        %805 = vmatpush1.msra.mxu0 0.0
        %806 = vmatprep.subr.mxu0 0.0
        %807 = vmatpush1.msra.mxu0 %v752
        %808 = vmatprep.subr.mxu0 0.0
        %809 = vmatpush1.msra.mxu0 %v751
        %810 = vmatprep.subr.mxu0 0.0
        %811 = vmatpush1.msra.mxu0 %v750
        %812 = vmatprep.subr.mxu0 0.0
        %813 = vmatpush1.msra.mxu0 %v749
        %814 = vmatprep.subr.mxu0 0.0
        %815 = vmatpush1.msra.mxu0 %v727
        %816 = vmatprep.subr.mxu0 0.0
        %817 = vmatpush1.msra.mxu0 %v726
        %818 = vmatprep.subr.mxu0 0.0
        %819 = vmatpush1.msra.mxu0 %v725
        %820 = vmatprep.subr.mxu0 0.0
        %821 = vmatpush1.msra.mxu0 %v724
        %822 = vmatprep.subr.mxu0 0.0
        %823 = vmatpush1.msra.mxu0 %v697
        %824 = vmatprep.subr.mxu0 0.0
        %825 = vmatpush1.msra.mxu0 %v695
        %826 = vmatprep.subr.mxu0 0.0
        %827 = vmatpush1.msra.mxu0 %v693
        %828 = vmatprep.subr.mxu0 0.0
        %829 = vmatpush1.msra.mxu0 %v691
        %830 = vmatprep.subr.mxu0 0.0
        %831 = vmatpush2.msra.mxu0 0.0
        %832 = vmatprep.subr.mxu0 0.0
        %833 = vmatpush2.msra.mxu0 0.0
        %834 = vmatprep.subr.mxu0 0.0
        %835 = vmatpush2.msra.mxu0 0.0
        %836 = vmatprep.subr.mxu0 0.0
        %837 = vmatpush2.msra.mxu0 0.0
        %838 = vmatprep.subr.mxu0 0.0
        %839 = vmatpush2.msra.mxu0 0.0
        %840 = vmatprep.subr.mxu0 0.0
        %841 = vmatpush2.msra.mxu0 0.0
        %842 = vmatprep.subr.mxu0 0.0
        %843 = vmatpush2.msra.mxu0 0.0
        %844 = vmatprep.subr.mxu0 0.0
        %845 = vmatpush2.msra.mxu0 0.0
        %846 = vmatprep.subr.mxu0 0.0
        %847 = vmatpush2.msra.mxu0 0.0
        %848 = vmatprep.subr.mxu0 0.0
        %849 = vmatpush2.msra.mxu0 0.0
        %850 = vmatprep.subr.mxu0 0.0
        %851 = vmatpush2.msra.mxu0 0.0
        %852 = vmatprep.subr.mxu0 0.0
        %853 = vmatpush2.msra.mxu0 0.0
        %854 = vmatprep.subr.mxu0 0.0
        %855 = vmatpush2.msra.mxu0 0.0
        %856 = vmatprep.subr.mxu0 0.0
        %857 = vmatpush2.msra.mxu0 0.0
        %858 = vmatprep.subr.mxu0 0.0
        %859 = vmatpush2.msra.mxu0 0.0
        %860 = vmatprep.subr.mxu0 0.0
        %861 = vmatpush2.msra.mxu0 0.0
        %862 = vmatprep.mubr.f32.mxu0 0.0
        %863 = vmatmul.mubr.f32.gmra.mxu0 %v787
        %v864 = vpop.f32.mrf.mxu0
        %v865 = vadd.f32 %v768, %v864
        %v866 = vpop.f32.mrf.mxu0
        %867 = vmatprep.mubr.f32.mxu0 0.0
        %868 = vmatmul.mubr.f32.gmra.mxu0 %v790
        %v869 = vpop.f32.mrf.mxu0
        %v870 = vadd.f32 %v773, %v869
        %v871 = vpop.f32.mrf.mxu0
        %872 = vmatprep.mubr.f32.mxu0 0.0
        %873 = vmatmul.mubr.f32.gmra.mxu0 %v793
        %v874 = vpop.f32.mrf.mxu0
        %v875 = vadd.f32 %v778, %v874
        %v876 = vpop.f32.mrf.mxu0
        %877 = vmatprep.mubr.f32.mxu0 0.0
        %878 = vmatmul.mubr.f32.gmra.mxu0 %v796
        %v879 = vpop.f32.mrf.mxu0
        %v880 = vadd.f32 %v783, %v879
        %v881 = vpop.f32.mrf.mxu0
        %882 = vdwg.mxu0
        %vm883 = vcmp.ge.f32.partialorder %v865, 0.0
        %vm884 = vcmp.ge.f32.partialorder %v870, 0.0
        %vm885 = vcmp.ge.f32.partialorder %v875, 0.0
        %vm886 = vcmp.ge.f32.partialorder %v880, 0.0
        %v887 = vmul.f32 %v865, 0.2
        %v888 = vmul.f32 %v870, 0.2
        %v889 = vmul.f32 %v875, 0.2
        %v890 = vmul.f32 %v880, 0.2
        %v891 = vsel %vm883, %v865, %v887
        %v892 = vsel %vm884, %v870, %v888
        %v893 = vsel %vm885, %v875, %v889
        %v894 = vsel %vm886, %v880, %v890
        %v895 = vld [vmem:[%s5] sm:$0xff]
        %v896 = vld [vmem:[%s5 + $0x8] sm:$0xff]
        %v897 = vld [vmem:[%s5 + $0x10] sm:$0xff]
        %v898 = vld [vmem:[%s5 + $0x18] sm:$0xff]
        %v899 = vld [vmem:[%s6] sm:$0xff]
        %v900 = vld [vmem:[%s6 + $0x8] sm:$0xff]
        %v901 = vld [vmem:[%s6 + $0x10] sm:$0xff]
        %v902 = vld [vmem:[%s6 + $0x18] sm:$0xff]
        %904 = vset.pattern.permute.xlu0 0
        %905 = vperm.xlu0 %904, %v899
        %v906 = vpop.permute.xlu0 %905
        %909 = vset.pattern.permute.xlu0 0
        %910 = vperm.xlu0 %909, %v900
        %v911 = vpop.permute.xlu0 %910
        %914 = vset.pattern.permute.xlu0 0
        %915 = vperm.xlu0 %914, %v901
        %v916 = vpop.permute.xlu0 %915
        %919 = vset.pattern.permute.xlu0 0
        %920 = vperm.xlu0 %919, %v902
        %v921 = vpop.permute.xlu0 %920
        %vm923 = vcmask 261120
        %v925 = vsel %vm923, %v895, 0
        %v928 = vsel %vm923, %v896, 0
        %v931 = vsel %vm923, %v897, 0
        %v934 = vsel %vm923, %v898, 0
        %936 = vmatprep.subr.mxu0 0.0
        %937 = vmatpush1.msra.mxu0 0.0
        %938 = vmatprep.subr.mxu0 0.0
        %939 = vmatpush1.msra.mxu0 0.0
        %940 = vmatprep.subr.mxu0 0.0
        %941 = vmatpush1.msra.mxu0 0.0
        %942 = vmatprep.subr.mxu0 0.0
        %943 = vmatpush1.msra.mxu0 0.0
        %944 = vmatprep.subr.mxu0 0.0
        %945 = vmatpush1.msra.mxu0 0.0
        %946 = vmatprep.subr.mxu0 0.0
        %947 = vmatpush1.msra.mxu0 0.0
        %948 = vmatprep.subr.mxu0 0.0
        %949 = vmatpush1.msra.mxu0 0.0
        %950 = vmatprep.subr.mxu0 0.0
        %951 = vmatpush1.msra.mxu0 0.0
        %952 = vmatprep.subr.mxu0 0.0
        %953 = vmatpush1.msra.mxu0 0.0
        %954 = vmatprep.subr.mxu0 0.0
        %955 = vmatpush1.msra.mxu0 0.0
        %956 = vmatprep.subr.mxu0 0.0
        %957 = vmatpush1.msra.mxu0 0.0
        %958 = vmatprep.subr.mxu0 0.0
        %959 = vmatpush1.msra.mxu0 0.0
        %960 = vmatprep.subr.mxu0 0.0
        %961 = vmatpush1.msra.mxu0 %v894
        %962 = vmatprep.subr.mxu0 0.0
        %963 = vmatpush1.msra.mxu0 %v893
        %964 = vmatprep.subr.mxu0 0.0
        %965 = vmatpush1.msra.mxu0 %v892
        %966 = vmatprep.subr.mxu0 0.0
        %967 = vmatpush1.msra.mxu0 %v891
        %968 = vmatprep.subr.mxu0 0.0
        %969 = vmatpush2.msra.mxu0 0.0
        %970 = vmatprep.subr.mxu0 0.0
        %971 = vmatpush2.msra.mxu0 0.0
        %972 = vmatprep.subr.mxu0 0.0
        %973 = vmatpush2.msra.mxu0 0.0
        %974 = vmatprep.subr.mxu0 0.0
        %975 = vmatpush2.msra.mxu0 0.0
        %976 = vmatprep.subr.mxu0 0.0
        %977 = vmatpush2.msra.mxu0 0.0
        %978 = vmatprep.subr.mxu0 0.0
        %979 = vmatpush2.msra.mxu0 0.0
        %980 = vmatprep.subr.mxu0 0.0
        %981 = vmatpush2.msra.mxu0 0.0
        %982 = vmatprep.subr.mxu0 0.0
        %983 = vmatpush2.msra.mxu0 0.0
        %984 = vmatprep.subr.mxu0 0.0
        %985 = vmatpush2.msra.mxu0 0.0
        %986 = vmatprep.subr.mxu0 0.0
        %987 = vmatpush2.msra.mxu0 0.0
        %988 = vmatprep.subr.mxu0 0.0
        %989 = vmatpush2.msra.mxu0 0.0
        %990 = vmatprep.subr.mxu0 0.0
        %991 = vmatpush2.msra.mxu0 0.0
        %992 = vmatprep.subr.mxu0 0.0
        %993 = vmatpush2.msra.mxu0 0.0
        %994 = vmatprep.subr.mxu0 0.0
        %995 = vmatpush2.msra.mxu0 0.0
        %996 = vmatprep.subr.mxu0 0.0
        %997 = vmatpush2.msra.mxu0 0.0
        %998 = vmatprep.subr.mxu0 0.0
        %999 = vmatpush2.msra.mxu0 0.0
        %1000 = vmatprep.mubr.f32.mxu0 0.0
        %1001 = vmatmul.mubr.f32.gmra.mxu0 %v925
        %v1002 = vpop.f32.mrf.mxu0
        %v1003 = vadd.f32 %v906, %v1002
        %v1004 = vpop.f32.mrf.mxu0
        %1005 = vmatprep.mubr.f32.mxu0 0.0
        %1006 = vmatmul.mubr.f32.gmra.mxu0 %v928
        %v1007 = vpop.f32.mrf.mxu0
        %v1008 = vadd.f32 %v911, %v1007
        %v1009 = vpop.f32.mrf.mxu0
        %1010 = vmatprep.mubr.f32.mxu0 0.0
        %1011 = vmatmul.mubr.f32.gmra.mxu0 %v931
        %v1012 = vpop.f32.mrf.mxu0
        %v1013 = vadd.f32 %v916, %v1012
        %v1014 = vpop.f32.mrf.mxu0
        %1015 = vmatprep.mubr.f32.mxu0 0.0
        %1016 = vmatmul.mubr.f32.gmra.mxu0 %v934
        %v1017 = vpop.f32.mrf.mxu0
        %v1018 = vadd.f32 %v921, %v1017
        %v1019 = vpop.f32.mrf.mxu0
        %1020 = vdwg.mxu0
        %v1021 = vld [vmem:[%s7] sm:$0xff]
        %v1022 = vld [vmem:[%s7 + $0x8] sm:$0xff]
        %v1023 = vld [vmem:[%s7 + $0x10] sm:$0xff]
        %v1024 = vld [vmem:[%s7 + $0x18] sm:$0xff]
        %v1025 = vld [vmem:[%s8] sm:$0xff]
        %v1026 = vld [vmem:[%s8 + $0x8] sm:$0xff]
        %v1027 = vld [vmem:[%s8 + $0x10] sm:$0xff]
        %v1028 = vld [vmem:[%s8 + $0x18] sm:$0xff]
        %1030 = vset.pattern.permute.xlu0 0
        %1031 = vperm.xlu0 %1030, %v1025
        %v1032 = vpop.permute.xlu0 %1031
        %1035 = vset.pattern.permute.xlu0 0
        %1036 = vperm.xlu0 %1035, %v1026
        %v1037 = vpop.permute.xlu0 %1036
        %1040 = vset.pattern.permute.xlu0 0
        %1041 = vperm.xlu0 %1040, %v1027
        %v1042 = vpop.permute.xlu0 %1041
        %1045 = vset.pattern.permute.xlu0 0
        %1046 = vperm.xlu0 %1045, %v1028
        %v1047 = vpop.permute.xlu0 %1046
        %v1050 = vsel %vm923, %v1021, 0
        %v1053 = vsel %vm923, %v1022, 0
        %v1056 = vsel %vm923, %v1023, 0
        %v1059 = vsel %vm923, %v1024, 0
        %1061 = vmatprep.subr.mxu0 0.0
        %1062 = vmatpush1.msra.mxu0 0.0
        %1063 = vmatprep.subr.mxu0 0.0
        %1064 = vmatpush1.msra.mxu0 0.0
        %1065 = vmatprep.subr.mxu0 0.0
        %1066 = vmatpush1.msra.mxu0 0.0
        %1067 = vmatprep.subr.mxu0 0.0
        %1068 = vmatpush1.msra.mxu0 0.0
        %1069 = vmatprep.subr.mxu0 0.0
        %1070 = vmatpush1.msra.mxu0 0.0
        %1071 = vmatprep.subr.mxu0 0.0
        %1072 = vmatpush1.msra.mxu0 0.0
        %1073 = vmatprep.subr.mxu0 0.0
        %1074 = vmatpush1.msra.mxu0 0.0
        %1075 = vmatprep.subr.mxu0 0.0
        %1076 = vmatpush1.msra.mxu0 0.0
        %1077 = vmatprep.subr.mxu0 0.0
        %1078 = vmatpush1.msra.mxu0 0.0
        %1079 = vmatprep.subr.mxu0 0.0
        %1080 = vmatpush1.msra.mxu0 0.0
        %1081 = vmatprep.subr.mxu0 0.0
        %1082 = vmatpush1.msra.mxu0 0.0
        %1083 = vmatprep.subr.mxu0 0.0
        %1084 = vmatpush1.msra.mxu0 0.0
        %1085 = vmatprep.subr.mxu0 0.0
        %1086 = vmatpush1.msra.mxu0 %v561
        %1087 = vmatprep.subr.mxu0 0.0
        %1088 = vmatpush1.msra.mxu0 %v560
        %1089 = vmatprep.subr.mxu0 0.0
        %1090 = vmatpush1.msra.mxu0 %v559
        %1091 = vmatprep.subr.mxu0 0.0
        %1092 = vmatpush1.msra.mxu0 %v558
        %1093 = vmatprep.subr.mxu0 0.0
        %1094 = vmatpush2.msra.mxu0 0.0
        %1095 = vmatprep.subr.mxu0 0.0
        %1096 = vmatpush2.msra.mxu0 0.0
        %1097 = vmatprep.subr.mxu0 0.0
        %1098 = vmatpush2.msra.mxu0 0.0
        %1099 = vmatprep.subr.mxu0 0.0
        %1100 = vmatpush2.msra.mxu0 0.0
        %1101 = vmatprep.subr.mxu0 0.0
        %1102 = vmatpush2.msra.mxu0 0.0
        %1103 = vmatprep.subr.mxu0 0.0
        %1104 = vmatpush2.msra.mxu0 0.0
        %1105 = vmatprep.subr.mxu0 0.0
        %1106 = vmatpush2.msra.mxu0 0.0
        %1107 = vmatprep.subr.mxu0 0.0
        %1108 = vmatpush2.msra.mxu0 0.0
        %1109 = vmatprep.subr.mxu0 0.0
        %1110 = vmatpush2.msra.mxu0 0.0
        %1111 = vmatprep.subr.mxu0 0.0
        %1112 = vmatpush2.msra.mxu0 0.0
        %1113 = vmatprep.subr.mxu0 0.0
        %1114 = vmatpush2.msra.mxu0 0.0
        %1115 = vmatprep.subr.mxu0 0.0
        %1116 = vmatpush2.msra.mxu0 0.0
        %1117 = vmatprep.subr.mxu0 0.0
        %1118 = vmatpush2.msra.mxu0 0.0
        %1119 = vmatprep.subr.mxu0 0.0
        %1120 = vmatpush2.msra.mxu0 0.0
        %1121 = vmatprep.subr.mxu0 0.0
        %1122 = vmatpush2.msra.mxu0 0.0
        %1123 = vmatprep.subr.mxu0 0.0
        %1124 = vmatpush2.msra.mxu0 0.0
        %1125 = vmatprep.mubr.f32.mxu0 0.0
        %1126 = vmatmul.mubr.f32.gmra.mxu0 %v1050
        %v1127 = vpop.f32.mrf.mxu0
        %v1128 = vadd.f32 %v1032, %v1127
        %v1129 = vpop.f32.mrf.mxu0
        %1130 = vmatprep.mubr.f32.mxu0 0.0
        %1131 = vmatmul.mubr.f32.gmra.mxu0 %v1053
        %v1132 = vpop.f32.mrf.mxu0
        %v1133 = vadd.f32 %v1037, %v1132
        %v1134 = vpop.f32.mrf.mxu0
        %1135 = vmatprep.mubr.f32.mxu0 0.0
        %1136 = vmatmul.mubr.f32.gmra.mxu0 %v1056
        %v1137 = vpop.f32.mrf.mxu0
        %v1138 = vadd.f32 %v1042, %v1137
        %v1139 = vpop.f32.mrf.mxu0
        %1140 = vmatprep.mubr.f32.mxu0 0.0
        %1141 = vmatmul.mubr.f32.gmra.mxu0 %v1059
        %v1142 = vpop.f32.mrf.mxu0
        %v1143 = vadd.f32 %v1047, %v1142
        %v1144 = vpop.f32.mrf.mxu0
        %1145 = vdwg.mxu0
        %v1146 = vadd.f32 %v1128, %v1003
        %v1147 = vadd.f32 %v1133, %v1008
        %v1148 = vadd.f32 %v1138, %v1013
        %v1149 = vadd.f32 %v1143, %v1018
        %1150 = vst [vmem:[%s551] sm:$0xff] %v1146
        %1151 = vst [vmem:[%s551 + $0x8] sm:$0xff] %v1147
        %1152 = vst [vmem:[%s551 + $0x10] sm:$0xff] %v1148
        %1153 = vst [vmem:[%s551 + $0x18] sm:$0xff] %v1149
        %s1154 = sand.u32 %s264, 1
        %s1155 = sand.u32 %s264, 1
        %s1156 = smul.addr %s1155, 32
        %s1157 = scalar_lea.vmem [#allocation5], %s1156
        // Predicated region
        $region171: #{high_pass_forward.7} parent=157 // pred_check
          %p1158 = pneg %p274
        $region172: #{high_pass_forward.7} parent=157 // pred_check_branch
          %1160 = sbr.rel (%p1158) target = $region174
        $region173: #{high_pass_forward.7} parent=157 // pred_region
          %s1161 = smul.addr %s24, 16
          %s1162 = sadd.s32 %s25, %s1161
          %s1163 = smul.addr %s1162, 8
          %s1164 = scalar_lea.vmem %s9, %s1163
          // Predicated region
          $region175: #{high_pass_forward.7} parent=173 // pred_check
            _
          $region176: #{high_pass_forward.7} parent=173 // pred_check_branch
            %1166 = sbr.rel (0) target = $region178
          $region177: #{high_pass_forward.7} parent=173 // pred_region
            // Predicated region
            $region179: #{high_pass_forward.7} parent=177 // pred_check
              _
            $region180: #{high_pass_forward.7} parent=177 // pred_check_branch
              %1168 = sbr.rel (0) target = $region182
            $region181: #{high_pass_forward.7} parent=177 // pred_region
              // Predicated region
              $region194: #{high_pass_forward.7} parent=181 // pred_check
                _
              $region195: #{high_pass_forward.7} parent=181 // pred_check_branch
                %1190 = sbr.rel (0) target = $region197
              $region196: #{high_pass_forward.7} parent=181 // pred_region
                loop: start=0, step=1, limit=1
                $region198: #{high_pass_forward.7} parent=196 // loop_pre_header
                  _
                $region199: #{high_pass_forward.7} parent=196 // loop_header
                  %s1192 = sphi 0, %s1196
                  %p1193 = scmp.ge.s32.totalorder %s1192, 1
                  %s1197 = sphi %s1157, %s1157
                  %s1198 = sphi %s1164, %s1164
                $region200: #{high_pass_forward.7} parent=196 // loop_header_branch
                  %1195 = sbr.rel (%p1193) target = $region204
                $region201: #{high_pass_forward.7} parent=196 // loop_body
                  %v1199 = vld [vmem:[%s1197] sm:$0xff]
                  %1200 = vst [vmem:[%s1198] sm:$0xff] %v1199
                  %v1201 = vld [vmem:[%s1197 + $0x8] sm:$0xff]
                  %1202 = vst [vmem:[%s1198 + $0x20] sm:$0xff] %v1201
                  %v1203 = vld [vmem:[%s1197 + $0x10] sm:$0xff]
                  %1204 = vst [vmem:[%s1198 + $0x40] sm:$0xff] %v1203
                  %v1205 = vld [vmem:[%s1197 + $0x18] sm:$0xff]
                  %1206 = vst [vmem:[%s1198 + $0x60] sm:$0xff] %v1205
                $region202: #{high_pass_forward.7} parent=196 // loop_footer
                  %s1196 = sadd.s32 1, %s1192
                $region203: #{high_pass_forward.7} parent=196 // loop_footer_branch
                  %1191 = sbr.rel target = $region199
                $region204: #{high_pass_forward.7} parent=196 // loop_exit
                  _
              $region197: #{high_pass_forward.7} parent=181 // pred_fallthru
                _
              // Predicated region
              $region205: #{high_pass_forward.7} parent=181 // pred_check
                _
              $region206: #{high_pass_forward.7} parent=181 // pred_check_branch
                %1208 = sbr.rel target = $region208
              $region207: #{high_pass_forward.7} parent=181 // pred_region
                _
              $region208: #{high_pass_forward.7} parent=181 // pred_fallthru
                _
            $region182: #{high_pass_forward.7} parent=177 // pred_fallthru
              _
            // Predicated region
            $region183: #{high_pass_forward.7} parent=177 // pred_check
              _
            $region184: #{high_pass_forward.7} parent=177 // pred_check_branch
              %1170 = sbr.rel target = $region186
            $region185: #{high_pass_forward.7} parent=177 // pred_region
              %s1172 = ssub.s32 256, 1
              loop: start=0, step=1, limit=1
              $region187: #{high_pass_forward.7} parent=185 // loop_pre_header
                _
              $region188: #{high_pass_forward.7} parent=185 // loop_header
                %s1174 = sphi 0, %s1178
                %p1175 = scmp.ge.s32.totalorder %s1174, 1
                %s1179 = sphi %s1157, %s1157
                %s1180 = sphi %s1164, %s1164
              $region189: #{high_pass_forward.7} parent=185 // loop_header_branch
                %1177 = sbr.rel (%p1175) target = $region193
              $region190: #{high_pass_forward.7} parent=185 // loop_body
                %v1181 = vld [vmem:[%s1179] sm:%s1172]
                %1182 = vst [vmem:[%s1180] sm:%s1172] %v1181
                %v1183 = vld [vmem:[%s1179 + $0x8] sm:%s1172]
                %1184 = vst [vmem:[%s1180 + $0x20] sm:%s1172] %v1183
                %v1185 = vld [vmem:[%s1179 + $0x10] sm:%s1172]
                %1186 = vst [vmem:[%s1180 + $0x40] sm:%s1172] %v1185
                %v1187 = vld [vmem:[%s1179 + $0x18] sm:%s1172]
                %1188 = vst [vmem:[%s1180 + $0x60] sm:%s1172] %v1187
              $region191: #{high_pass_forward.7} parent=185 // loop_footer
                %s1178 = sadd.s32 1, %s1174
              $region192: #{high_pass_forward.7} parent=185 // loop_footer_branch
                %1173 = sbr.rel target = $region188
              $region193: #{high_pass_forward.7} parent=185 // loop_exit
                _
            $region186: #{high_pass_forward.7} parent=177 // pred_fallthru
              _
          $region178: #{high_pass_forward.7} parent=173 // pred_fallthru
            _
          %1209 = vnop
        $region174: #{high_pass_forward.7} parent=157 // pred_fallthru
          _
      $region158: #{high_pass_forward.7} parent=5 // pred_fallthru
        _
      %p1210 = scmp.le.s32.totalorder 2, %s15
      // Predicated region
      $region209: #{high_pass_forward.7} parent=5 // pred_check
        %p1211 = pneg %p1210
      $region210: #{high_pass_forward.7} parent=5 // pred_check_branch
        %1213 = sbr.rel (%p1211) target = $region212
      $region211: #{high_pass_forward.7} parent=5 // pred_region
        %s1214 = ssub.s32 %s15, 2
        // Predicated region
        $region213: #{high_pass_forward.7} parent=211 // pred_check
          %p1215 = pneg %p280
        $region214: #{high_pass_forward.7} parent=211 // pred_check_branch
          %1217 = sbr.rel (%p1215) target = $region216
        $region215: #{high_pass_forward.7} parent=211 // pred_region
          %s1218 = sand.u32 %s265, 1
          %s1219 = sand.u32 %s265, 1
          %s1220 = smul.addr %s1219, 32
          %s1221 = scalar_lea.vmem [#allocation5], %s1220
        $region216: #{high_pass_forward.7} parent=211 // pred_fallthru
          _
      $region212: #{high_pass_forward.7} parent=5 // pred_fallthru
        _
    $region6: #{high_pass_forward.7} parent=1 // loop_footer
      %s19 = sadd.s32 1, %s15
    $region7: #{high_pass_forward.7} parent=1 // loop_footer_branch
      %14 = sbr.rel target = $region3
    $region8: #{high_pass_forward.7} parent=1 // loop_exit
      _

// kernel: high_pass_forward.6
$region0: #{high_pass_forward.6}
  #allocation0 [shape = 'u32[]', space=smem, size = 0x4, offset = 0x4, fixed_abs, tag = 'smem constant byte address 0x4 - core index']
  #allocation1 [shape = 'u32[144,128]{1,0:T(1,128)}', space=vmem, size = 0x12000, scoped, tag = 'internal scratch']
  %s0 = inlined_call_operand.vmem [shape: f32[2,32,512], index: 0, kind: input, shape index: {}, may-alias: {0,1,2}]
  %s1 = inlined_call_operand.vmem [shape: f32[2,32,512], index: 1, kind: input, shape index: {}, may-alias: {0,1,2}]
  %s2 = inlined_call_operand.vmem [shape: f32[2,32,512], index: 2, kind: input, shape index: {}, may-alias: {0,1,2}]
  %s3 = inlined_call_operand.vmem [shape: f32[32,224], index: 3, kind: input, shape index: {}]
  %s4 = inlined_call_operand.vmem [shape: f32[32,1], index: 4, kind: input, shape index: {}]
  %s5 = inlined_call_operand.vmem [shape: f32[2,32,512], index: 5, kind: output, shape index: {}]
  %s6 = sld [smem:[#allocation0]]
  $region201: #{high_pass_forward.6} parent=0
    _
  %s8 = ssub.s32 1, %s6
  %s9 = scalar_select 0, %s8, %s6
  $region1: #{high_pass_forward.6} parent=0
    #allocation2 [shape = 'u8[32768]{0}', space=vmem, size = 0x8000, scoped, tag = 'input window, operand 0']
    #allocation3 [shape = 'u8[32768]{0}', space=vmem, size = 0x8000, scoped, tag = 'input window, operand 1']
    #allocation4 [shape = 'u8[32768]{0}', space=vmem, size = 0x8000, scoped, tag = 'input window, operand 2']
    #allocation5 [shape = 'u8[32768]{0}', space=vmem, size = 0x8000, scoped, tag = 'output window, operand 0']
    loop: start=0, step=1, limit=10
    $region2: #{high_pass_forward.6} parent=1 // loop_pre_header
      _
    $region3: #{high_pass_forward.6} parent=1 // loop_header
      %s11 = sphi 0, %s15
      %p12 = scmp.ge.s32.totalorder %s11, 10
      %s18 = sphi 0, %s30
      %s19 = sphi 0, %s26
      %s20 = sphi 0, %s18
      %s21 = sphi 0, %s19
      %s22 = sphi 0, %s20
      %s23 = sphi 0, %s21
      %s35 = sphi 0, %s37
      %s38 = sphi 0, %s35
      %s39 = sphi 0, %s38
      %s55 = sphi 0, %s39
      %s69 = sphi 0, %s71
      %s72 = sphi 0, %s69
      %s73 = sphi 0, %s72
      %s89 = sphi 0, %s73
      %s103 = sphi 0, %s105
      %s106 = sphi 0, %s103
      %s107 = sphi 0, %s106
      %s123 = sphi 0, %s107
      %s127 = sphi 0, %s127
      %s129 = sphi 0, %s127
      %s130 = sphi 0, %s129
      %s144 = sphi 0, %s130
      %s148 = sphi 0, %s148
      %s150 = sphi 0, %s148
      %s151 = sphi 0, %s150
      %s165 = sphi 0, %s151
      %s173 = sphi 0, %s175
      %s176 = sphi 0, %s173
      %s177 = sphi 0, %s176
      %s193 = sphi 0, %s177
    $region4: #{high_pass_forward.6} parent=1 // loop_header_branch
      %14 = sbr.rel (%p12) target = $region8
    $region5: #{high_pass_forward.6} parent=1 // loop_body
      %s16 = ssub.s32 %s11, 1
      %s17 = ssub.s32 %s11, 2
      %s24 = sadd.s32 1, %s19
      %p25 = scmp.ge.s32.totalorder %s24, 4
      %s26 = scalar_select %p25, 0, %s24
      %s27 = sadd.s32 1, %s18
      %s28 = scalar_select %p25, %s27, %s18
      %p29 = scmp.ge.s32.totalorder %s28, 2
      %s30 = scalar_select %p29, 0, %s28
      %s31 = ssub.s32 %s18, %s30
      %s32 = ssub.s32 %s19, %s26
      %s33 = sor.u32 %s31, %s32
      %p34 = scmp.eq.s32.totalorder %s33, 0
      %s36 = sadd.s32 %s35, 1
      %s37 = scalar_select %p34, %s35, %s36
      %p40 = pneg %p34
      %p41 = scmp.eq.s32.totalorder %s11, 7
      %p42 = por %p40, %p41
      %p43 = scmp.ne.s32.totalorder %s35, %s38
      %p44 = scmp.eq.s32.totalorder %s11, 0
      %p45 = por %p43, %p44
      %p46 = scmp.ne.s32.totalorder %s35, %s38
      %p47 = scmp.eq.s32.totalorder %s16, 7
      %p48 = por %p46, %p47
      %p49 = scmp.ne.s32.totalorder %s38, %s39
      %p50 = scmp.eq.s32.totalorder %s16, 0
      %p51 = por %p49, %p50
      %p52 = scmp.ne.s32.totalorder %s38, %s39
      %p53 = scmp.eq.s32.totalorder %s17, 7
      %p54 = por %p52, %p53
      %p56 = scmp.ne.s32.totalorder %s39, %s55
      %p57 = scmp.eq.s32.totalorder %s17, 0
      %p58 = por %p56, %p57
      %s59 = ssub.s32 %s19, 1
      %p60 = scmp.gt.s32.totalorder %s59, 0
      %s61 = scalar_select %p60, %s59, 0
      %s62 = ssub.s32 %s26, 1
      %p63 = scmp.gt.s32.totalorder %s62, 0
      %s64 = scalar_select %p63, %s62, 0
      %s65 = ssub.s32 %s18, %s30
      %s66 = ssub.s32 %s61, %s64
      %s67 = sor.u32 %s65, %s66
      %p68 = scmp.eq.s32.totalorder %s67, 0
      %s70 = sadd.s32 %s69, 1
      %s71 = scalar_select %p68, %s69, %s70
      %p74 = pneg %p68
      %p75 = scmp.eq.s32.totalorder %s11, 7
      %p76 = por %p74, %p75
      %p77 = scmp.ne.s32.totalorder %s69, %s72
      %p78 = scmp.eq.s32.totalorder %s11, 0
      %p79 = por %p77, %p78
      %p80 = scmp.ne.s32.totalorder %s69, %s72
      %p81 = scmp.eq.s32.totalorder %s16, 7
      %p82 = por %p80, %p81
      %p83 = scmp.ne.s32.totalorder %s72, %s73
      %p84 = scmp.eq.s32.totalorder %s16, 0
      %p85 = por %p83, %p84
      %p86 = scmp.ne.s32.totalorder %s72, %s73
      %p87 = scmp.eq.s32.totalorder %s17, 7
      %p88 = por %p86, %p87
      %p90 = scmp.ne.s32.totalorder %s73, %s89
      %p91 = scmp.eq.s32.totalorder %s17, 0
      %p92 = por %p90, %p91
      %s93 = sadd.s32 %s19, 1
      %p94 = scmp.lt.s32.totalorder %s93, 3
      %s95 = scalar_select %p94, %s93, 3
      %s96 = sadd.s32 %s26, 1
      %p97 = scmp.lt.s32.totalorder %s96, 3
      %s98 = scalar_select %p97, %s96, 3
      %s99 = ssub.s32 %s18, %s30
      %s100 = ssub.s32 %s95, %s98
      %s101 = sor.u32 %s99, %s100
      %p102 = scmp.eq.s32.totalorder %s101, 0
      %s104 = sadd.s32 %s103, 1
      %s105 = scalar_select %p102, %s103, %s104
      %p108 = pneg %p102
      %p109 = scmp.eq.s32.totalorder %s11, 7
      %p110 = por %p108, %p109
      %p111 = scmp.ne.s32.totalorder %s103, %s106
      %p112 = scmp.eq.s32.totalorder %s11, 0
      %p113 = por %p111, %p112
      %p114 = scmp.ne.s32.totalorder %s103, %s106
      %p115 = scmp.eq.s32.totalorder %s16, 7
      %p116 = por %p114, %p115
      %p117 = scmp.ne.s32.totalorder %s106, %s107
      %p118 = scmp.eq.s32.totalorder %s16, 0
      %p119 = por %p117, %p118
      %p120 = scmp.ne.s32.totalorder %s106, %s107
      %p121 = scmp.eq.s32.totalorder %s17, 7
      %p122 = por %p120, %p121
      %p124 = scmp.ne.s32.totalorder %s107, %s123
      %p125 = scmp.eq.s32.totalorder %s17, 0
      %p126 = por %p124, %p125
      %s128 = sadd.s32 %s127, 1
      %p131 = scmp.eq.s32.totalorder %s11, 7
      %p132 = scmp.ne.s32.totalorder %s127, %s129
      %p133 = scmp.eq.s32.totalorder %s11, 0
      %p134 = por %p132, %p133
      %p135 = scmp.ne.s32.totalorder %s127, %s129
      %p136 = scmp.eq.s32.totalorder %s16, 7
      %p137 = por %p135, %p136
      %p138 = scmp.ne.s32.totalorder %s129, %s130
      %p139 = scmp.eq.s32.totalorder %s16, 0
      %p140 = por %p138, %p139
      %p141 = scmp.ne.s32.totalorder %s129, %s130
      %p142 = scmp.eq.s32.totalorder %s17, 7
      %p143 = por %p141, %p142
      %p145 = scmp.ne.s32.totalorder %s130, %s144
      %p146 = scmp.eq.s32.totalorder %s17, 0
      %p147 = por %p145, %p146
      %s149 = sadd.s32 %s148, 1
      %p152 = scmp.eq.s32.totalorder %s11, 7
      %p153 = scmp.ne.s32.totalorder %s148, %s150
      %p154 = scmp.eq.s32.totalorder %s11, 0
      %p155 = por %p153, %p154
      %p156 = scmp.ne.s32.totalorder %s148, %s150
      %p157 = scmp.eq.s32.totalorder %s16, 7
      %p158 = por %p156, %p157
      %p159 = scmp.ne.s32.totalorder %s150, %s151
      %p160 = scmp.eq.s32.totalorder %s16, 0
      %p161 = por %p159, %p160
      %p162 = scmp.ne.s32.totalorder %s150, %s151
      %p163 = scmp.eq.s32.totalorder %s17, 7
      %p164 = por %p162, %p163
      %p166 = scmp.ne.s32.totalorder %s151, %s165
      %p167 = scmp.eq.s32.totalorder %s17, 0
      %p168 = por %p166, %p167
      %s169 = ssub.s32 %s18, %s30
      %s170 = ssub.s32 %s19, %s26
      %s171 = sor.u32 %s169, %s170
      %p172 = scmp.eq.s32.totalorder %s171, 0
      %s174 = sadd.s32 %s173, 1
      %s175 = scalar_select %p172, %s173, %s174
      %p178 = pneg %p172
      %p179 = scmp.eq.s32.totalorder %s11, 7
      %p180 = por %p178, %p179
      %p181 = scmp.ne.s32.totalorder %s173, %s176
      %p182 = scmp.eq.s32.totalorder %s11, 0
      %p183 = por %p181, %p182
      %p184 = scmp.ne.s32.totalorder %s173, %s176
      %p185 = scmp.eq.s32.totalorder %s16, 7
      %p186 = por %p184, %p185
      %p187 = scmp.ne.s32.totalorder %s176, %s177
      %p188 = scmp.eq.s32.totalorder %s16, 0
      %p189 = por %p187, %p188
      %p190 = scmp.ne.s32.totalorder %s176, %s177
      %p191 = scmp.eq.s32.totalorder %s17, 7
      %p192 = por %p190, %p191
      %p194 = scmp.ne.s32.totalorder %s177, %s193
      %p195 = scmp.eq.s32.totalorder %s17, 0
      %p196 = por %p194, %p195
      %p197 = scmp.le.s32.totalorder 1, %s11
      %p198 = scmp.lt.s32.totalorder %s11, 9
      %p199 = pnand %p197, %p198
      %p200 = pneg %p199
      // Predicated region
      $region9: #{high_pass_forward.6} parent=5 // pred_check
        _
      $region10: #{high_pass_forward.6} parent=5 // pred_check_branch
        %202 = sbr.rel (%p199) target = $region12
      $region11: #{high_pass_forward.6} parent=5 // pred_region
        %s203 = ssub.s32 %s11, 1
        // Predicated region
        $region13: #{high_pass_forward.6} parent=11 // pred_check
          %p204 = pneg %p140
        $region14: #{high_pass_forward.6} parent=11 // pred_check_branch
          %206 = sbr.rel (%p204) target = $region16
        $region15: #{high_pass_forward.6} parent=11 // pred_region
          _
        $region16: #{high_pass_forward.6} parent=11 // pred_fallthru
          _
        // Predicated region
        $region17: #{high_pass_forward.6} parent=11 // pred_check
          %p207 = pneg %p161
        $region18: #{high_pass_forward.6} parent=11 // pred_check_branch
          %209 = sbr.rel (%p207) target = $region20
        $region19: #{high_pass_forward.6} parent=11 // pred_region
          _
        $region20: #{high_pass_forward.6} parent=11 // pred_fallthru
          _
      $region12: #{high_pass_forward.6} parent=5 // pred_fallthru
        _
      %p210 = scmp.lt.s32.totalorder %s11, 8
      // Predicated region
      $region21: #{high_pass_forward.6} parent=5 // pred_check
        %p211 = pneg %p210
      $region22: #{high_pass_forward.6} parent=5 // pred_check_branch
        %213 = sbr.rel (%p211) target = $region24
      $region23: #{high_pass_forward.6} parent=5 // pred_region
        // Predicated region
        $region25: #{high_pass_forward.6} parent=23 // pred_check
          %p214 = pneg %p45
        $region26: #{high_pass_forward.6} parent=23 // pred_check_branch
          %216 = sbr.rel (%p214) target = $region28
        $region27: #{high_pass_forward.6} parent=23 // pred_region
          %s217 = sand.u32 %s35, 1
          %s218 = sand.u32 %s35, 1
          %s219 = smul.addr %s218, 32
          %s220 = scalar_lea.vmem [#allocation2], %s219
          %s221 = smul.addr %s18, 16
          %s222 = sadd.s32 %s19, %s221
          %s223 = smul.addr %s222, 8
          %s224 = scalar_lea.vmem %s0, %s223
          // Predicated region
          $region29: #{high_pass_forward.6} parent=27 // pred_check
            _
          $region30: #{high_pass_forward.6} parent=27 // pred_check_branch
            %226 = sbr.rel (0) target = $region32
          $region31: #{high_pass_forward.6} parent=27 // pred_region
            // Predicated region
            $region33: #{high_pass_forward.6} parent=31 // pred_check
              _
            $region34: #{high_pass_forward.6} parent=31 // pred_check_branch
              %228 = sbr.rel (0) target = $region36
            $region35: #{high_pass_forward.6} parent=31 // pred_region
              // Predicated region
              $region48: #{high_pass_forward.6} parent=35 // pred_check
                _
              $region49: #{high_pass_forward.6} parent=35 // pred_check_branch
                %250 = sbr.rel (0) target = $region51
              $region50: #{high_pass_forward.6} parent=35 // pred_region
                loop: start=0, step=1, limit=1
                $region52: #{high_pass_forward.6} parent=50 // loop_pre_header
                  _
                $region53: #{high_pass_forward.6} parent=50 // loop_header
                  %s252 = sphi 0, %s256
                  %p253 = scmp.ge.s32.totalorder %s252, 1
                  %s257 = sphi %s224, %s224
                  %s258 = sphi %s220, %s220
                $region54: #{high_pass_forward.6} parent=50 // loop_header_branch
                  %255 = sbr.rel (%p253) target = $region58
                $region55: #{high_pass_forward.6} parent=50 // loop_body
                  %v259 = vld [vmem:[%s257] sm:$0xff]
                  %260 = vst [vmem:[%s258] sm:$0xff] %v259
                  %v261 = vld [vmem:[%s257 + $0x20] sm:$0xff]
                  %262 = vst [vmem:[%s258 + $0x8] sm:$0xff] %v261
                  %v263 = vld [vmem:[%s257 + $0x40] sm:$0xff]
                  %264 = vst [vmem:[%s258 + $0x10] sm:$0xff] %v263
                  %v265 = vld [vmem:[%s257 + $0x60] sm:$0xff]
                  %266 = vst [vmem:[%s258 + $0x18] sm:$0xff] %v265
                $region56: #{high_pass_forward.6} parent=50 // loop_footer
                  %s256 = sadd.s32 1, %s252
                $region57: #{high_pass_forward.6} parent=50 // loop_footer_branch
                  %251 = sbr.rel target = $region53
                $region58: #{high_pass_forward.6} parent=50 // loop_exit
                  _
              $region51: #{high_pass_forward.6} parent=35 // pred_fallthru
                _
              // Predicated region
              $region59: #{high_pass_forward.6} parent=35 // pred_check
                _
              $region60: #{high_pass_forward.6} parent=35 // pred_check_branch
                %268 = sbr.rel target = $region62
              $region61: #{high_pass_forward.6} parent=35 // pred_region
                _
              $region62: #{high_pass_forward.6} parent=35 // pred_fallthru
                _
            $region36: #{high_pass_forward.6} parent=31 // pred_fallthru
              _
            // Predicated region
            $region37: #{high_pass_forward.6} parent=31 // pred_check
              _
            $region38: #{high_pass_forward.6} parent=31 // pred_check_branch
              %230 = sbr.rel target = $region40
            $region39: #{high_pass_forward.6} parent=31 // pred_region
              %s232 = ssub.s32 256, 1
              loop: start=0, step=1, limit=1
              $region41: #{high_pass_forward.6} parent=39 // loop_pre_header
                _
              $region42: #{high_pass_forward.6} parent=39 // loop_header
                %s234 = sphi 0, %s238
                %p235 = scmp.ge.s32.totalorder %s234, 1
                %s239 = sphi %s224, %s224
                %s240 = sphi %s220, %s220
              $region43: #{high_pass_forward.6} parent=39 // loop_header_branch
                %237 = sbr.rel (%p235) target = $region47
              $region44: #{high_pass_forward.6} parent=39 // loop_body
                %v241 = vld [vmem:[%s239] sm:%s232]
                %242 = vst [vmem:[%s240] sm:%s232] %v241
                %v243 = vld [vmem:[%s239 + $0x20] sm:%s232]
                %244 = vst [vmem:[%s240 + $0x8] sm:%s232] %v243
                %v245 = vld [vmem:[%s239 + $0x40] sm:%s232]
                %246 = vst [vmem:[%s240 + $0x10] sm:%s232] %v245
                %v247 = vld [vmem:[%s239 + $0x60] sm:%s232]
                %248 = vst [vmem:[%s240 + $0x18] sm:%s232] %v247
              $region45: #{high_pass_forward.6} parent=39 // loop_footer
                %s238 = sadd.s32 1, %s234
              $region46: #{high_pass_forward.6} parent=39 // loop_footer_branch
                %233 = sbr.rel target = $region42
              $region47: #{high_pass_forward.6} parent=39 // loop_exit
                _
            $region40: #{high_pass_forward.6} parent=31 // pred_fallthru
              _
          $region32: #{high_pass_forward.6} parent=27 // pred_fallthru
            _
          %269 = vnop
        $region28: #{high_pass_forward.6} parent=23 // pred_fallthru
          _
        // Predicated region
        $region63: #{high_pass_forward.6} parent=23 // pred_check
          %p270 = pneg %p79
        $region64: #{high_pass_forward.6} parent=23 // pred_check_branch
          %272 = sbr.rel (%p270) target = $region66
        $region65: #{high_pass_forward.6} parent=23 // pred_region
          %s273 = sand.u32 %s69, 1
          %s274 = sand.u32 %s69, 1
          %s275 = smul.addr %s274, 32
          %s276 = scalar_lea.vmem [#allocation3], %s275
          %s277 = ssub.s32 %s19, 1
          %p278 = scmp.gt.s32.totalorder %s277, 0
          %s279 = scalar_select %p278, %s277, 0
          %s280 = smul.addr %s18, 16
          %s281 = sadd.s32 %s279, %s280
          %s282 = smul.addr %s281, 8
          %s283 = scalar_lea.vmem %s1, %s282
          // Predicated region
          $region67: #{high_pass_forward.6} parent=65 // pred_check
            _
          $region68: #{high_pass_forward.6} parent=65 // pred_check_branch
            %285 = sbr.rel (0) target = $region70
          $region69: #{high_pass_forward.6} parent=65 // pred_region
            // Predicated region
            $region71: #{high_pass_forward.6} parent=69 // pred_check
              _
            $region72: #{high_pass_forward.6} parent=69 // pred_check_branch
              %287 = sbr.rel (0) target = $region74
            $region73: #{high_pass_forward.6} parent=69 // pred_region
              // Predicated region
              $region86: #{high_pass_forward.6} parent=73 // pred_check
                _
              $region87: #{high_pass_forward.6} parent=73 // pred_check_branch
                %309 = sbr.rel (0) target = $region89
              $region88: #{high_pass_forward.6} parent=73 // pred_region
                loop: start=0, step=1, limit=1
                $region90: #{high_pass_forward.6} parent=88 // loop_pre_header
                  _
                $region91: #{high_pass_forward.6} parent=88 // loop_header
                  %s311 = sphi 0, %s315
                  %p312 = scmp.ge.s32.totalorder %s311, 1
                  %s316 = sphi %s283, %s283
                  %s317 = sphi %s276, %s276
                $region92: #{high_pass_forward.6} parent=88 // loop_header_branch
                  %314 = sbr.rel (%p312) target = $region96
                $region93: #{high_pass_forward.6} parent=88 // loop_body
                  %v318 = vld [vmem:[%s316] sm:$0xff]
                  %319 = vst [vmem:[%s317] sm:$0xff] %v318
                  %v320 = vld [vmem:[%s316 + $0x20] sm:$0xff]
                  %321 = vst [vmem:[%s317 + $0x8] sm:$0xff] %v320
                  %v322 = vld [vmem:[%s316 + $0x40] sm:$0xff]
                  %323 = vst [vmem:[%s317 + $0x10] sm:$0xff] %v322
                  %v324 = vld [vmem:[%s316 + $0x60] sm:$0xff]
                  %325 = vst [vmem:[%s317 + $0x18] sm:$0xff] %v324
                $region94: #{high_pass_forward.6} parent=88 // loop_footer
                  %s315 = sadd.s32 1, %s311
                $region95: #{high_pass_forward.6} parent=88 // loop_footer_branch
                  %310 = sbr.rel target = $region91
                $region96: #{high_pass_forward.6} parent=88 // loop_exit
                  _
              $region89: #{high_pass_forward.6} parent=73 // pred_fallthru
                _
              // Predicated region
              $region97: #{high_pass_forward.6} parent=73 // pred_check
                _
              $region98: #{high_pass_forward.6} parent=73 // pred_check_branch
                %327 = sbr.rel target = $region100
              $region99: #{high_pass_forward.6} parent=73 // pred_region
                _
              $region100: #{high_pass_forward.6} parent=73 // pred_fallthru
                _
            $region74: #{high_pass_forward.6} parent=69 // pred_fallthru
              _
            // Predicated region
            $region75: #{high_pass_forward.6} parent=69 // pred_check
              _
            $region76: #{high_pass_forward.6} parent=69 // pred_check_branch
              %289 = sbr.rel target = $region78
            $region77: #{high_pass_forward.6} parent=69 // pred_region
              %s291 = ssub.s32 256, 1
              loop: start=0, step=1, limit=1
              $region79: #{high_pass_forward.6} parent=77 // loop_pre_header
                _
              $region80: #{high_pass_forward.6} parent=77 // loop_header
                %s293 = sphi 0, %s297
                %p294 = scmp.ge.s32.totalorder %s293, 1
                %s298 = sphi %s283, %s283
                %s299 = sphi %s276, %s276
              $region81: #{high_pass_forward.6} parent=77 // loop_header_branch
                %296 = sbr.rel (%p294) target = $region85
              $region82: #{high_pass_forward.6} parent=77 // loop_body
                %v300 = vld [vmem:[%s298] sm:%s291]
                %301 = vst [vmem:[%s299] sm:%s291] %v300
                %v302 = vld [vmem:[%s298 + $0x20] sm:%s291]
                %303 = vst [vmem:[%s299 + $0x8] sm:%s291] %v302
                %v304 = vld [vmem:[%s298 + $0x40] sm:%s291]
                %305 = vst [vmem:[%s299 + $0x10] sm:%s291] %v304
                %v306 = vld [vmem:[%s298 + $0x60] sm:%s291]
                %307 = vst [vmem:[%s299 + $0x18] sm:%s291] %v306
              $region83: #{high_pass_forward.6} parent=77 // loop_footer
                %s297 = sadd.s32 1, %s293
              $region84: #{high_pass_forward.6} parent=77 // loop_footer_branch
                %292 = sbr.rel target = $region80
              $region85: #{high_pass_forward.6} parent=77 // loop_exit
                _
            $region78: #{high_pass_forward.6} parent=69 // pred_fallthru
              _
          $region70: #{high_pass_forward.6} parent=65 // pred_fallthru
            _
          %328 = vnop
        $region66: #{high_pass_forward.6} parent=23 // pred_fallthru
          _
        // Predicated region
        $region101: #{high_pass_forward.6} parent=23 // pred_check
          %p329 = pneg %p113
        $region102: #{high_pass_forward.6} parent=23 // pred_check_branch
          %331 = sbr.rel (%p329) target = $region104
        $region103: #{high_pass_forward.6} parent=23 // pred_region
          %s332 = sand.u32 %s103, 1
          %s333 = sand.u32 %s103, 1
          %s334 = smul.addr %s333, 32
          %s335 = scalar_lea.vmem [#allocation4], %s334
          %s336 = sadd.s32 %s19, 1
          %p337 = scmp.lt.s32.totalorder %s336, 3
          %s338 = scalar_select %p337, %s336, 3
          %s339 = smul.addr %s18, 16
          %s340 = sadd.s32 %s338, %s339
          %s341 = smul.addr %s340, 8
          %s342 = scalar_lea.vmem %s2, %s341
          // Predicated region
          $region105: #{high_pass_forward.6} parent=103 // pred_check
            _
          $region106: #{high_pass_forward.6} parent=103 // pred_check_branch
            %344 = sbr.rel (0) target = $region108
          $region107: #{high_pass_forward.6} parent=103 // pred_region
            // Predicated region
            $region109: #{high_pass_forward.6} parent=107 // pred_check
              _
            $region110: #{high_pass_forward.6} parent=107 // pred_check_branch
              %346 = sbr.rel (0) target = $region112
            $region111: #{high_pass_forward.6} parent=107 // pred_region
              // Predicated region
              $region124: #{high_pass_forward.6} parent=111 // pred_check
                _
              $region125: #{high_pass_forward.6} parent=111 // pred_check_branch
                %368 = sbr.rel (0) target = $region127
              $region126: #{high_pass_forward.6} parent=111 // pred_region
                loop: start=0, step=1, limit=1
                $region128: #{high_pass_forward.6} parent=126 // loop_pre_header
                  _
                $region129: #{high_pass_forward.6} parent=126 // loop_header
                  %s370 = sphi 0, %s374
                  %p371 = scmp.ge.s32.totalorder %s370, 1
                  %s375 = sphi %s342, %s342
                  %s376 = sphi %s335, %s335
                $region130: #{high_pass_forward.6} parent=126 // loop_header_branch
                  %373 = sbr.rel (%p371) target = $region134
                $region131: #{high_pass_forward.6} parent=126 // loop_body
                  %v377 = vld [vmem:[%s375] sm:$0xff]
                  %378 = vst [vmem:[%s376] sm:$0xff] %v377
                  %v379 = vld [vmem:[%s375 + $0x20] sm:$0xff]
                  %380 = vst [vmem:[%s376 + $0x8] sm:$0xff] %v379
                  %v381 = vld [vmem:[%s375 + $0x40] sm:$0xff]
                  %382 = vst [vmem:[%s376 + $0x10] sm:$0xff] %v381
                  %v383 = vld [vmem:[%s375 + $0x60] sm:$0xff]
                  %384 = vst [vmem:[%s376 + $0x18] sm:$0xff] %v383
                $region132: #{high_pass_forward.6} parent=126 // loop_footer
                  %s374 = sadd.s32 1, %s370
                $region133: #{high_pass_forward.6} parent=126 // loop_footer_branch
                  %369 = sbr.rel target = $region129
                $region134: #{high_pass_forward.6} parent=126 // loop_exit
                  _
              $region127: #{high_pass_forward.6} parent=111 // pred_fallthru
                _
              // Predicated region
              $region135: #{high_pass_forward.6} parent=111 // pred_check
                _
              $region136: #{high_pass_forward.6} parent=111 // pred_check_branch
                %386 = sbr.rel target = $region138
              $region137: #{high_pass_forward.6} parent=111 // pred_region
                _
              $region138: #{high_pass_forward.6} parent=111 // pred_fallthru
                _
            $region112: #{high_pass_forward.6} parent=107 // pred_fallthru
              _
            // Predicated region
            $region113: #{high_pass_forward.6} parent=107 // pred_check
              _
            $region114: #{high_pass_forward.6} parent=107 // pred_check_branch
              %348 = sbr.rel target = $region116
            $region115: #{high_pass_forward.6} parent=107 // pred_region
              %s350 = ssub.s32 256, 1
              loop: start=0, step=1, limit=1
              $region117: #{high_pass_forward.6} parent=115 // loop_pre_header
                _
              $region118: #{high_pass_forward.6} parent=115 // loop_header
                %s352 = sphi 0, %s356
                %p353 = scmp.ge.s32.totalorder %s352, 1
                %s357 = sphi %s342, %s342
                %s358 = sphi %s335, %s335
              $region119: #{high_pass_forward.6} parent=115 // loop_header_branch
                %355 = sbr.rel (%p353) target = $region123
              $region120: #{high_pass_forward.6} parent=115 // loop_body
                %v359 = vld [vmem:[%s357] sm:%s350]
                %360 = vst [vmem:[%s358] sm:%s350] %v359
                %v361 = vld [vmem:[%s357 + $0x20] sm:%s350]
                %362 = vst [vmem:[%s358 + $0x8] sm:%s350] %v361
                %v363 = vld [vmem:[%s357 + $0x40] sm:%s350]
                %364 = vst [vmem:[%s358 + $0x10] sm:%s350] %v363
                %v365 = vld [vmem:[%s357 + $0x60] sm:%s350]
                %366 = vst [vmem:[%s358 + $0x18] sm:%s350] %v365
              $region121: #{high_pass_forward.6} parent=115 // loop_footer
                %s356 = sadd.s32 1, %s352
              $region122: #{high_pass_forward.6} parent=115 // loop_footer_branch
                %351 = sbr.rel target = $region118
              $region123: #{high_pass_forward.6} parent=115 // loop_exit
                _
            $region116: #{high_pass_forward.6} parent=107 // pred_fallthru
              _
          $region108: #{high_pass_forward.6} parent=103 // pred_fallthru
            _
          %387 = vnop
        $region104: #{high_pass_forward.6} parent=23 // pred_fallthru
          _
      $region24: #{high_pass_forward.6} parent=5 // pred_fallthru
        _
      %p388 = scmp.le.s32.totalorder 1, %s11
      %p389 = scmp.lt.s32.totalorder %s11, 9
      %p390 = pnand %p388, %p389
      %p391 = pneg %p390
      // Predicated region
      $region139: #{high_pass_forward.6} parent=5 // pred_check
        _
      $region140: #{high_pass_forward.6} parent=5 // pred_check_branch
        %393 = sbr.rel (%p390) target = $region142
      $region141: #{high_pass_forward.6} parent=5 // pred_region
        %s394 = ssub.s32 %s11, 1
        %s395 = sand.u32 %s38, 1
        %s396 = sand.u32 %s38, 1
        %s397 = smul.addr %s396, 32
        %s398 = scalar_lea.vmem [#allocation2], %s397
        // Predicated region
        $region143: #{high_pass_forward.6} parent=141 // pred_check
          %p399 = pneg %p51
        $region144: #{high_pass_forward.6} parent=141 // pred_check_branch
          %401 = sbr.rel (%p399) target = $region146
        $region145: #{high_pass_forward.6} parent=141 // pred_region
          _
        $region146: #{high_pass_forward.6} parent=141 // pred_fallthru
          _
        %s402 = sand.u32 %s72, 1
        %s403 = sand.u32 %s72, 1
        %s404 = smul.addr %s403, 32
        %s405 = scalar_lea.vmem [#allocation3], %s404
        // Predicated region
        $region147: #{high_pass_forward.6} parent=141 // pred_check
          %p406 = pneg %p85
        $region148: #{high_pass_forward.6} parent=141 // pred_check_branch
          %408 = sbr.rel (%p406) target = $region150
        $region149: #{high_pass_forward.6} parent=141 // pred_region
          _
        $region150: #{high_pass_forward.6} parent=141 // pred_fallthru
          _
        %s409 = sand.u32 %s106, 1
        %s410 = sand.u32 %s106, 1
        %s411 = smul.addr %s410, 32
        %s412 = scalar_lea.vmem [#allocation4], %s411
        // Predicated region
        $region151: #{high_pass_forward.6} parent=141 // pred_check
          %p413 = pneg %p119
        $region152: #{high_pass_forward.6} parent=141 // pred_check_branch
          %415 = sbr.rel (%p413) target = $region154
        $region153: #{high_pass_forward.6} parent=141 // pred_region
          _
        $region154: #{high_pass_forward.6} parent=141 // pred_fallthru
          _
        %s416 = sand.u32 %s38, 1
        %s417 = sand.u32 %s38, 1
        %s418 = smul.addr %s417, 32
        %s419 = scalar_lea.vmem [#allocation2], %s418
        %p420 = pneg %p51
        %p421 = pneg %p48
        %s422 = sand.u32 %s72, 1
        %s423 = sand.u32 %s72, 1
        %s424 = smul.addr %s423, 32
        %s425 = scalar_lea.vmem [#allocation3], %s424
        %p426 = pneg %p85
        %p427 = pneg %p82
        %s428 = sand.u32 %s106, 1
        %s429 = sand.u32 %s106, 1
        %s430 = smul.addr %s429, 32
        %s431 = scalar_lea.vmem [#allocation4], %s430
        %p432 = pneg %p119
        %p433 = pneg %p116
        %p434 = pneg %p140
        %p435 = pneg %p137
        %p436 = pneg %p161
        %p437 = pneg %p158
        %p438 = pneg %p189
        %p439 = pneg %p186
        %s440 = sand.u32 %s176, 1
        %s441 = sand.u32 %s176, 1
        %s442 = smul.addr %s441, 32
        %s443 = scalar_lea.vmem [#allocation5], %s442
        %s444 = ssub.s32 %s21, 1
        %p445 = scmp.gt.s32.totalorder %s444, 0
        %s446 = scalar_select %p445, %s444, 0
        %s447 = sadd.s32 %s21, 1
        %p448 = scmp.lt.s32.totalorder %s447, 3
        %s449 = scalar_select %p448, %s447, 3
        %v450 = vld [vmem:[%s398] sm:$0xff]
        %v451 = vld [vmem:[%s398 + $0x8] sm:$0xff]
        %v452 = vld [vmem:[%s398 + $0x10] sm:$0xff]
        %v453 = vld [vmem:[%s398 + $0x18] sm:$0xff]
        %v454 = vld [vmem:[%s405] sm:$0xff]
        %v455 = vld [vmem:[%s405 + $0x8] sm:$0xff]
        %v456 = vld [vmem:[%s405 + $0x10] sm:$0xff]
        %v457 = vld [vmem:[%s405 + $0x18] sm:$0xff]
        %v458 = vld [vmem:[%s412] sm:$0xff]
        %v459 = vld [vmem:[%s412 + $0x8] sm:$0xff]
        %v460 = vld [vmem:[%s412 + $0x10] sm:$0xff]
        %v461 = vld [vmem:[%s412 + $0x18] sm:$0xff]
        %466 = vrot.lane.b32.xlu0 %v450, 125
        %v467 = vpop.permute.xlu0 %466
        %468 = vrot.lane.b32.xlu0 %v451, 125
        %v469 = vpop.permute.xlu0 %468
        %470 = vrot.lane.b32.xlu0 %v452, 125
        %v471 = vpop.permute.xlu0 %470
        %472 = vrot.lane.b32.xlu0 %v453, 125
        %v473 = vpop.permute.xlu0 %472
        %478 = vrot.lane.b32.xlu0 %v450, 127
        %v479 = vpop.permute.xlu0 %478
        %480 = vrot.lane.b32.xlu0 %v451, 127
        %v481 = vpop.permute.xlu0 %480
        %482 = vrot.lane.b32.xlu0 %v452, 127
        %v483 = vpop.permute.xlu0 %482
        %484 = vrot.lane.b32.xlu0 %v453, 127
        %v485 = vpop.permute.xlu0 %484
        %490 = vrot.lane.b32.xlu0 %v450, 1
        %v491 = vpop.permute.xlu0 %490
        %492 = vrot.lane.b32.xlu0 %v451, 1
        %v493 = vpop.permute.xlu0 %492
        %494 = vrot.lane.b32.xlu0 %v452, 1
        %v495 = vpop.permute.xlu0 %494
        %496 = vrot.lane.b32.xlu0 %v453, 1
        %v497 = vpop.permute.xlu0 %496
        %vm502 = vcmask 7168
        %v503 = vsel %vm502, %v467, %v479
        %v504 = vsel %vm502, %v469, %v481
        %v505 = vsel %vm502, %v471, %v483
        %v506 = vsel %vm502, %v473, %v485
        %vm507 = vcmask 15360
        %v508 = vsel %vm507, %v503, %v491
        %v509 = vsel %vm507, %v504, %v493
        %v510 = vsel %vm507, %v505, %v495
        %v511 = vsel %vm507, %v506, %v497
        %512 = vrot.lane.b32.xlu0 %v450, 2
        %v513 = vpop.permute.xlu0 %512
        %514 = vrot.lane.b32.xlu0 %v451, 2
        %v515 = vpop.permute.xlu0 %514
        %516 = vrot.lane.b32.xlu0 %v452, 2
        %v517 = vpop.permute.xlu0 %516
        %518 = vrot.lane.b32.xlu0 %v453, 2
        %v519 = vpop.permute.xlu0 %518
        %524 = vrot.lane.b32.xlu0 %v450, 4
        %v525 = vpop.permute.xlu0 %524
        %526 = vrot.lane.b32.xlu0 %v451, 4
        %v527 = vpop.permute.xlu0 %526
        %528 = vrot.lane.b32.xlu0 %v452, 4
        %v529 = vpop.permute.xlu0 %528
        %530 = vrot.lane.b32.xlu0 %v453, 4
        %v531 = vpop.permute.xlu0 %530
        %536 = vrot.lane.b32.xlu0 %v450, 6
        %v537 = vpop.permute.xlu0 %536
        %538 = vrot.lane.b32.xlu0 %v451, 6
        %v539 = vpop.permute.xlu0 %538
        %540 = vrot.lane.b32.xlu0 %v452, 6
        %v541 = vpop.permute.xlu0 %540
        %542 = vrot.lane.b32.xlu0 %v453, 6
        %v543 = vpop.permute.xlu0 %542
        %v548 = vsel %vm502, %v513, %v525
        %v549 = vsel %vm502, %v515, %v527
        %v550 = vsel %vm502, %v517, %v529
        %v551 = vsel %vm502, %v519, %v531
        %v552 = vsel %vm507, %v548, %v537
        %v553 = vsel %vm507, %v549, %v539
        %v554 = vsel %vm507, %v550, %v541
        %v555 = vsel %vm507, %v551, %v543
        %p556 = scmp.eq.s32.totalorder %s21, 0
        %s557 = scalar_select %p556, 1, 0
        %v558 = vstv %s557
        %vm559 = vcmp.eq.s32.totalorder %v558, 1
        %564 = vrot.lane.b32.xlu0 %v454, 3
        %v565 = vpop.permute.xlu0 %564
        %566 = vrot.lane.b32.xlu0 %v455, 3
        %v567 = vpop.permute.xlu0 %566
        %568 = vrot.lane.b32.xlu0 %v456, 3
        %v569 = vpop.permute.xlu0 %568
        %570 = vrot.lane.b32.xlu0 %v457, 3
        %v571 = vpop.permute.xlu0 %570
        %v576 = vsel %vm559, %v508, %v565
        %v577 = vsel %vm559, %v509, %v567
        %v578 = vsel %vm559, %v510, %v569
        %v579 = vsel %vm559, %v511, %v571
        %p580 = scmp.eq.s32.totalorder %s21, 3
        %s581 = scalar_select %p580, 1, 0
        %v582 = vstv %s581
        %vm583 = vcmp.eq.s32.totalorder %v582, 1
        %v584 = vsel %vm583, %v552, %v458
        %v585 = vsel %vm583, %v553, %v459
        %v586 = vsel %vm583, %v554, %v460
        %v587 = vsel %vm583, %v555, %v461
        %588 = vrot.lane.b32.xlu0 %v450, 3
        %v589 = vpop.permute.xlu0 %588
        %590 = vrot.lane.b32.xlu0 %v451, 3
        %v591 = vpop.permute.xlu0 %590
        %592 = vrot.lane.b32.xlu0 %v452, 3
        %v593 = vpop.permute.xlu0 %592
        %594 = vrot.lane.b32.xlu0 %v453, 3
        %v595 = vpop.permute.xlu0 %594
        %604 = vrot.lane.b32.xlu0 %v584, 3
        %v605 = vpop.permute.xlu0 %604
        %606 = vrot.lane.b32.xlu0 %v585, 3
        %v607 = vpop.permute.xlu0 %606
        %608 = vrot.lane.b32.xlu0 %v586, 3
        %v609 = vpop.permute.xlu0 %608
        %610 = vrot.lane.b32.xlu0 %v587, 3
        %v611 = vpop.permute.xlu0 %610
        %vm616 = vcmask 23552
        %v617 = vsel %vm616, %v576, %v589
        %v618 = vsel %vm616, %v577, %v591
        %v619 = vsel %vm616, %v578, %v593
        %v620 = vsel %vm616, %v579, %v595
        %v621 = vsel %vm616, %v589, %v605
        %v622 = vsel %vm616, %v591, %v607
        %v623 = vsel %vm616, %v593, %v609
        %v624 = vsel %vm616, %v595, %v611
        %vm625 = vcmp.ge.f32.partialorder %v617, 0.0
        %vm626 = vcmp.ge.f32.partialorder %v621, 0.0
        %vm627 = vcmp.ge.f32.partialorder %v618, 0.0
        %vm628 = vcmp.ge.f32.partialorder %v622, 0.0
        %vm629 = vcmp.ge.f32.partialorder %v619, 0.0
        %vm630 = vcmp.ge.f32.partialorder %v623, 0.0
        %vm631 = vcmp.ge.f32.partialorder %v620, 0.0
        %vm632 = vcmp.ge.f32.partialorder %v624, 0.0
        %v633 = vmul.f32 %v617, 0.2
        %v634 = vmul.f32 %v621, 0.2
        %v635 = vmul.f32 %v618, 0.2
        %v636 = vmul.f32 %v622, 0.2
        %v637 = vmul.f32 %v619, 0.2
        %v638 = vmul.f32 %v623, 0.2
        %v639 = vmul.f32 %v620, 0.2
        %v640 = vmul.f32 %v624, 0.2
        %v641 = vsel %vm625, %v617, %v633
        %v642 = vsel %vm626, %v621, %v634
        %v643 = vsel %vm627, %v618, %v635
        %v644 = vsel %vm628, %v622, %v636
        %v645 = vsel %vm629, %v619, %v637
        %v646 = vsel %vm630, %v623, %v638
        %v647 = vsel %vm631, %v620, %v639
        %v648 = vsel %vm632, %v624, %v640
        %657 = vrot.lane.b32.xlu0 %v641, 127
        %v658 = vpop.permute.xlu0 %657
        %659 = vrot.lane.b32.xlu0 %v642, 127
        %v660 = vpop.permute.xlu0 %659
        %661 = vrot.lane.b32.xlu0 %v643, 127
        %v662 = vpop.permute.xlu0 %661
        %663 = vrot.lane.b32.xlu0 %v644, 127
        %v664 = vpop.permute.xlu0 %663
        %665 = vrot.lane.b32.xlu0 %v645, 127
        %v666 = vpop.permute.xlu0 %665
        %667 = vrot.lane.b32.xlu0 %v646, 127
        %v668 = vpop.permute.xlu0 %667
        %669 = vrot.lane.b32.xlu0 %v647, 127
        %v670 = vpop.permute.xlu0 %669
        %671 = vrot.lane.b32.xlu0 %v648, 127
        %v672 = vpop.permute.xlu0 %671
        %vm673 = vcmask 1039360
        %v674 = vsel %vm673, %v658, %v660
        %v675 = vsel %vm673, %v662, %v664
        %v676 = vsel %vm673, %v666, %v668
        %v677 = vsel %vm673, %v670, %v672
        %682 = vrot.lane.b32.xlu0 %v641, 126
        %v683 = vpop.permute.xlu0 %682
        %684 = vrot.lane.b32.xlu0 %v642, 126
        %v685 = vpop.permute.xlu0 %684
        %686 = vrot.lane.b32.xlu0 %v643, 126
        %v687 = vpop.permute.xlu0 %686
        %688 = vrot.lane.b32.xlu0 %v644, 126
        %v689 = vpop.permute.xlu0 %688
        %690 = vrot.lane.b32.xlu0 %v645, 126
        %v691 = vpop.permute.xlu0 %690
        %692 = vrot.lane.b32.xlu0 %v646, 126
        %v693 = vpop.permute.xlu0 %692
        %694 = vrot.lane.b32.xlu0 %v647, 126
        %v695 = vpop.permute.xlu0 %694
        %696 = vrot.lane.b32.xlu0 %v648, 126
        %v697 = vpop.permute.xlu0 %696
        %vm698 = vcmask 1031168
        %v699 = vsel %vm698, %v683, %v685
        %v700 = vsel %vm698, %v687, %v689
        %v701 = vsel %vm698, %v691, %v693
        %v702 = vsel %vm698, %v695, %v697
        %707 = vrot.lane.b32.xlu0 %v641, 125
        %v708 = vpop.permute.xlu0 %707
        %709 = vrot.lane.b32.xlu0 %v642, 125
        %v710 = vpop.permute.xlu0 %709
        %711 = vrot.lane.b32.xlu0 %v643, 125
        %v712 = vpop.permute.xlu0 %711
        %713 = vrot.lane.b32.xlu0 %v644, 125
        %v714 = vpop.permute.xlu0 %713
        %715 = vrot.lane.b32.xlu0 %v645, 125
        %v716 = vpop.permute.xlu0 %715
        %717 = vrot.lane.b32.xlu0 %v646, 125
        %v718 = vpop.permute.xlu0 %717
        %719 = vrot.lane.b32.xlu0 %v647, 125
        %v720 = vpop.permute.xlu0 %719
        %721 = vrot.lane.b32.xlu0 %v648, 125
        %v722 = vpop.permute.xlu0 %721
        %vm723 = vcmask 1022976
        %v724 = vsel %vm723, %v708, %v710
        %v725 = vsel %vm723, %v712, %v714
        %v726 = vsel %vm723, %v716, %v718
        %v727 = vsel %vm723, %v720, %v722
        %732 = vrot.lane.b32.xlu0 %v641, 124
        %v733 = vpop.permute.xlu0 %732
        %734 = vrot.lane.b32.xlu0 %v642, 124
        %v735 = vpop.permute.xlu0 %734
        %736 = vrot.lane.b32.xlu0 %v643, 124
        %v737 = vpop.permute.xlu0 %736
        %738 = vrot.lane.b32.xlu0 %v644, 124
        %v739 = vpop.permute.xlu0 %738
        %740 = vrot.lane.b32.xlu0 %v645, 124
        %v741 = vpop.permute.xlu0 %740
        %742 = vrot.lane.b32.xlu0 %v646, 124
        %v743 = vpop.permute.xlu0 %742
        %744 = vrot.lane.b32.xlu0 %v647, 124
        %v745 = vpop.permute.xlu0 %744
        %746 = vrot.lane.b32.xlu0 %v648, 124
        %v747 = vpop.permute.xlu0 %746
        %vm748 = vcmask 1014784
        %v749 = vsel %vm748, %v733, %v735
        %v750 = vsel %vm748, %v737, %v739
        %v751 = vsel %vm748, %v741, %v743
        %v752 = vsel %vm748, %v745, %v747
        %757 = vrot.lane.b32.xlu0 %v641, 123
        %v758 = vpop.permute.xlu0 %757
        %759 = vrot.lane.b32.xlu0 %v642, 123
        %v760 = vpop.permute.xlu0 %759
        %761 = vrot.lane.b32.xlu0 %v643, 123
        %v762 = vpop.permute.xlu0 %761
        %763 = vrot.lane.b32.xlu0 %v644, 123
        %v764 = vpop.permute.xlu0 %763
        %765 = vrot.lane.b32.xlu0 %v645, 123
        %v766 = vpop.permute.xlu0 %765
        %767 = vrot.lane.b32.xlu0 %v646, 123
        %v768 = vpop.permute.xlu0 %767
        %769 = vrot.lane.b32.xlu0 %v647, 123
        %v770 = vpop.permute.xlu0 %769
        %771 = vrot.lane.b32.xlu0 %v648, 123
        %v772 = vpop.permute.xlu0 %771
        %vm773 = vcmask 1006592
        %v774 = vsel %vm773, %v758, %v760
        %v775 = vsel %vm773, %v762, %v764
        %v776 = vsel %vm773, %v766, %v768
        %v777 = vsel %vm773, %v770, %v772
        %782 = vrot.lane.b32.xlu0 %v641, 122
        %v783 = vpop.permute.xlu0 %782
        %784 = vrot.lane.b32.xlu0 %v642, 122
        %v785 = vpop.permute.xlu0 %784
        %786 = vrot.lane.b32.xlu0 %v643, 122
        %v787 = vpop.permute.xlu0 %786
        %788 = vrot.lane.b32.xlu0 %v644, 122
        %v789 = vpop.permute.xlu0 %788
        %790 = vrot.lane.b32.xlu0 %v645, 122
        %v791 = vpop.permute.xlu0 %790
        %792 = vrot.lane.b32.xlu0 %v646, 122
        %v793 = vpop.permute.xlu0 %792
        %794 = vrot.lane.b32.xlu0 %v647, 122
        %v795 = vpop.permute.xlu0 %794
        %796 = vrot.lane.b32.xlu0 %v648, 122
        %v797 = vpop.permute.xlu0 %796
        %vm798 = vcmask 998400
        %v799 = vsel %vm798, %v783, %v785
        %v800 = vsel %vm798, %v787, %v789
        %v801 = vsel %vm798, %v791, %v793
        %v802 = vsel %vm798, %v795, %v797
        %v807 = vld [vmem:[%s3] sm:$0xff]
        %v808 = vld [vmem:[%s3 + $0x8] sm:$0xff]
        %v809 = vld [vmem:[%s3 + $0x10] sm:$0xff]
        %v810 = vld [vmem:[%s3 + $0x18] sm:$0xff]
        %v811 = vld [vmem:[%s3 + $0x20] sm:$0xff]
        %v812 = vld [vmem:[%s3 + $0x28] sm:$0xff]
        %v813 = vld [vmem:[%s3 + $0x30] sm:$0xff]
        %v814 = vld [vmem:[%s3 + $0x38] sm:$0xff]
        %v815 = vld [vmem:[%s4] sm:$0xff]
        %v816 = vld [vmem:[%s4 + $0x8] sm:$0xff]
        %v817 = vld [vmem:[%s4 + $0x10] sm:$0xff]
        %v818 = vld [vmem:[%s4 + $0x18] sm:$0xff]
        %820 = vset.pattern.permute.xlu0 0
        %821 = vperm.xlu0 %820, %v815
        %v822 = vpop.permute.xlu0 %821
        %825 = vset.pattern.permute.xlu0 0
        %826 = vperm.xlu0 %825, %v816
        %v827 = vpop.permute.xlu0 %826
        %830 = vset.pattern.permute.xlu0 0
        %831 = vperm.xlu0 %830, %v817
        %v832 = vpop.permute.xlu0 %831
        %835 = vset.pattern.permute.xlu0 0
        %836 = vperm.xlu0 %835, %v818
        %v837 = vpop.permute.xlu0 %836
        %vm839 = vcmask 785408
        %v841 = vsel %vm839, %v808, 0
        %v844 = vsel %vm839, %v810, 0
        %v847 = vsel %vm839, %v812, 0
        %v850 = vsel %vm839, %v814, 0
        %852 = vmatprep.subr.mxu0 0.0
        %853 = vmatpush1.msra.mxu0 %v727
        %854 = vmatprep.subr.mxu0 0.0
        %855 = vmatpush1.msra.mxu0 %v726
        %856 = vmatprep.subr.mxu0 0.0
        %857 = vmatpush1.msra.mxu0 %v725
        %858 = vmatprep.subr.mxu0 0.0
        %859 = vmatpush1.msra.mxu0 %v724
        %860 = vmatprep.subr.mxu0 0.0
        %861 = vmatpush1.msra.mxu0 %v702
        %862 = vmatprep.subr.mxu0 0.0
        %863 = vmatpush1.msra.mxu0 %v701
        %864 = vmatprep.subr.mxu0 0.0
        %865 = vmatpush1.msra.mxu0 %v700
        %866 = vmatprep.subr.mxu0 0.0
        %867 = vmatpush1.msra.mxu0 %v699
        %868 = vmatprep.subr.mxu0 0.0
        %869 = vmatpush1.msra.mxu0 %v677
        %870 = vmatprep.subr.mxu0 0.0
        %871 = vmatpush1.msra.mxu0 %v676
        %872 = vmatprep.subr.mxu0 0.0
        %873 = vmatpush1.msra.mxu0 %v675
        %874 = vmatprep.subr.mxu0 0.0
        %875 = vmatpush1.msra.mxu0 %v674
        %876 = vmatprep.subr.mxu0 0.0
        %877 = vmatpush1.msra.mxu0 %v647
        %878 = vmatprep.subr.mxu0 0.0
        %879 = vmatpush1.msra.mxu0 %v645
        %880 = vmatprep.subr.mxu0 0.0
        %881 = vmatpush1.msra.mxu0 %v643
        %882 = vmatprep.subr.mxu0 0.0
        %883 = vmatpush1.msra.mxu0 %v641
        %884 = vmatprep.subr.mxu0 0.0
        %885 = vmatpush2.msra.mxu0 0.0
        %886 = vmatprep.subr.mxu0 0.0
        %887 = vmatpush2.msra.mxu0 0.0
        %888 = vmatprep.subr.mxu0 0.0
        %889 = vmatpush2.msra.mxu0 0.0
        %890 = vmatprep.subr.mxu0 0.0
        %891 = vmatpush2.msra.mxu0 0.0
        %892 = vmatprep.subr.mxu0 0.0
        %893 = vmatpush2.msra.mxu0 %v802
        %894 = vmatprep.subr.mxu0 0.0
        %895 = vmatpush2.msra.mxu0 %v801
        %896 = vmatprep.subr.mxu0 0.0
        %897 = vmatpush2.msra.mxu0 %v800
        %898 = vmatprep.subr.mxu0 0.0
        %899 = vmatpush2.msra.mxu0 %v799
        %900 = vmatprep.subr.mxu0 0.0
        %901 = vmatpush2.msra.mxu0 %v777
        %902 = vmatprep.subr.mxu0 0.0
        %903 = vmatpush2.msra.mxu0 %v776
        %904 = vmatprep.subr.mxu0 0.0
        %905 = vmatpush2.msra.mxu0 %v775
        %906 = vmatprep.subr.mxu0 0.0
        %907 = vmatpush2.msra.mxu0 %v774
        %908 = vmatprep.subr.mxu0 0.0
        %909 = vmatpush2.msra.mxu0 %v752
        %910 = vmatprep.subr.mxu0 0.0
        %911 = vmatpush2.msra.mxu0 %v751
        %912 = vmatprep.subr.mxu0 0.0
        %913 = vmatpush2.msra.mxu0 %v750
        %914 = vmatprep.subr.mxu0 0.0
        %915 = vmatpush2.msra.mxu0 %v749
        %916 = vmatprep.mubr.f32.mxu0 %v841
        %917 = vmatmul.mubr.f32.gmra.mxu0 %v807
        %v918 = vpop.f32.mrf.mxu0
        %v919 = vadd.f32 %v822, %v918
        %v920 = vpop.f32.mrf.mxu0
        %921 = vmatprep.mubr.f32.mxu0 %v844
        %922 = vmatmul.mubr.f32.gmra.mxu0 %v809
        %v923 = vpop.f32.mrf.mxu0
        %v924 = vadd.f32 %v827, %v923
        %v925 = vpop.f32.mrf.mxu0
        %926 = vmatprep.mubr.f32.mxu0 %v847
        %927 = vmatmul.mubr.f32.gmra.mxu0 %v811
        %v928 = vpop.f32.mrf.mxu0
        %v929 = vadd.f32 %v832, %v928
        %v930 = vpop.f32.mrf.mxu0
        %931 = vmatprep.mubr.f32.mxu0 %v850
        %932 = vmatmul.mubr.f32.gmra.mxu0 %v813
        %v933 = vpop.f32.mrf.mxu0
        %v934 = vadd.f32 %v837, %v933
        %v935 = vpop.f32.mrf.mxu0
        %936 = vdwg.mxu0
        %937 = vst [vmem:[%s443] sm:$0xff] %v919
        %938 = vst [vmem:[%s443 + $0x8] sm:$0xff] %v924
        %939 = vst [vmem:[%s443 + $0x10] sm:$0xff] %v929
        %940 = vst [vmem:[%s443 + $0x18] sm:$0xff] %v934
        %s941 = sand.u32 %s176, 1
        %s942 = sand.u32 %s176, 1
        %s943 = smul.addr %s942, 32
        %s944 = scalar_lea.vmem [#allocation5], %s943
        // Predicated region
        $region155: #{high_pass_forward.6} parent=141 // pred_check
          %p945 = pneg %p186
        $region156: #{high_pass_forward.6} parent=141 // pred_check_branch
          %947 = sbr.rel (%p945) target = $region158
        $region157: #{high_pass_forward.6} parent=141 // pred_region
          %s948 = smul.addr %s20, 16
          %s949 = sadd.s32 %s21, %s948
          %s950 = smul.addr %s949, 8
          %s951 = scalar_lea.vmem %s5, %s950
          // Predicated region
          $region159: #{high_pass_forward.6} parent=157 // pred_check
            _
          $region160: #{high_pass_forward.6} parent=157 // pred_check_branch
            %953 = sbr.rel (0) target = $region162
          $region161: #{high_pass_forward.6} parent=157 // pred_region
            // Predicated region
            $region163: #{high_pass_forward.6} parent=161 // pred_check
              _
            $region164: #{high_pass_forward.6} parent=161 // pred_check_branch
              %955 = sbr.rel (0) target = $region166
            $region165: #{high_pass_forward.6} parent=161 // pred_region
              // Predicated region
              $region178: #{high_pass_forward.6} parent=165 // pred_check
                _
              $region179: #{high_pass_forward.6} parent=165 // pred_check_branch
                %977 = sbr.rel (0) target = $region181
              $region180: #{high_pass_forward.6} parent=165 // pred_region
                loop: start=0, step=1, limit=1
                $region182: #{high_pass_forward.6} parent=180 // loop_pre_header
                  _
                $region183: #{high_pass_forward.6} parent=180 // loop_header
                  %s979 = sphi 0, %s983
                  %p980 = scmp.ge.s32.totalorder %s979, 1
                  %s984 = sphi %s944, %s944
                  %s985 = sphi %s951, %s951
                $region184: #{high_pass_forward.6} parent=180 // loop_header_branch
                  %982 = sbr.rel (%p980) target = $region188
                $region185: #{high_pass_forward.6} parent=180 // loop_body
                  %v986 = vld [vmem:[%s984] sm:$0xff]
                  %987 = vst [vmem:[%s985] sm:$0xff] %v986
                  %v988 = vld [vmem:[%s984 + $0x8] sm:$0xff]
                  %989 = vst [vmem:[%s985 + $0x20] sm:$0xff] %v988
                  %v990 = vld [vmem:[%s984 + $0x10] sm:$0xff]
                  %991 = vst [vmem:[%s985 + $0x40] sm:$0xff] %v990
                  %v992 = vld [vmem:[%s984 + $0x18] sm:$0xff]
                  %993 = vst [vmem:[%s985 + $0x60] sm:$0xff] %v992
                $region186: #{high_pass_forward.6} parent=180 // loop_footer
                  %s983 = sadd.s32 1, %s979
                $region187: #{high_pass_forward.6} parent=180 // loop_footer_branch
                  %978 = sbr.rel target = $region183
                $region188: #{high_pass_forward.6} parent=180 // loop_exit
                  _
              $region181: #{high_pass_forward.6} parent=165 // pred_fallthru
                _
              // Predicated region
              $region189: #{high_pass_forward.6} parent=165 // pred_check
                _
              $region190: #{high_pass_forward.6} parent=165 // pred_check_branch
                %995 = sbr.rel target = $region192
              $region191: #{high_pass_forward.6} parent=165 // pred_region
                _
              $region192: #{high_pass_forward.6} parent=165 // pred_fallthru
                _
            $region166: #{high_pass_forward.6} parent=161 // pred_fallthru
              _
            // Predicated region
            $region167: #{high_pass_forward.6} parent=161 // pred_check
              _
            $region168: #{high_pass_forward.6} parent=161 // pred_check_branch
              %957 = sbr.rel target = $region170
            $region169: #{high_pass_forward.6} parent=161 // pred_region
              %s959 = ssub.s32 256, 1
              loop: start=0, step=1, limit=1
              $region171: #{high_pass_forward.6} parent=169 // loop_pre_header
                _
              $region172: #{high_pass_forward.6} parent=169 // loop_header
                %s961 = sphi 0, %s965
                %p962 = scmp.ge.s32.totalorder %s961, 1
                %s966 = sphi %s944, %s944
                %s967 = sphi %s951, %s951
              $region173: #{high_pass_forward.6} parent=169 // loop_header_branch
                %964 = sbr.rel (%p962) target = $region177
              $region174: #{high_pass_forward.6} parent=169 // loop_body
                %v968 = vld [vmem:[%s966] sm:%s959]
                %969 = vst [vmem:[%s967] sm:%s959] %v968
                %v970 = vld [vmem:[%s966 + $0x8] sm:%s959]
                %971 = vst [vmem:[%s967 + $0x20] sm:%s959] %v970
                %v972 = vld [vmem:[%s966 + $0x10] sm:%s959]
                %973 = vst [vmem:[%s967 + $0x40] sm:%s959] %v972
                %v974 = vld [vmem:[%s966 + $0x18] sm:%s959]
                %975 = vst [vmem:[%s967 + $0x60] sm:%s959] %v974
              $region175: #{high_pass_forward.6} parent=169 // loop_footer
                %s965 = sadd.s32 1, %s961
              $region176: #{high_pass_forward.6} parent=169 // loop_footer_branch
                %960 = sbr.rel target = $region172
              $region177: #{high_pass_forward.6} parent=169 // loop_exit
                _
            $region170: #{high_pass_forward.6} parent=161 // pred_fallthru
              _
          $region162: #{high_pass_forward.6} parent=157 // pred_fallthru
            _
          %996 = vnop
        $region158: #{high_pass_forward.6} parent=141 // pred_fallthru
          _
      $region142: #{high_pass_forward.6} parent=5 // pred_fallthru
        _
      %p997 = scmp.le.s32.totalorder 2, %s11
      // Predicated region
      $region193: #{high_pass_forward.6} parent=5 // pred_check
        %p998 = pneg %p997
      $region194: #{high_pass_forward.6} parent=5 // pred_check_branch
        %1000 = sbr.rel (%p998) target = $region196
      $region195: #{high_pass_forward.6} parent=5 // pred_region
        %s1001 = ssub.s32 %s11, 2
        // Predicated region
        $region197: #{high_pass_forward.6} parent=195 // pred_check
          %p1002 = pneg %p192
        $region198: #{high_pass_forward.6} parent=195 // pred_check_branch
          %1004 = sbr.rel (%p1002) target = $region200
        $region199: #{high_pass_forward.6} parent=195 // pred_region
          %s1005 = sand.u32 %s177, 1
          %s1006 = sand.u32 %s177, 1
          %s1007 = smul.addr %s1006, 32
          %s1008 = scalar_lea.vmem [#allocation5], %s1007
        $region200: #{high_pass_forward.6} parent=195 // pred_fallthru
          _
      $region196: #{high_pass_forward.6} parent=5 // pred_fallthru
        _
    $region6: #{high_pass_forward.6} parent=1 // loop_footer
      %s15 = sadd.s32 1, %s11
    $region7: #{high_pass_forward.6} parent=1 // loop_footer_branch
      %10 = sbr.rel target = $region3
    $region8: #{high_pass_forward.6} parent=1 // loop_exit
      _

// kernel: high_pass_forward.8
$region0: #{high_pass_forward.8}
  #allocation0 [shape = 'u32[]', space=smem, size = 0x4, offset = 0x4, fixed_abs, tag = 'smem constant byte address 0x4 - core index']
  #allocation1 [shape = 'u32[144,128]{1,0:T(1,128)}', space=vmem, size = 0x12000, scoped, tag = 'internal scratch']
  %s0 = inlined_call_operand.vmem [shape: f32[2,32,512], index: 0, kind: input, shape index: {}, may-alias: {0,1,2}]
  %s1 = inlined_call_operand.vmem [shape: f32[2,32,512], index: 1, kind: input, shape index: {}, may-alias: {0,1,2}]
  %s2 = inlined_call_operand.vmem [shape: f32[2,32,512], index: 2, kind: input, shape index: {}, may-alias: {0,1,2}]
  %s3 = inlined_call_operand.vmem [shape: f32[32,96], index: 3, kind: input, shape index: {}]
  %s4 = inlined_call_operand.vmem [shape: f32[32,1], index: 4, kind: input, shape index: {}]
  %s5 = inlined_call_operand.vmem [shape: f32[32,32], index: 5, kind: input, shape index: {}]
  %s6 = inlined_call_operand.vmem [shape: f32[32,1], index: 6, kind: input, shape index: {}]
  %s7 = inlined_call_operand.vmem [shape: f32[32,32], index: 7, kind: input, shape index: {}]
  %s8 = inlined_call_operand.vmem [shape: f32[32,1], index: 8, kind: input, shape index: {}]
  %s9 = inlined_call_operand.vmem [shape: f32[2,32,512], index: 9, kind: output, shape index: {}]
  %s10 = sld [smem:[#allocation0]]
  $region217: #{high_pass_forward.8} parent=0
    _
  %s12 = ssub.s32 1, %s10
  %s13 = scalar_select 0, %s12, %s10
  $region1: #{high_pass_forward.8} parent=0
    #allocation2 [shape = 'u8[32768]{0}', space=vmem, size = 0x8000, scoped, tag = 'input window, operand 0']
    #allocation3 [shape = 'u8[32768]{0}', space=vmem, size = 0x8000, scoped, tag = 'input window, operand 1']
    #allocation4 [shape = 'u8[32768]{0}', space=vmem, size = 0x8000, scoped, tag = 'input window, operand 2']
    #allocation5 [shape = 'u8[32768]{0}', space=vmem, size = 0x8000, scoped, tag = 'output window, operand 0']
    loop: start=0, step=1, limit=10
    $region2: #{high_pass_forward.8} parent=1 // loop_pre_header
      _
    $region3: #{high_pass_forward.8} parent=1 // loop_header
      %s15 = sphi 0, %s19
      %p16 = scmp.ge.s32.totalorder %s15, 10
      %s22 = sphi 0, %s34
      %s23 = sphi 0, %s30
      %s24 = sphi 0, %s22
      %s25 = sphi 0, %s23
      %s26 = sphi 0, %s24
      %s27 = sphi 0, %s25
      %s39 = sphi 0, %s41
      %s42 = sphi 0, %s39
      %s43 = sphi 0, %s42
      %s59 = sphi 0, %s43
      %s73 = sphi 0, %s75
      %s76 = sphi 0, %s73
      %s77 = sphi 0, %s76
      %s93 = sphi 0, %s77
      %s107 = sphi 0, %s109
      %s110 = sphi 0, %s107
      %s111 = sphi 0, %s110
      %s127 = sphi 0, %s111
      %s131 = sphi 0, %s131
      %s133 = sphi 0, %s131
      %s134 = sphi 0, %s133
      %s148 = sphi 0, %s134
      %s152 = sphi 0, %s152
      %s154 = sphi 0, %s152
      %s155 = sphi 0, %s154
      %s169 = sphi 0, %s155
      %s173 = sphi 0, %s173
      %s175 = sphi 0, %s173
      %s176 = sphi 0, %s175
      %s190 = sphi 0, %s176
      %s194 = sphi 0, %s194
      %s196 = sphi 0, %s194
      %s197 = sphi 0, %s196
      %s211 = sphi 0, %s197
      %s215 = sphi 0, %s215
      %s217 = sphi 0, %s215
      %s218 = sphi 0, %s217
      %s232 = sphi 0, %s218
      %s236 = sphi 0, %s236
      %s238 = sphi 0, %s236
      %s239 = sphi 0, %s238
      %s253 = sphi 0, %s239
      %s261 = sphi 0, %s263
      %s264 = sphi 0, %s261
      %s265 = sphi 0, %s264
      %s281 = sphi 0, %s265
    $region4: #{high_pass_forward.8} parent=1 // loop_header_branch
      %18 = sbr.rel (%p16) target = $region8
    $region5: #{high_pass_forward.8} parent=1 // loop_body
      %s20 = ssub.s32 %s15, 1
      %s21 = ssub.s32 %s15, 2
      %s28 = sadd.s32 1, %s23
      %p29 = scmp.ge.s32.totalorder %s28, 4
      %s30 = scalar_select %p29, 0, %s28
      %s31 = sadd.s32 1, %s22
      %s32 = scalar_select %p29, %s31, %s22
      %p33 = scmp.ge.s32.totalorder %s32, 2
      %s34 = scalar_select %p33, 0, %s32
      %s35 = ssub.s32 %s22, %s34
      %s36 = ssub.s32 %s23, %s30
      %s37 = sor.u32 %s35, %s36
      %p38 = scmp.eq.s32.totalorder %s37, 0
      %s40 = sadd.s32 %s39, 1
      %s41 = scalar_select %p38, %s39, %s40
      %p44 = pneg %p38
      %p45 = scmp.eq.s32.totalorder %s15, 7
      %p46 = por %p44, %p45
      %p47 = scmp.ne.s32.totalorder %s39, %s42
      %p48 = scmp.eq.s32.totalorder %s15, 0
      %p49 = por %p47, %p48
      %p50 = scmp.ne.s32.totalorder %s39, %s42
      %p51 = scmp.eq.s32.totalorder %s20, 7
      %p52 = por %p50, %p51
      %p53 = scmp.ne.s32.totalorder %s42, %s43
      %p54 = scmp.eq.s32.totalorder %s20, 0
      %p55 = por %p53, %p54
      %p56 = scmp.ne.s32.totalorder %s42, %s43
      %p57 = scmp.eq.s32.totalorder %s21, 7
      %p58 = por %p56, %p57
      %p60 = scmp.ne.s32.totalorder %s43, %s59
      %p61 = scmp.eq.s32.totalorder %s21, 0
      %p62 = por %p60, %p61
      %s63 = ssub.s32 %s23, 1
      %p64 = scmp.gt.s32.totalorder %s63, 0
      %s65 = scalar_select %p64, %s63, 0
      %s66 = ssub.s32 %s30, 1
      %p67 = scmp.gt.s32.totalorder %s66, 0
      %s68 = scalar_select %p67, %s66, 0
      %s69 = ssub.s32 %s22, %s34
      %s70 = ssub.s32 %s65, %s68
      %s71 = sor.u32 %s69, %s70
      %p72 = scmp.eq.s32.totalorder %s71, 0
      %s74 = sadd.s32 %s73, 1
      %s75 = scalar_select %p72, %s73, %s74
      %p78 = pneg %p72
      %p79 = scmp.eq.s32.totalorder %s15, 7
      %p80 = por %p78, %p79
      %p81 = scmp.ne.s32.totalorder %s73, %s76
      %p82 = scmp.eq.s32.totalorder %s15, 0
      %p83 = por %p81, %p82
      %p84 = scmp.ne.s32.totalorder %s73, %s76
      %p85 = scmp.eq.s32.totalorder %s20, 7
      %p86 = por %p84, %p85
      %p87 = scmp.ne.s32.totalorder %s76, %s77
      %p88 = scmp.eq.s32.totalorder %s20, 0
      %p89 = por %p87, %p88
      %p90 = scmp.ne.s32.totalorder %s76, %s77
      %p91 = scmp.eq.s32.totalorder %s21, 7
      %p92 = por %p90, %p91
      %p94 = scmp.ne.s32.totalorder %s77, %s93
      %p95 = scmp.eq.s32.totalorder %s21, 0
      %p96 = por %p94, %p95
      %s97 = sadd.s32 %s23, 1
      %p98 = scmp.lt.s32.totalorder %s97, 3
      %s99 = scalar_select %p98, %s97, 3
      %s100 = sadd.s32 %s30, 1
      %p101 = scmp.lt.s32.totalorder %s100, 3
      %s102 = scalar_select %p101, %s100, 3
      %s103 = ssub.s32 %s22, %s34
      %s104 = ssub.s32 %s99, %s102
      %s105 = sor.u32 %s103, %s104
      %p106 = scmp.eq.s32.totalorder %s105, 0
      %s108 = sadd.s32 %s107, 1
      %s109 = scalar_select %p106, %s107, %s108
      %p112 = pneg %p106
      %p113 = scmp.eq.s32.totalorder %s15, 7
      %p114 = por %p112, %p113
      %p115 = scmp.ne.s32.totalorder %s107, %s110
      %p116 = scmp.eq.s32.totalorder %s15, 0
      %p117 = por %p115, %p116
      %p118 = scmp.ne.s32.totalorder %s107, %s110
      %p119 = scmp.eq.s32.totalorder %s20, 7
      %p120 = por %p118, %p119
      %p121 = scmp.ne.s32.totalorder %s110, %s111
      %p122 = scmp.eq.s32.totalorder %s20, 0
      %p123 = por %p121, %p122
      %p124 = scmp.ne.s32.totalorder %s110, %s111
      %p125 = scmp.eq.s32.totalorder %s21, 7
      %p126 = por %p124, %p125
      %p128 = scmp.ne.s32.totalorder %s111, %s127
      %p129 = scmp.eq.s32.totalorder %s21, 0
      %p130 = por %p128, %p129
      %s132 = sadd.s32 %s131, 1
      %p135 = scmp.eq.s32.totalorder %s15, 7
      %p136 = scmp.ne.s32.totalorder %s131, %s133
      %p137 = scmp.eq.s32.totalorder %s15, 0
      %p138 = por %p136, %p137
      %p139 = scmp.ne.s32.totalorder %s131, %s133
      %p140 = scmp.eq.s32.totalorder %s20, 7
      %p141 = por %p139, %p140
      %p142 = scmp.ne.s32.totalorder %s133, %s134
      %p143 = scmp.eq.s32.totalorder %s20, 0
      %p144 = por %p142, %p143
      %p145 = scmp.ne.s32.totalorder %s133, %s134
      %p146 = scmp.eq.s32.totalorder %s21, 7
      %p147 = por %p145, %p146
      %p149 = scmp.ne.s32.totalorder %s134, %s148
      %p150 = scmp.eq.s32.totalorder %s21, 0
      %p151 = por %p149, %p150
      %s153 = sadd.s32 %s152, 1
      %p156 = scmp.eq.s32.totalorder %s15, 7
      %p157 = scmp.ne.s32.totalorder %s152, %s154
      %p158 = scmp.eq.s32.totalorder %s15, 0
      %p159 = por %p157, %p158
      %p160 = scmp.ne.s32.totalorder %s152, %s154
      %p161 = scmp.eq.s32.totalorder %s20, 7
      %p162 = por %p160, %p161
      %p163 = scmp.ne.s32.totalorder %s154, %s155
      %p164 = scmp.eq.s32.totalorder %s20, 0
      %p165 = por %p163, %p164
      %p166 = scmp.ne.s32.totalorder %s154, %s155
      %p167 = scmp.eq.s32.totalorder %s21, 7
      %p168 = por %p166, %p167
      %p170 = scmp.ne.s32.totalorder %s155, %s169
      %p171 = scmp.eq.s32.totalorder %s21, 0
      %p172 = por %p170, %p171
      %s174 = sadd.s32 %s173, 1
      %p177 = scmp.eq.s32.totalorder %s15, 7
      %p178 = scmp.ne.s32.totalorder %s173, %s175
      %p179 = scmp.eq.s32.totalorder %s15, 0
      %p180 = por %p178, %p179
      %p181 = scmp.ne.s32.totalorder %s173, %s175
      %p182 = scmp.eq.s32.totalorder %s20, 7
      %p183 = por %p181, %p182
      %p184 = scmp.ne.s32.totalorder %s175, %s176
      %p185 = scmp.eq.s32.totalorder %s20, 0
      %p186 = por %p184, %p185
      %p187 = scmp.ne.s32.totalorder %s175, %s176
      %p188 = scmp.eq.s32.totalorder %s21, 7
      %p189 = por %p187, %p188
      %p191 = scmp.ne.s32.totalorder %s176, %s190
      %p192 = scmp.eq.s32.totalorder %s21, 0
      %p193 = por %p191, %p192
      %s195 = sadd.s32 %s194, 1
      %p198 = scmp.eq.s32.totalorder %s15, 7
      %p199 = scmp.ne.s32.totalorder %s194, %s196
      %p200 = scmp.eq.s32.totalorder %s15, 0
      %p201 = por %p199, %p200
      %p202 = scmp.ne.s32.totalorder %s194, %s196
      %p203 = scmp.eq.s32.totalorder %s20, 7
      %p204 = por %p202, %p203
      %p205 = scmp.ne.s32.totalorder %s196, %s197
      %p206 = scmp.eq.s32.totalorder %s20, 0
      %p207 = por %p205, %p206
      %p208 = scmp.ne.s32.totalorder %s196, %s197
      %p209 = scmp.eq.s32.totalorder %s21, 7
      %p210 = por %p208, %p209
      %p212 = scmp.ne.s32.totalorder %s197, %s211
      %p213 = scmp.eq.s32.totalorder %s21, 0
      %p214 = por %p212, %p213
      %s216 = sadd.s32 %s215, 1
      %p219 = scmp.eq.s32.totalorder %s15, 7
      %p220 = scmp.ne.s32.totalorder %s215, %s217
      %p221 = scmp.eq.s32.totalorder %s15, 0
      %p222 = por %p220, %p221
      %p223 = scmp.ne.s32.totalorder %s215, %s217
      %p224 = scmp.eq.s32.totalorder %s20, 7
      %p225 = por %p223, %p224
      %p226 = scmp.ne.s32.totalorder %s217, %s218
      %p227 = scmp.eq.s32.totalorder %s20, 0
      %p228 = por %p226, %p227
      %p229 = scmp.ne.s32.totalorder %s217, %s218
      %p230 = scmp.eq.s32.totalorder %s21, 7
      %p231 = por %p229, %p230
      %p233 = scmp.ne.s32.totalorder %s218, %s232
      %p234 = scmp.eq.s32.totalorder %s21, 0
      %p235 = por %p233, %p234
      %s237 = sadd.s32 %s236, 1
      %p240 = scmp.eq.s32.totalorder %s15, 7
      %p241 = scmp.ne.s32.totalorder %s236, %s238
      %p242 = scmp.eq.s32.totalorder %s15, 0
      %p243 = por %p241, %p242
      %p244 = scmp.ne.s32.totalorder %s236, %s238
      %p245 = scmp.eq.s32.totalorder %s20, 7
      %p246 = por %p244, %p245
      %p247 = scmp.ne.s32.totalorder %s238, %s239
      %p248 = scmp.eq.s32.totalorder %s20, 0
      %p249 = por %p247, %p248
      %p250 = scmp.ne.s32.totalorder %s238, %s239
      %p251 = scmp.eq.s32.totalorder %s21, 7
      %p252 = por %p250, %p251
      %p254 = scmp.ne.s32.totalorder %s239, %s253
      %p255 = scmp.eq.s32.totalorder %s21, 0
      %p256 = por %p254, %p255
      %s257 = ssub.s32 %s22, %s34
      %s258 = ssub.s32 %s23, %s30
      %s259 = sor.u32 %s257, %s258
      %p260 = scmp.eq.s32.totalorder %s259, 0
      %s262 = sadd.s32 %s261, 1
      %s263 = scalar_select %p260, %s261, %s262
      %p266 = pneg %p260
      %p267 = scmp.eq.s32.totalorder %s15, 7
      %p268 = por %p266, %p267
      %p269 = scmp.ne.s32.totalorder %s261, %s264
      %p270 = scmp.eq.s32.totalorder %s15, 0
      %p271 = por %p269, %p270
      %p272 = scmp.ne.s32.totalorder %s261, %s264
      %p273 = scmp.eq.s32.totalorder %s20, 7
      %p274 = por %p272, %p273
      %p275 = scmp.ne.s32.totalorder %s264, %s265
      %p276 = scmp.eq.s32.totalorder %s20, 0
      %p277 = por %p275, %p276
      %p278 = scmp.ne.s32.totalorder %s264, %s265
      %p279 = scmp.eq.s32.totalorder %s21, 7
      %p280 = por %p278, %p279
      %p282 = scmp.ne.s32.totalorder %s265, %s281
      %p283 = scmp.eq.s32.totalorder %s21, 0
      %p284 = por %p282, %p283
      %p285 = scmp.le.s32.totalorder 1, %s15
      %p286 = scmp.lt.s32.totalorder %s15, 9
      %p287 = pnand %p285, %p286
      %p288 = pneg %p287
      // Predicated region
      $region9: #{high_pass_forward.8} parent=5 // pred_check
        _
      $region10: #{high_pass_forward.8} parent=5 // pred_check_branch
        %290 = sbr.rel (%p287) target = $region12
      $region11: #{high_pass_forward.8} parent=5 // pred_region
        %s291 = ssub.s32 %s15, 1
        // Predicated region
        $region13: #{high_pass_forward.8} parent=11 // pred_check
          %p292 = pneg %p144
        $region14: #{high_pass_forward.8} parent=11 // pred_check_branch
          %294 = sbr.rel (%p292) target = $region16
        $region15: #{high_pass_forward.8} parent=11 // pred_region
          _
        $region16: #{high_pass_forward.8} parent=11 // pred_fallthru
          _
        // Predicated region
        $region17: #{high_pass_forward.8} parent=11 // pred_check
          %p295 = pneg %p165
        $region18: #{high_pass_forward.8} parent=11 // pred_check_branch
          %297 = sbr.rel (%p295) target = $region20
        $region19: #{high_pass_forward.8} parent=11 // pred_region
          _
        $region20: #{high_pass_forward.8} parent=11 // pred_fallthru
          _
        // Predicated region
        $region21: #{high_pass_forward.8} parent=11 // pred_check
          %p298 = pneg %p186
        $region22: #{high_pass_forward.8} parent=11 // pred_check_branch
          %300 = sbr.rel (%p298) target = $region24
        $region23: #{high_pass_forward.8} parent=11 // pred_region
          _
        $region24: #{high_pass_forward.8} parent=11 // pred_fallthru
          _
        // Predicated region
        $region25: #{high_pass_forward.8} parent=11 // pred_check
          %p301 = pneg %p207
        $region26: #{high_pass_forward.8} parent=11 // pred_check_branch
          %303 = sbr.rel (%p301) target = $region28
        $region27: #{high_pass_forward.8} parent=11 // pred_region
          _
        $region28: #{high_pass_forward.8} parent=11 // pred_fallthru
          _
        // Predicated region
        $region29: #{high_pass_forward.8} parent=11 // pred_check
          %p304 = pneg %p228
        $region30: #{high_pass_forward.8} parent=11 // pred_check_branch
          %306 = sbr.rel (%p304) target = $region32
        $region31: #{high_pass_forward.8} parent=11 // pred_region
          _
        $region32: #{high_pass_forward.8} parent=11 // pred_fallthru
          _
        // Predicated region
        $region33: #{high_pass_forward.8} parent=11 // pred_check
          %p307 = pneg %p249
        $region34: #{high_pass_forward.8} parent=11 // pred_check_branch
          %309 = sbr.rel (%p307) target = $region36
        $region35: #{high_pass_forward.8} parent=11 // pred_region
          _
        $region36: #{high_pass_forward.8} parent=11 // pred_fallthru
          _
      $region12: #{high_pass_forward.8} parent=5 // pred_fallthru
        _
      %p310 = scmp.lt.s32.totalorder %s15, 8
      // Predicated region
      $region37: #{high_pass_forward.8} parent=5 // pred_check
        %p311 = pneg %p310
      $region38: #{high_pass_forward.8} parent=5 // pred_check_branch
        %313 = sbr.rel (%p311) target = $region40
      $region39: #{high_pass_forward.8} parent=5 // pred_region
        // Predicated region
        $region41: #{high_pass_forward.8} parent=39 // pred_check
          %p314 = pneg %p49
        $region42: #{high_pass_forward.8} parent=39 // pred_check_branch
          %316 = sbr.rel (%p314) target = $region44
        $region43: #{high_pass_forward.8} parent=39 // pred_region
          %s317 = sand.u32 %s39, 1
          %s318 = sand.u32 %s39, 1
          %s319 = smul.addr %s318, 32
          %s320 = scalar_lea.vmem [#allocation2], %s319
          %s321 = smul.addr %s22, 16
          %s322 = sadd.s32 %s23, %s321
          %s323 = smul.addr %s322, 8
          %s324 = scalar_lea.vmem %s0, %s323
          // Predicated region
          $region45: #{high_pass_forward.8} parent=43 // pred_check
            _
          $region46: #{high_pass_forward.8} parent=43 // pred_check_branch
            %326 = sbr.rel (0) target = $region48
          $region47: #{high_pass_forward.8} parent=43 // pred_region
            // Predicated region
            $region49: #{high_pass_forward.8} parent=47 // pred_check
              _
            $region50: #{high_pass_forward.8} parent=47 // pred_check_branch
              %328 = sbr.rel (0) target = $region52
            $region51: #{high_pass_forward.8} parent=47 // pred_region
              // Predicated region
              $region64: #{high_pass_forward.8} parent=51 // pred_check
                _
              $region65: #{high_pass_forward.8} parent=51 // pred_check_branch
                %350 = sbr.rel (0) target = $region67
              $region66: #{high_pass_forward.8} parent=51 // pred_region
                loop: start=0, step=1, limit=1
                $region68: #{high_pass_forward.8} parent=66 // loop_pre_header
                  _
                $region69: #{high_pass_forward.8} parent=66 // loop_header
                  %s352 = sphi 0, %s356
                  %p353 = scmp.ge.s32.totalorder %s352, 1
                  %s357 = sphi %s324, %s324
                  %s358 = sphi %s320, %s320
                $region70: #{high_pass_forward.8} parent=66 // loop_header_branch
                  %355 = sbr.rel (%p353) target = $region74
                $region71: #{high_pass_forward.8} parent=66 // loop_body
                  %v359 = vld [vmem:[%s357] sm:$0xff]
                  %360 = vst [vmem:[%s358] sm:$0xff] %v359
                  %v361 = vld [vmem:[%s357 + $0x20] sm:$0xff]
                  %362 = vst [vmem:[%s358 + $0x8] sm:$0xff] %v361
                  %v363 = vld [vmem:[%s357 + $0x40] sm:$0xff]
                  %364 = vst [vmem:[%s358 + $0x10] sm:$0xff] %v363
                  %v365 = vld [vmem:[%s357 + $0x60] sm:$0xff]
                  %366 = vst [vmem:[%s358 + $0x18] sm:$0xff] %v365
                $region72: #{high_pass_forward.8} parent=66 // loop_footer
                  %s356 = sadd.s32 1, %s352
                $region73: #{high_pass_forward.8} parent=66 // loop_footer_branch
                  %351 = sbr.rel target = $region69
                $region74: #{high_pass_forward.8} parent=66 // loop_exit
                  _
              $region67: #{high_pass_forward.8} parent=51 // pred_fallthru
                _
              // Predicated region
              $region75: #{high_pass_forward.8} parent=51 // pred_check
                _
              $region76: #{high_pass_forward.8} parent=51 // pred_check_branch
                %368 = sbr.rel target = $region78
              $region77: #{high_pass_forward.8} parent=51 // pred_region
                _
              $region78: #{high_pass_forward.8} parent=51 // pred_fallthru
                _
            $region52: #{high_pass_forward.8} parent=47 // pred_fallthru
              _
            // Predicated region
            $region53: #{high_pass_forward.8} parent=47 // pred_check
              _
            $region54: #{high_pass_forward.8} parent=47 // pred_check_branch
              %330 = sbr.rel target = $region56
            $region55: #{high_pass_forward.8} parent=47 // pred_region
              %s332 = ssub.s32 256, 1
              loop: start=0, step=1, limit=1
              $region57: #{high_pass_forward.8} parent=55 // loop_pre_header
                _
              $region58: #{high_pass_forward.8} parent=55 // loop_header
                %s334 = sphi 0, %s338
                %p335 = scmp.ge.s32.totalorder %s334, 1
                %s339 = sphi %s324, %s324
                %s340 = sphi %s320, %s320
              $region59: #{high_pass_forward.8} parent=55 // loop_header_branch
                %337 = sbr.rel (%p335) target = $region63
              $region60: #{high_pass_forward.8} parent=55 // loop_body
                %v341 = vld [vmem:[%s339] sm:%s332]
                %342 = vst [vmem:[%s340] sm:%s332] %v341
                %v343 = vld [vmem:[%s339 + $0x20] sm:%s332]
                %344 = vst [vmem:[%s340 + $0x8] sm:%s332] %v343
                %v345 = vld [vmem:[%s339 + $0x40] sm:%s332]
                %346 = vst [vmem:[%s340 + $0x10] sm:%s332] %v345
                %v347 = vld [vmem:[%s339 + $0x60] sm:%s332]
                %348 = vst [vmem:[%s340 + $0x18] sm:%s332] %v347
              $region61: #{high_pass_forward.8} parent=55 // loop_footer
                %s338 = sadd.s32 1, %s334
              $region62: #{high_pass_forward.8} parent=55 // loop_footer_branch
                %333 = sbr.rel target = $region58
              $region63: #{high_pass_forward.8} parent=55 // loop_exit
                _
            $region56: #{high_pass_forward.8} parent=47 // pred_fallthru
              _
          $region48: #{high_pass_forward.8} parent=43 // pred_fallthru
            _
          %369 = vnop
        $region44: #{high_pass_forward.8} parent=39 // pred_fallthru
          _
        // Predicated region
        $region79: #{high_pass_forward.8} parent=39 // pred_check
          %p370 = pneg %p83
        $region80: #{high_pass_forward.8} parent=39 // pred_check_branch
          %372 = sbr.rel (%p370) target = $region82
        $region81: #{high_pass_forward.8} parent=39 // pred_region
          %s373 = sand.u32 %s73, 1
          %s374 = sand.u32 %s73, 1
          %s375 = smul.addr %s374, 32
          %s376 = scalar_lea.vmem [#allocation3], %s375
          %s377 = ssub.s32 %s23, 1
          %p378 = scmp.gt.s32.totalorder %s377, 0
          %s379 = scalar_select %p378, %s377, 0
          %s380 = smul.addr %s22, 16
          %s381 = sadd.s32 %s379, %s380
          %s382 = smul.addr %s381, 8
          %s383 = scalar_lea.vmem %s1, %s382
          // Predicated region
          $region83: #{high_pass_forward.8} parent=81 // pred_check
            _
          $region84: #{high_pass_forward.8} parent=81 // pred_check_branch
            %385 = sbr.rel (0) target = $region86
          $region85: #{high_pass_forward.8} parent=81 // pred_region
            // Predicated region
            $region87: #{high_pass_forward.8} parent=85 // pred_check
              _
            $region88: #{high_pass_forward.8} parent=85 // pred_check_branch
              %387 = sbr.rel (0) target = $region90
            $region89: #{high_pass_forward.8} parent=85 // pred_region
              // Predicated region
              $region102: #{high_pass_forward.8} parent=89 // pred_check
                _
              $region103: #{high_pass_forward.8} parent=89 // pred_check_branch
                %409 = sbr.rel (0) target = $region105
              $region104: #{high_pass_forward.8} parent=89 // pred_region
                loop: start=0, step=1, limit=1
                $region106: #{high_pass_forward.8} parent=104 // loop_pre_header
                  _
                $region107: #{high_pass_forward.8} parent=104 // loop_header
                  %s411 = sphi 0, %s415
                  %p412 = scmp.ge.s32.totalorder %s411, 1
                  %s416 = sphi %s383, %s383
                  %s417 = sphi %s376, %s376
                $region108: #{high_pass_forward.8} parent=104 // loop_header_branch
                  %414 = sbr.rel (%p412) target = $region112
                $region109: #{high_pass_forward.8} parent=104 // loop_body
                  %v418 = vld [vmem:[%s416] sm:$0xff]
                  %419 = vst [vmem:[%s417] sm:$0xff] %v418
                  %v420 = vld [vmem:[%s416 + $0x20] sm:$0xff]
                  %421 = vst [vmem:[%s417 + $0x8] sm:$0xff] %v420
                  %v422 = vld [vmem:[%s416 + $0x40] sm:$0xff]
                  %423 = vst [vmem:[%s417 + $0x10] sm:$0xff] %v422
                  %v424 = vld [vmem:[%s416 + $0x60] sm:$0xff]
                  %425 = vst [vmem:[%s417 + $0x18] sm:$0xff] %v424
                $region110: #{high_pass_forward.8} parent=104 // loop_footer
                  %s415 = sadd.s32 1, %s411
                $region111: #{high_pass_forward.8} parent=104 // loop_footer_branch
                  %410 = sbr.rel target = $region107
                $region112: #{high_pass_forward.8} parent=104 // loop_exit
                  _
              $region105: #{high_pass_forward.8} parent=89 // pred_fallthru
                _
              // Predicated region
              $region113: #{high_pass_forward.8} parent=89 // pred_check
                _
              $region114: #{high_pass_forward.8} parent=89 // pred_check_branch
                %427 = sbr.rel target = $region116
              $region115: #{high_pass_forward.8} parent=89 // pred_region
                _
              $region116: #{high_pass_forward.8} parent=89 // pred_fallthru
                _
            $region90: #{high_pass_forward.8} parent=85 // pred_fallthru
              _
            // Predicated region
            $region91: #{high_pass_forward.8} parent=85 // pred_check
              _
            $region92: #{high_pass_forward.8} parent=85 // pred_check_branch
              %389 = sbr.rel target = $region94
            $region93: #{high_pass_forward.8} parent=85 // pred_region
              %s391 = ssub.s32 256, 1
              loop: start=0, step=1, limit=1
              $region95: #{high_pass_forward.8} parent=93 // loop_pre_header
                _
              $region96: #{high_pass_forward.8} parent=93 // loop_header
                %s393 = sphi 0, %s397
                %p394 = scmp.ge.s32.totalorder %s393, 1
                %s398 = sphi %s383, %s383
                %s399 = sphi %s376, %s376
              $region97: #{high_pass_forward.8} parent=93 // loop_header_branch
                %396 = sbr.rel (%p394) target = $region101
              $region98: #{high_pass_forward.8} parent=93 // loop_body
                %v400 = vld [vmem:[%s398] sm:%s391]
                %401 = vst [vmem:[%s399] sm:%s391] %v400
                %v402 = vld [vmem:[%s398 + $0x20] sm:%s391]
                %403 = vst [vmem:[%s399 + $0x8] sm:%s391] %v402
                %v404 = vld [vmem:[%s398 + $0x40] sm:%s391]
                %405 = vst [vmem:[%s399 + $0x10] sm:%s391] %v404
                %v406 = vld [vmem:[%s398 + $0x60] sm:%s391]
                %407 = vst [vmem:[%s399 + $0x18] sm:%s391] %v406
              $region99: #{high_pass_forward.8} parent=93 // loop_footer
                %s397 = sadd.s32 1, %s393
              $region100: #{high_pass_forward.8} parent=93 // loop_footer_branch
                %392 = sbr.rel target = $region96
              $region101: #{high_pass_forward.8} parent=93 // loop_exit
                _
            $region94: #{high_pass_forward.8} parent=85 // pred_fallthru
              _
          $region86: #{high_pass_forward.8} parent=81 // pred_fallthru
            _
          %428 = vnop
        $region82: #{high_pass_forward.8} parent=39 // pred_fallthru
          _
        // Predicated region
        $region117: #{high_pass_forward.8} parent=39 // pred_check
          %p429 = pneg %p117
        $region118: #{high_pass_forward.8} parent=39 // pred_check_branch
          %431 = sbr.rel (%p429) target = $region120
        $region119: #{high_pass_forward.8} parent=39 // pred_region
          %s432 = sand.u32 %s107, 1
          %s433 = sand.u32 %s107, 1
          %s434 = smul.addr %s433, 32
          %s435 = scalar_lea.vmem [#allocation4], %s434
          %s436 = sadd.s32 %s23, 1
          %p437 = scmp.lt.s32.totalorder %s436, 3
          %s438 = scalar_select %p437, %s436, 3
          %s439 = smul.addr %s22, 16
          %s440 = sadd.s32 %s438, %s439
          %s441 = smul.addr %s440, 8
          %s442 = scalar_lea.vmem %s2, %s441
          // Predicated region
          $region121: #{high_pass_forward.8} parent=119 // pred_check
            _
          $region122: #{high_pass_forward.8} parent=119 // pred_check_branch
            %444 = sbr.rel (0) target = $region124
          $region123: #{high_pass_forward.8} parent=119 // pred_region
            // Predicated region
            $region125: #{high_pass_forward.8} parent=123 // pred_check
              _
            $region126: #{high_pass_forward.8} parent=123 // pred_check_branch
              %446 = sbr.rel (0) target = $region128
            $region127: #{high_pass_forward.8} parent=123 // pred_region
              // Predicated region
              $region140: #{high_pass_forward.8} parent=127 // pred_check
                _
              $region141: #{high_pass_forward.8} parent=127 // pred_check_branch
                %468 = sbr.rel (0) target = $region143
              $region142: #{high_pass_forward.8} parent=127 // pred_region
                loop: start=0, step=1, limit=1
                $region144: #{high_pass_forward.8} parent=142 // loop_pre_header
                  _
                $region145: #{high_pass_forward.8} parent=142 // loop_header
                  %s470 = sphi 0, %s474
                  %p471 = scmp.ge.s32.totalorder %s470, 1
                  %s475 = sphi %s442, %s442
                  %s476 = sphi %s435, %s435
                $region146: #{high_pass_forward.8} parent=142 // loop_header_branch
                  %473 = sbr.rel (%p471) target = $region150
                $region147: #{high_pass_forward.8} parent=142 // loop_body
                  %v477 = vld [vmem:[%s475] sm:$0xff]
                  %478 = vst [vmem:[%s476] sm:$0xff] %v477
                  %v479 = vld [vmem:[%s475 + $0x20] sm:$0xff]
                  %480 = vst [vmem:[%s476 + $0x8] sm:$0xff] %v479
                  %v481 = vld [vmem:[%s475 + $0x40] sm:$0xff]
                  %482 = vst [vmem:[%s476 + $0x10] sm:$0xff] %v481
                  %v483 = vld [vmem:[%s475 + $0x60] sm:$0xff]
                  %484 = vst [vmem:[%s476 + $0x18] sm:$0xff] %v483
                $region148: #{high_pass_forward.8} parent=142 // loop_footer
                  %s474 = sadd.s32 1, %s470
                $region149: #{high_pass_forward.8} parent=142 // loop_footer_branch
                  %469 = sbr.rel target = $region145
                $region150: #{high_pass_forward.8} parent=142 // loop_exit
                  _
              $region143: #{high_pass_forward.8} parent=127 // pred_fallthru
                _
              // Predicated region
              $region151: #{high_pass_forward.8} parent=127 // pred_check
                _
              $region152: #{high_pass_forward.8} parent=127 // pred_check_branch
                %486 = sbr.rel target = $region154
              $region153: #{high_pass_forward.8} parent=127 // pred_region
                _
              $region154: #{high_pass_forward.8} parent=127 // pred_fallthru
                _
            $region128: #{high_pass_forward.8} parent=123 // pred_fallthru
              _
            // Predicated region
            $region129: #{high_pass_forward.8} parent=123 // pred_check
              _
            $region130: #{high_pass_forward.8} parent=123 // pred_check_branch
              %448 = sbr.rel target = $region132
            $region131: #{high_pass_forward.8} parent=123 // pred_region
              %s450 = ssub.s32 256, 1
              loop: start=0, step=1, limit=1
              $region133: #{high_pass_forward.8} parent=131 // loop_pre_header
                _
              $region134: #{high_pass_forward.8} parent=131 // loop_header
                %s452 = sphi 0, %s456
                %p453 = scmp.ge.s32.totalorder %s452, 1
                %s457 = sphi %s442, %s442
                %s458 = sphi %s435, %s435
              $region135: #{high_pass_forward.8} parent=131 // loop_header_branch
                %455 = sbr.rel (%p453) target = $region139
              $region136: #{high_pass_forward.8} parent=131 // loop_body
                %v459 = vld [vmem:[%s457] sm:%s450]
                %460 = vst [vmem:[%s458] sm:%s450] %v459
                %v461 = vld [vmem:[%s457 + $0x20] sm:%s450]
                %462 = vst [vmem:[%s458 + $0x8] sm:%s450] %v461
                %v463 = vld [vmem:[%s457 + $0x40] sm:%s450]
                %464 = vst [vmem:[%s458 + $0x10] sm:%s450] %v463
                %v465 = vld [vmem:[%s457 + $0x60] sm:%s450]
                %466 = vst [vmem:[%s458 + $0x18] sm:%s450] %v465
              $region137: #{high_pass_forward.8} parent=131 // loop_footer
                %s456 = sadd.s32 1, %s452
              $region138: #{high_pass_forward.8} parent=131 // loop_footer_branch
                %451 = sbr.rel target = $region134
              $region139: #{high_pass_forward.8} parent=131 // loop_exit
                _
            $region132: #{high_pass_forward.8} parent=123 // pred_fallthru
              _
          $region124: #{high_pass_forward.8} parent=119 // pred_fallthru
            _
          %487 = vnop
        $region120: #{high_pass_forward.8} parent=39 // pred_fallthru
          _
      $region40: #{high_pass_forward.8} parent=5 // pred_fallthru
        _
      %p488 = scmp.le.s32.totalorder 1, %s15
      %p489 = scmp.lt.s32.totalorder %s15, 9
      %p490 = pnand %p488, %p489
      %p491 = pneg %p490
      // Predicated region
      $region155: #{high_pass_forward.8} parent=5 // pred_check
        _
      $region156: #{high_pass_forward.8} parent=5 // pred_check_branch
        %493 = sbr.rel (%p490) target = $region158
      $region157: #{high_pass_forward.8} parent=5 // pred_region
        %s494 = ssub.s32 %s15, 1
        %s495 = sand.u32 %s42, 1
        %s496 = sand.u32 %s42, 1
        %s497 = smul.addr %s496, 32
        %s498 = scalar_lea.vmem [#allocation2], %s497
        // Predicated region
        $region159: #{high_pass_forward.8} parent=157 // pred_check
          %p499 = pneg %p55
        $region160: #{high_pass_forward.8} parent=157 // pred_check_branch
          %501 = sbr.rel (%p499) target = $region162
        $region161: #{high_pass_forward.8} parent=157 // pred_region
          _
        $region162: #{high_pass_forward.8} parent=157 // pred_fallthru
          _
        %s502 = sand.u32 %s76, 1
        %s503 = sand.u32 %s76, 1
        %s504 = smul.addr %s503, 32
        %s505 = scalar_lea.vmem [#allocation3], %s504
        // Predicated region
        $region163: #{high_pass_forward.8} parent=157 // pred_check
          %p506 = pneg %p89
        $region164: #{high_pass_forward.8} parent=157 // pred_check_branch
          %508 = sbr.rel (%p506) target = $region166
        $region165: #{high_pass_forward.8} parent=157 // pred_region
          _
        $region166: #{high_pass_forward.8} parent=157 // pred_fallthru
          _
        %s509 = sand.u32 %s110, 1
        %s510 = sand.u32 %s110, 1
        %s511 = smul.addr %s510, 32
        %s512 = scalar_lea.vmem [#allocation4], %s511
        // Predicated region
        $region167: #{high_pass_forward.8} parent=157 // pred_check
          %p513 = pneg %p123
        $region168: #{high_pass_forward.8} parent=157 // pred_check_branch
          %515 = sbr.rel (%p513) target = $region170
        $region169: #{high_pass_forward.8} parent=157 // pred_region
          _
        $region170: #{high_pass_forward.8} parent=157 // pred_fallthru
          _
        %s516 = sand.u32 %s42, 1
        %s517 = sand.u32 %s42, 1
        %s518 = smul.addr %s517, 32
        %s519 = scalar_lea.vmem [#allocation2], %s518
        %p520 = pneg %p55
        %p521 = pneg %p52
        %s522 = sand.u32 %s76, 1
        %s523 = sand.u32 %s76, 1
        %s524 = smul.addr %s523, 32
        %s525 = scalar_lea.vmem [#allocation3], %s524
        %p526 = pneg %p89
        %p527 = pneg %p86
        %s528 = sand.u32 %s110, 1
        %s529 = sand.u32 %s110, 1
        %s530 = smul.addr %s529, 32
        %s531 = scalar_lea.vmem [#allocation4], %s530
        %p532 = pneg %p123
        %p533 = pneg %p120
        %p534 = pneg %p144
        %p535 = pneg %p141
        %p536 = pneg %p165
        %p537 = pneg %p162
        %p538 = pneg %p186
        %p539 = pneg %p183
        %p540 = pneg %p207
        %p541 = pneg %p204
        %p542 = pneg %p228
        %p543 = pneg %p225
        %p544 = pneg %p249
        %p545 = pneg %p246
        %p546 = pneg %p277
        %p547 = pneg %p274
        %s548 = sand.u32 %s264, 1
        %s549 = sand.u32 %s264, 1
        %s550 = smul.addr %s549, 32
        %s551 = scalar_lea.vmem [#allocation5], %s550
        %s552 = ssub.s32 %s25, 1
        %p553 = scmp.gt.s32.totalorder %s552, 0
        %s554 = scalar_select %p553, %s552, 0
        %s555 = sadd.s32 %s25, 1
        %p556 = scmp.lt.s32.totalorder %s555, 3
        %s557 = scalar_select %p556, %s555, 3
        %v558 = vld [vmem:[%s498] sm:$0xff]
        %v559 = vld [vmem:[%s498 + $0x8] sm:$0xff]
        %v560 = vld [vmem:[%s498 + $0x10] sm:$0xff]
        %v561 = vld [vmem:[%s498 + $0x18] sm:$0xff]
        %v562 = vld [vmem:[%s505] sm:$0xff]
        %v563 = vld [vmem:[%s505 + $0x8] sm:$0xff]
        %v564 = vld [vmem:[%s505 + $0x10] sm:$0xff]
        %v565 = vld [vmem:[%s505 + $0x18] sm:$0xff]
        %v566 = vld [vmem:[%s512] sm:$0xff]
        %v567 = vld [vmem:[%s512 + $0x8] sm:$0xff]
        %v568 = vld [vmem:[%s512 + $0x10] sm:$0xff]
        %v569 = vld [vmem:[%s512 + $0x18] sm:$0xff]
        %574 = vrot.lane.b32.xlu0 %v558, 125
        %v575 = vpop.permute.xlu0 %574
        %576 = vrot.lane.b32.xlu0 %v559, 125
        %v577 = vpop.permute.xlu0 %576
        %578 = vrot.lane.b32.xlu0 %v560, 125
        %v579 = vpop.permute.xlu0 %578
        %580 = vrot.lane.b32.xlu0 %v561, 125
        %v581 = vpop.permute.xlu0 %580
        %586 = vrot.lane.b32.xlu0 %v558, 127
        %v587 = vpop.permute.xlu0 %586
        %588 = vrot.lane.b32.xlu0 %v559, 127
        %v589 = vpop.permute.xlu0 %588
        %590 = vrot.lane.b32.xlu0 %v560, 127
        %v591 = vpop.permute.xlu0 %590
        %592 = vrot.lane.b32.xlu0 %v561, 127
        %v593 = vpop.permute.xlu0 %592
        %598 = vrot.lane.b32.xlu0 %v558, 1
        %v599 = vpop.permute.xlu0 %598
        %600 = vrot.lane.b32.xlu0 %v559, 1
        %v601 = vpop.permute.xlu0 %600
        %602 = vrot.lane.b32.xlu0 %v560, 1
        %v603 = vpop.permute.xlu0 %602
        %604 = vrot.lane.b32.xlu0 %v561, 1
        %v605 = vpop.permute.xlu0 %604
        %vm610 = vcmask 7168
        %v611 = vsel %vm610, %v575, %v587
        %v612 = vsel %vm610, %v577, %v589
        %v613 = vsel %vm610, %v579, %v591
        %v614 = vsel %vm610, %v581, %v593
        %vm615 = vcmask 15360
        %v616 = vsel %vm615, %v611, %v599
        %v617 = vsel %vm615, %v612, %v601
        %v618 = vsel %vm615, %v613, %v603
        %v619 = vsel %vm615, %v614, %v605
        %620 = vrot.lane.b32.xlu0 %v558, 2
        %v621 = vpop.permute.xlu0 %620
        %622 = vrot.lane.b32.xlu0 %v559, 2
        %v623 = vpop.permute.xlu0 %622
        %624 = vrot.lane.b32.xlu0 %v560, 2
        %v625 = vpop.permute.xlu0 %624
        %626 = vrot.lane.b32.xlu0 %v561, 2
        %v627 = vpop.permute.xlu0 %626
        %632 = vrot.lane.b32.xlu0 %v558, 4
        %v633 = vpop.permute.xlu0 %632
        %634 = vrot.lane.b32.xlu0 %v559, 4
        %v635 = vpop.permute.xlu0 %634
        %636 = vrot.lane.b32.xlu0 %v560, 4
        %v637 = vpop.permute.xlu0 %636
        %638 = vrot.lane.b32.xlu0 %v561, 4
        %v639 = vpop.permute.xlu0 %638
        %644 = vrot.lane.b32.xlu0 %v558, 6
        %v645 = vpop.permute.xlu0 %644
        %646 = vrot.lane.b32.xlu0 %v559, 6
        %v647 = vpop.permute.xlu0 %646
        %648 = vrot.lane.b32.xlu0 %v560, 6
        %v649 = vpop.permute.xlu0 %648
        %650 = vrot.lane.b32.xlu0 %v561, 6
        %v651 = vpop.permute.xlu0 %650
        %v656 = vsel %vm610, %v621, %v633
        %v657 = vsel %vm610, %v623, %v635
        %v658 = vsel %vm610, %v625, %v637
        %v659 = vsel %vm610, %v627, %v639
        %v660 = vsel %vm615, %v656, %v645
        %v661 = vsel %vm615, %v657, %v647
        %v662 = vsel %vm615, %v658, %v649
        %v663 = vsel %vm615, %v659, %v651
        %p664 = scmp.eq.s32.totalorder %s25, 0
        %s665 = scalar_select %p664, 1, 0
        %v666 = vstv %s665
        %vm667 = vcmp.eq.s32.totalorder %v666, 1
        %672 = vrot.lane.b32.xlu0 %v562, 3
        %v673 = vpop.permute.xlu0 %672
        %674 = vrot.lane.b32.xlu0 %v563, 3
        %v675 = vpop.permute.xlu0 %674
        %676 = vrot.lane.b32.xlu0 %v564, 3
        %v677 = vpop.permute.xlu0 %676
        %678 = vrot.lane.b32.xlu0 %v565, 3
        %v679 = vpop.permute.xlu0 %678
        %v684 = vsel %vm667, %v616, %v673
        %v685 = vsel %vm667, %v617, %v675
        %v686 = vsel %vm667, %v618, %v677
        %v687 = vsel %vm667, %v619, %v679
        %p688 = scmp.eq.s32.totalorder %s25, 3
        %s689 = scalar_select %p688, 1, 0
        %v690 = vstv %s689
        %vm691 = vcmp.eq.s32.totalorder %v690, 1
        %v692 = vsel %vm691, %v660, %v566
        %v693 = vsel %vm691, %v661, %v567
        %v694 = vsel %vm691, %v662, %v568
        %v695 = vsel %vm691, %v663, %v569
        %696 = vrot.lane.b32.xlu0 %v558, 3
        %v697 = vpop.permute.xlu0 %696
        %698 = vrot.lane.b32.xlu0 %v559, 3
        %v699 = vpop.permute.xlu0 %698
        %700 = vrot.lane.b32.xlu0 %v560, 3
        %v701 = vpop.permute.xlu0 %700
        %702 = vrot.lane.b32.xlu0 %v561, 3
        %v703 = vpop.permute.xlu0 %702
        %712 = vrot.lane.b32.xlu0 %v692, 3
        %v713 = vpop.permute.xlu0 %712
        %714 = vrot.lane.b32.xlu0 %v693, 3
        %v715 = vpop.permute.xlu0 %714
        %716 = vrot.lane.b32.xlu0 %v694, 3
        %v717 = vpop.permute.xlu0 %716
        %718 = vrot.lane.b32.xlu0 %v695, 3
        %v719 = vpop.permute.xlu0 %718
        %vm724 = vcmask 23552
        %v725 = vsel %vm724, %v684, %v697
        %v726 = vsel %vm724, %v685, %v699
        %v727 = vsel %vm724, %v686, %v701
        %v728 = vsel %vm724, %v687, %v703
        %v729 = vsel %vm724, %v697, %v713
        %v730 = vsel %vm724, %v699, %v715
        %v731 = vsel %vm724, %v701, %v717
        %v732 = vsel %vm724, %v703, %v719
        %vm733 = vcmp.ge.f32.partialorder %v725, 0.0
        %vm734 = vcmp.ge.f32.partialorder %v729, 0.0
        %vm735 = vcmp.ge.f32.partialorder %v726, 0.0
        %vm736 = vcmp.ge.f32.partialorder %v730, 0.0
        %vm737 = vcmp.ge.f32.partialorder %v727, 0.0
        %vm738 = vcmp.ge.f32.partialorder %v731, 0.0
        %vm739 = vcmp.ge.f32.partialorder %v728, 0.0
        %vm740 = vcmp.ge.f32.partialorder %v732, 0.0
        %v741 = vmul.f32 %v725, 0.2
        %v742 = vmul.f32 %v729, 0.2
        %v743 = vmul.f32 %v726, 0.2
        %v744 = vmul.f32 %v730, 0.2
        %v745 = vmul.f32 %v727, 0.2
        %v746 = vmul.f32 %v731, 0.2
        %v747 = vmul.f32 %v728, 0.2
        %v748 = vmul.f32 %v732, 0.2
        %v749 = vsel %vm733, %v725, %v741
        %v750 = vsel %vm734, %v729, %v742
        %v751 = vsel %vm735, %v726, %v743
        %v752 = vsel %vm736, %v730, %v744
        %v753 = vsel %vm737, %v727, %v745
        %v754 = vsel %vm738, %v731, %v746
        %v755 = vsel %vm739, %v728, %v747
        %v756 = vsel %vm740, %v732, %v748
        %765 = vrot.lane.b32.xlu0 %v749, 125
        %v766 = vpop.permute.xlu0 %765
        %767 = vrot.lane.b32.xlu0 %v750, 125
        %v768 = vpop.permute.xlu0 %767
        %769 = vrot.lane.b32.xlu0 %v751, 125
        %v770 = vpop.permute.xlu0 %769
        %771 = vrot.lane.b32.xlu0 %v752, 125
        %v772 = vpop.permute.xlu0 %771
        %773 = vrot.lane.b32.xlu0 %v753, 125
        %v774 = vpop.permute.xlu0 %773
        %775 = vrot.lane.b32.xlu0 %v754, 125
        %v776 = vpop.permute.xlu0 %775
        %777 = vrot.lane.b32.xlu0 %v755, 125
        %v778 = vpop.permute.xlu0 %777
        %779 = vrot.lane.b32.xlu0 %v756, 125
        %v780 = vpop.permute.xlu0 %779
        %vm781 = vcmask 1022976
        %v782 = vsel %vm781, %v766, %v768
        %v783 = vsel %vm781, %v770, %v772
        %v784 = vsel %vm781, %v774, %v776
        %v785 = vsel %vm781, %v778, %v780
        %790 = vrot.lane.b32.xlu0 %v749, 122
        %v791 = vpop.permute.xlu0 %790
        %792 = vrot.lane.b32.xlu0 %v750, 122
        %v793 = vpop.permute.xlu0 %792
        %794 = vrot.lane.b32.xlu0 %v751, 122
        %v795 = vpop.permute.xlu0 %794
        %796 = vrot.lane.b32.xlu0 %v752, 122
        %v797 = vpop.permute.xlu0 %796
        %798 = vrot.lane.b32.xlu0 %v753, 122
        %v799 = vpop.permute.xlu0 %798
        %800 = vrot.lane.b32.xlu0 %v754, 122
        %v801 = vpop.permute.xlu0 %800
        %802 = vrot.lane.b32.xlu0 %v755, 122
        %v803 = vpop.permute.xlu0 %802
        %804 = vrot.lane.b32.xlu0 %v756, 122
        %v805 = vpop.permute.xlu0 %804
        %vm806 = vcmask 998400
        %v807 = vsel %vm806, %v791, %v793
        %v808 = vsel %vm806, %v795, %v797
        %v809 = vsel %vm806, %v799, %v801
        %v810 = vsel %vm806, %v803, %v805
        %v815 = vld [vmem:[%s3] sm:$0xff]
        %v816 = vld [vmem:[%s3 + $0x8] sm:$0xff]
        %v817 = vld [vmem:[%s3 + $0x10] sm:$0xff]
        %v818 = vld [vmem:[%s3 + $0x18] sm:$0xff]
        %v819 = vld [vmem:[%s4] sm:$0xff]
        %v820 = vld [vmem:[%s4 + $0x8] sm:$0xff]
        %v821 = vld [vmem:[%s4 + $0x10] sm:$0xff]
        %v822 = vld [vmem:[%s4 + $0x18] sm:$0xff]
        %824 = vset.pattern.permute.xlu0 0
        %825 = vperm.xlu0 %824, %v819
        %v826 = vpop.permute.xlu0 %825
        %829 = vset.pattern.permute.xlu0 0
        %830 = vperm.xlu0 %829, %v820
        %v831 = vpop.permute.xlu0 %830
        %834 = vset.pattern.permute.xlu0 0
        %835 = vperm.xlu0 %834, %v821
        %v836 = vpop.permute.xlu0 %835
        %839 = vset.pattern.permute.xlu0 0
        %840 = vperm.xlu0 %839, %v822
        %v841 = vpop.permute.xlu0 %840
        %vm843 = vcmask 785408
        %v845 = vsel %vm843, %v815, 0
        %v848 = vsel %vm843, %v816, 0
        %v851 = vsel %vm843, %v817, 0
        %v854 = vsel %vm843, %v818, 0
        %856 = vmatprep.subr.mxu0 0.0
        %857 = vmatpush1.msra.mxu0 0.0
        %858 = vmatprep.subr.mxu0 0.0
        %859 = vmatpush1.msra.mxu0 0.0
        %860 = vmatprep.subr.mxu0 0.0
        %861 = vmatpush1.msra.mxu0 0.0
        %862 = vmatprep.subr.mxu0 0.0
        %863 = vmatpush1.msra.mxu0 0.0
        %864 = vmatprep.subr.mxu0 0.0
        %865 = vmatpush1.msra.mxu0 %v810
        %866 = vmatprep.subr.mxu0 0.0
        %867 = vmatpush1.msra.mxu0 %v809
        %868 = vmatprep.subr.mxu0 0.0
        %869 = vmatpush1.msra.mxu0 %v808
        %870 = vmatprep.subr.mxu0 0.0
        %871 = vmatpush1.msra.mxu0 %v807
        %872 = vmatprep.subr.mxu0 0.0
        %873 = vmatpush1.msra.mxu0 %v785
        %874 = vmatprep.subr.mxu0 0.0
        %875 = vmatpush1.msra.mxu0 %v784
        %876 = vmatprep.subr.mxu0 0.0
        %877 = vmatpush1.msra.mxu0 %v783
        %878 = vmatprep.subr.mxu0 0.0
        %879 = vmatpush1.msra.mxu0 %v782
        %880 = vmatprep.subr.mxu0 0.0
        %881 = vmatpush1.msra.mxu0 %v755
        %882 = vmatprep.subr.mxu0 0.0
        %883 = vmatpush1.msra.mxu0 %v753
        %884 = vmatprep.subr.mxu0 0.0
        %885 = vmatpush1.msra.mxu0 %v751
        %886 = vmatprep.subr.mxu0 0.0
        %887 = vmatpush1.msra.mxu0 %v749
        %888 = vmatprep.subr.mxu0 0.0
        %889 = vmatpush2.msra.mxu0 0.0
        %890 = vmatprep.subr.mxu0 0.0
        %891 = vmatpush2.msra.mxu0 0.0
        %892 = vmatprep.subr.mxu0 0.0
        %893 = vmatpush2.msra.mxu0 0.0
        %894 = vmatprep.subr.mxu0 0.0
        %895 = vmatpush2.msra.mxu0 0.0
        %896 = vmatprep.subr.mxu0 0.0
        %897 = vmatpush2.msra.mxu0 0.0
        %898 = vmatprep.subr.mxu0 0.0
        %899 = vmatpush2.msra.mxu0 0.0
        %900 = vmatprep.subr.mxu0 0.0
        %901 = vmatpush2.msra.mxu0 0.0
        %902 = vmatprep.subr.mxu0 0.0
        %903 = vmatpush2.msra.mxu0 0.0
        %904 = vmatprep.subr.mxu0 0.0
        %905 = vmatpush2.msra.mxu0 0.0
        %906 = vmatprep.subr.mxu0 0.0
        %907 = vmatpush2.msra.mxu0 0.0
        %908 = vmatprep.subr.mxu0 0.0
        %909 = vmatpush2.msra.mxu0 0.0
        %910 = vmatprep.subr.mxu0 0.0
        %911 = vmatpush2.msra.mxu0 0.0
        %912 = vmatprep.subr.mxu0 0.0
        %913 = vmatpush2.msra.mxu0 0.0
        %914 = vmatprep.subr.mxu0 0.0
        %915 = vmatpush2.msra.mxu0 0.0
        %916 = vmatprep.subr.mxu0 0.0
        %917 = vmatpush2.msra.mxu0 0.0
        %918 = vmatprep.subr.mxu0 0.0
        %919 = vmatpush2.msra.mxu0 0.0
        %920 = vmatprep.mubr.f32.mxu0 0.0
        %921 = vmatmul.mubr.f32.gmra.mxu0 %v845
        %v922 = vpop.f32.mrf.mxu0
        %v923 = vadd.f32 %v826, %v922
        %v924 = vpop.f32.mrf.mxu0
        %925 = vmatprep.mubr.f32.mxu0 0.0
        %926 = vmatmul.mubr.f32.gmra.mxu0 %v848
        %v927 = vpop.f32.mrf.mxu0
        %v928 = vadd.f32 %v831, %v927
        %v929 = vpop.f32.mrf.mxu0
        %930 = vmatprep.mubr.f32.mxu0 0.0
        %931 = vmatmul.mubr.f32.gmra.mxu0 %v851
        %v932 = vpop.f32.mrf.mxu0
        %v933 = vadd.f32 %v836, %v932
        %v934 = vpop.f32.mrf.mxu0
        %935 = vmatprep.mubr.f32.mxu0 0.0
        %936 = vmatmul.mubr.f32.gmra.mxu0 %v854
        %v937 = vpop.f32.mrf.mxu0
        %v938 = vadd.f32 %v841, %v937
        %v939 = vpop.f32.mrf.mxu0
        %940 = vdwg.mxu0
        %vm941 = vcmp.ge.f32.partialorder %v923, 0.0
        %vm942 = vcmp.ge.f32.partialorder %v928, 0.0
        %vm943 = vcmp.ge.f32.partialorder %v933, 0.0
        %vm944 = vcmp.ge.f32.partialorder %v938, 0.0
        %v945 = vmul.f32 %v923, 0.2
        %v946 = vmul.f32 %v928, 0.2
        %v947 = vmul.f32 %v933, 0.2
        %v948 = vmul.f32 %v938, 0.2
        %v949 = vsel %vm941, %v923, %v945
        %v950 = vsel %vm942, %v928, %v946
        %v951 = vsel %vm943, %v933, %v947
        %v952 = vsel %vm944, %v938, %v948
        %v953 = vld [vmem:[%s5] sm:$0xff]
        %v954 = vld [vmem:[%s5 + $0x8] sm:$0xff]
        %v955 = vld [vmem:[%s5 + $0x10] sm:$0xff]
        %v956 = vld [vmem:[%s5 + $0x18] sm:$0xff]
        %v957 = vld [vmem:[%s6] sm:$0xff]
        %v958 = vld [vmem:[%s6 + $0x8] sm:$0xff]
        %v959 = vld [vmem:[%s6 + $0x10] sm:$0xff]
        %v960 = vld [vmem:[%s6 + $0x18] sm:$0xff]
        %962 = vset.pattern.permute.xlu0 0
        %963 = vperm.xlu0 %962, %v957
        %v964 = vpop.permute.xlu0 %963
        %967 = vset.pattern.permute.xlu0 0
        %968 = vperm.xlu0 %967, %v958
        %v969 = vpop.permute.xlu0 %968
        %972 = vset.pattern.permute.xlu0 0
        %973 = vperm.xlu0 %972, %v959
        %v974 = vpop.permute.xlu0 %973
        %977 = vset.pattern.permute.xlu0 0
        %978 = vperm.xlu0 %977, %v960
        %v979 = vpop.permute.xlu0 %978
        %vm981 = vcmask 261120
        %v983 = vsel %vm981, %v953, 0
        %v986 = vsel %vm981, %v954, 0
        %v989 = vsel %vm981, %v955, 0
        %v992 = vsel %vm981, %v956, 0
        %994 = vmatprep.subr.mxu0 0.0
        %995 = vmatpush1.msra.mxu0 0.0
        %996 = vmatprep.subr.mxu0 0.0
        %997 = vmatpush1.msra.mxu0 0.0
        %998 = vmatprep.subr.mxu0 0.0
        %999 = vmatpush1.msra.mxu0 0.0
        %1000 = vmatprep.subr.mxu0 0.0
        %1001 = vmatpush1.msra.mxu0 0.0
        %1002 = vmatprep.subr.mxu0 0.0
        %1003 = vmatpush1.msra.mxu0 0.0
        %1004 = vmatprep.subr.mxu0 0.0
        %1005 = vmatpush1.msra.mxu0 0.0
        %1006 = vmatprep.subr.mxu0 0.0
        %1007 = vmatpush1.msra.mxu0 0.0
        %1008 = vmatprep.subr.mxu0 0.0
        %1009 = vmatpush1.msra.mxu0 0.0
        %1010 = vmatprep.subr.mxu0 0.0
        %1011 = vmatpush1.msra.mxu0 0.0
        %1012 = vmatprep.subr.mxu0 0.0
        %1013 = vmatpush1.msra.mxu0 0.0
        %1014 = vmatprep.subr.mxu0 0.0
        %1015 = vmatpush1.msra.mxu0 0.0
        %1016 = vmatprep.subr.mxu0 0.0
        %1017 = vmatpush1.msra.mxu0 0.0
        %1018 = vmatprep.subr.mxu0 0.0
        %1019 = vmatpush1.msra.mxu0 %v952
        %1020 = vmatprep.subr.mxu0 0.0
        %1021 = vmatpush1.msra.mxu0 %v951
        %1022 = vmatprep.subr.mxu0 0.0
        %1023 = vmatpush1.msra.mxu0 %v950
        %1024 = vmatprep.subr.mxu0 0.0
        %1025 = vmatpush1.msra.mxu0 %v949
        %1026 = vmatprep.subr.mxu0 0.0
        %1027 = vmatpush2.msra.mxu0 0.0
        %1028 = vmatprep.subr.mxu0 0.0
        %1029 = vmatpush2.msra.mxu0 0.0
        %1030 = vmatprep.subr.mxu0 0.0
        %1031 = vmatpush2.msra.mxu0 0.0
        %1032 = vmatprep.subr.mxu0 0.0
        %1033 = vmatpush2.msra.mxu0 0.0
        %1034 = vmatprep.subr.mxu0 0.0
        %1035 = vmatpush2.msra.mxu0 0.0
        %1036 = vmatprep.subr.mxu0 0.0
        %1037 = vmatpush2.msra.mxu0 0.0
        %1038 = vmatprep.subr.mxu0 0.0
        %1039 = vmatpush2.msra.mxu0 0.0
        %1040 = vmatprep.subr.mxu0 0.0
        %1041 = vmatpush2.msra.mxu0 0.0
        %1042 = vmatprep.subr.mxu0 0.0
        %1043 = vmatpush2.msra.mxu0 0.0
        %1044 = vmatprep.subr.mxu0 0.0
        %1045 = vmatpush2.msra.mxu0 0.0
        %1046 = vmatprep.subr.mxu0 0.0
        %1047 = vmatpush2.msra.mxu0 0.0
        %1048 = vmatprep.subr.mxu0 0.0
        %1049 = vmatpush2.msra.mxu0 0.0
        %1050 = vmatprep.subr.mxu0 0.0
        %1051 = vmatpush2.msra.mxu0 0.0
        %1052 = vmatprep.subr.mxu0 0.0
        %1053 = vmatpush2.msra.mxu0 0.0
        %1054 = vmatprep.subr.mxu0 0.0
        %1055 = vmatpush2.msra.mxu0 0.0
        %1056 = vmatprep.subr.mxu0 0.0
        %1057 = vmatpush2.msra.mxu0 0.0
        %1058 = vmatprep.mubr.f32.mxu0 0.0
        %1059 = vmatmul.mubr.f32.gmra.mxu0 %v983
        %v1060 = vpop.f32.mrf.mxu0
        %v1061 = vadd.f32 %v964, %v1060
        %v1062 = vpop.f32.mrf.mxu0
        %1063 = vmatprep.mubr.f32.mxu0 0.0
        %1064 = vmatmul.mubr.f32.gmra.mxu0 %v986
        %v1065 = vpop.f32.mrf.mxu0
        %v1066 = vadd.f32 %v969, %v1065
        %v1067 = vpop.f32.mrf.mxu0
        %1068 = vmatprep.mubr.f32.mxu0 0.0
        %1069 = vmatmul.mubr.f32.gmra.mxu0 %v989
        %v1070 = vpop.f32.mrf.mxu0
        %v1071 = vadd.f32 %v974, %v1070
        %v1072 = vpop.f32.mrf.mxu0
        %1073 = vmatprep.mubr.f32.mxu0 0.0
        %1074 = vmatmul.mubr.f32.gmra.mxu0 %v992
        %v1075 = vpop.f32.mrf.mxu0
        %v1076 = vadd.f32 %v979, %v1075
        %v1077 = vpop.f32.mrf.mxu0
        %1078 = vdwg.mxu0
        %v1079 = vld [vmem:[%s7] sm:$0xff]
        %v1080 = vld [vmem:[%s7 + $0x8] sm:$0xff]
        %v1081 = vld [vmem:[%s7 + $0x10] sm:$0xff]
        %v1082 = vld [vmem:[%s7 + $0x18] sm:$0xff]
        %v1083 = vld [vmem:[%s8] sm:$0xff]
        %v1084 = vld [vmem:[%s8 + $0x8] sm:$0xff]
        %v1085 = vld [vmem:[%s8 + $0x10] sm:$0xff]
        %v1086 = vld [vmem:[%s8 + $0x18] sm:$0xff]
        %1088 = vset.pattern.permute.xlu0 0
        %1089 = vperm.xlu0 %1088, %v1083
        %v1090 = vpop.permute.xlu0 %1089
        %1093 = vset.pattern.permute.xlu0 0
        %1094 = vperm.xlu0 %1093, %v1084
        %v1095 = vpop.permute.xlu0 %1094
        %1098 = vset.pattern.permute.xlu0 0
        %1099 = vperm.xlu0 %1098, %v1085
        %v1100 = vpop.permute.xlu0 %1099
        %1103 = vset.pattern.permute.xlu0 0
        %1104 = vperm.xlu0 %1103, %v1086
        %v1105 = vpop.permute.xlu0 %1104
        %v1108 = vsel %vm981, %v1079, 0
        %v1111 = vsel %vm981, %v1080, 0
        %v1114 = vsel %vm981, %v1081, 0
        %v1117 = vsel %vm981, %v1082, 0
        %1119 = vmatprep.subr.mxu0 0.0
        %1120 = vmatpush1.msra.mxu0 0.0
        %1121 = vmatprep.subr.mxu0 0.0
        %1122 = vmatpush1.msra.mxu0 0.0
        %1123 = vmatprep.subr.mxu0 0.0
        %1124 = vmatpush1.msra.mxu0 0.0
        %1125 = vmatprep.subr.mxu0 0.0
        %1126 = vmatpush1.msra.mxu0 0.0
        %1127 = vmatprep.subr.mxu0 0.0
        %1128 = vmatpush1.msra.mxu0 0.0
        %1129 = vmatprep.subr.mxu0 0.0
        %1130 = vmatpush1.msra.mxu0 0.0
        %1131 = vmatprep.subr.mxu0 0.0
        %1132 = vmatpush1.msra.mxu0 0.0
        %1133 = vmatprep.subr.mxu0 0.0
        %1134 = vmatpush1.msra.mxu0 0.0
        %1135 = vmatprep.subr.mxu0 0.0
        %1136 = vmatpush1.msra.mxu0 0.0
        %1137 = vmatprep.subr.mxu0 0.0
        %1138 = vmatpush1.msra.mxu0 0.0
        %1139 = vmatprep.subr.mxu0 0.0
        %1140 = vmatpush1.msra.mxu0 0.0
        %1141 = vmatprep.subr.mxu0 0.0
        %1142 = vmatpush1.msra.mxu0 0.0
        %1143 = vmatprep.subr.mxu0 0.0
        %1144 = vmatpush1.msra.mxu0 %v561
        %1145 = vmatprep.subr.mxu0 0.0
        %1146 = vmatpush1.msra.mxu0 %v560
        %1147 = vmatprep.subr.mxu0 0.0
        %1148 = vmatpush1.msra.mxu0 %v559
        %1149 = vmatprep.subr.mxu0 0.0
        %1150 = vmatpush1.msra.mxu0 %v558
        %1151 = vmatprep.subr.mxu0 0.0
        %1152 = vmatpush2.msra.mxu0 0.0
        %1153 = vmatprep.subr.mxu0 0.0
        %1154 = vmatpush2.msra.mxu0 0.0
        %1155 = vmatprep.subr.mxu0 0.0
        %1156 = vmatpush2.msra.mxu0 0.0
        %1157 = vmatprep.subr.mxu0 0.0
        %1158 = vmatpush2.msra.mxu0 0.0
        %1159 = vmatprep.subr.mxu0 0.0
        %1160 = vmatpush2.msra.mxu0 0.0
        %1161 = vmatprep.subr.mxu0 0.0
        %1162 = vmatpush2.msra.mxu0 0.0
        %1163 = vmatprep.subr.mxu0 0.0
        %1164 = vmatpush2.msra.mxu0 0.0
        %1165 = vmatprep.subr.mxu0 0.0
        %1166 = vmatpush2.msra.mxu0 0.0
        %1167 = vmatprep.subr.mxu0 0.0
        %1168 = vmatpush2.msra.mxu0 0.0
        %1169 = vmatprep.subr.mxu0 0.0
        %1170 = vmatpush2.msra.mxu0 0.0
        %1171 = vmatprep.subr.mxu0 0.0
        %1172 = vmatpush2.msra.mxu0 0.0
        %1173 = vmatprep.subr.mxu0 0.0
        %1174 = vmatpush2.msra.mxu0 0.0
        %1175 = vmatprep.subr.mxu0 0.0
        %1176 = vmatpush2.msra.mxu0 0.0
        %1177 = vmatprep.subr.mxu0 0.0
        %1178 = vmatpush2.msra.mxu0 0.0
        %1179 = vmatprep.subr.mxu0 0.0
        %1180 = vmatpush2.msra.mxu0 0.0
        %1181 = vmatprep.subr.mxu0 0.0
        %1182 = vmatpush2.msra.mxu0 0.0
        %1183 = vmatprep.mubr.f32.mxu0 0.0
        %1184 = vmatmul.mubr.f32.gmra.mxu0 %v1108
        %v1185 = vpop.f32.mrf.mxu0
        %v1186 = vadd.f32 %v1090, %v1185
        %v1187 = vpop.f32.mrf.mxu0
        %1188 = vmatprep.mubr.f32.mxu0 0.0
        %1189 = vmatmul.mubr.f32.gmra.mxu0 %v1111
        %v1190 = vpop.f32.mrf.mxu0
        %v1191 = vadd.f32 %v1095, %v1190
        %v1192 = vpop.f32.mrf.mxu0
        %1193 = vmatprep.mubr.f32.mxu0 0.0
        %1194 = vmatmul.mubr.f32.gmra.mxu0 %v1114
        %v1195 = vpop.f32.mrf.mxu0
        %v1196 = vadd.f32 %v1100, %v1195
        %v1197 = vpop.f32.mrf.mxu0
        %1198 = vmatprep.mubr.f32.mxu0 0.0
        %1199 = vmatmul.mubr.f32.gmra.mxu0 %v1117
        %v1200 = vpop.f32.mrf.mxu0
        %v1201 = vadd.f32 %v1105, %v1200
        %v1202 = vpop.f32.mrf.mxu0
        %1203 = vdwg.mxu0
        %v1204 = vadd.f32 %v1186, %v1061
        %v1205 = vadd.f32 %v1191, %v1066
        %v1206 = vadd.f32 %v1196, %v1071
        %v1207 = vadd.f32 %v1201, %v1076
        %1208 = vst [vmem:[%s551] sm:$0xff] %v1204
        %1209 = vst [vmem:[%s551 + $0x8] sm:$0xff] %v1205
        %1210 = vst [vmem:[%s551 + $0x10] sm:$0xff] %v1206
        %1211 = vst [vmem:[%s551 + $0x18] sm:$0xff] %v1207
        %s1212 = sand.u32 %s264, 1
        %s1213 = sand.u32 %s264, 1
        %s1214 = smul.addr %s1213, 32
        %s1215 = scalar_lea.vmem [#allocation5], %s1214
        // Predicated region
        $region171: #{high_pass_forward.8} parent=157 // pred_check
          %p1216 = pneg %p274
        $region172: #{high_pass_forward.8} parent=157 // pred_check_branch
          %1218 = sbr.rel (%p1216) target = $region174
        $region173: #{high_pass_forward.8} parent=157 // pred_region
          %s1219 = smul.addr %s24, 16
          %s1220 = sadd.s32 %s25, %s1219
          %s1221 = smul.addr %s1220, 8
          %s1222 = scalar_lea.vmem %s9, %s1221
          // Predicated region
          $region175: #{high_pass_forward.8} parent=173 // pred_check
            _
          $region176: #{high_pass_forward.8} parent=173 // pred_check_branch
            %1224 = sbr.rel (0) target = $region178
          $region177: #{high_pass_forward.8} parent=173 // pred_region
            // Predicated region
            $region179: #{high_pass_forward.8} parent=177 // pred_check
              _
            $region180: #{high_pass_forward.8} parent=177 // pred_check_branch
              %1226 = sbr.rel (0) target = $region182
            $region181: #{high_pass_forward.8} parent=177 // pred_region
              // Predicated region
              $region194: #{high_pass_forward.8} parent=181 // pred_check
                _
              $region195: #{high_pass_forward.8} parent=181 // pred_check_branch
                %1248 = sbr.rel (0) target = $region197
              $region196: #{high_pass_forward.8} parent=181 // pred_region
                loop: start=0, step=1, limit=1
                $region198: #{high_pass_forward.8} parent=196 // loop_pre_header
                  _
                $region199: #{high_pass_forward.8} parent=196 // loop_header
                  %s1250 = sphi 0, %s1254
                  %p1251 = scmp.ge.s32.totalorder %s1250, 1
                  %s1255 = sphi %s1215, %s1215
                  %s1256 = sphi %s1222, %s1222
                $region200: #{high_pass_forward.8} parent=196 // loop_header_branch
                  %1253 = sbr.rel (%p1251) target = $region204
                $region201: #{high_pass_forward.8} parent=196 // loop_body
                  %v1257 = vld [vmem:[%s1255] sm:$0xff]
                  %1258 = vst [vmem:[%s1256] sm:$0xff] %v1257
                  %v1259 = vld [vmem:[%s1255 + $0x8] sm:$0xff]
                  %1260 = vst [vmem:[%s1256 + $0x20] sm:$0xff] %v1259
                  %v1261 = vld [vmem:[%s1255 + $0x10] sm:$0xff]
                  %1262 = vst [vmem:[%s1256 + $0x40] sm:$0xff] %v1261
                  %v1263 = vld [vmem:[%s1255 + $0x18] sm:$0xff]
                  %1264 = vst [vmem:[%s1256 + $0x60] sm:$0xff] %v1263
                $region202: #{high_pass_forward.8} parent=196 // loop_footer
                  %s1254 = sadd.s32 1, %s1250
                $region203: #{high_pass_forward.8} parent=196 // loop_footer_branch
                  %1249 = sbr.rel target = $region199
                $region204: #{high_pass_forward.8} parent=196 // loop_exit
                  _
              $region197: #{high_pass_forward.8} parent=181 // pred_fallthru
                _
              // Predicated region
              $region205: #{high_pass_forward.8} parent=181 // pred_check
                _
              $region206: #{high_pass_forward.8} parent=181 // pred_check_branch
                %1266 = sbr.rel target = $region208
              $region207: #{high_pass_forward.8} parent=181 // pred_region
                _
              $region208: #{high_pass_forward.8} parent=181 // pred_fallthru
                _
            $region182: #{high_pass_forward.8} parent=177 // pred_fallthru
              _
            // Predicated region
            $region183: #{high_pass_forward.8} parent=177 // pred_check
              _
            $region184: #{high_pass_forward.8} parent=177 // pred_check_branch
              %1228 = sbr.rel target = $region186
            $region185: #{high_pass_forward.8} parent=177 // pred_region
              %s1230 = ssub.s32 256, 1
              loop: start=0, step=1, limit=1
              $region187: #{high_pass_forward.8} parent=185 // loop_pre_header
                _
              $region188: #{high_pass_forward.8} parent=185 // loop_header
                %s1232 = sphi 0, %s1236
                %p1233 = scmp.ge.s32.totalorder %s1232, 1
                %s1237 = sphi %s1215, %s1215
                %s1238 = sphi %s1222, %s1222
              $region189: #{high_pass_forward.8} parent=185 // loop_header_branch
                %1235 = sbr.rel (%p1233) target = $region193
              $region190: #{high_pass_forward.8} parent=185 // loop_body
                %v1239 = vld [vmem:[%s1237] sm:%s1230]
                %1240 = vst [vmem:[%s1238] sm:%s1230] %v1239
                %v1241 = vld [vmem:[%s1237 + $0x8] sm:%s1230]
                %1242 = vst [vmem:[%s1238 + $0x20] sm:%s1230] %v1241
                %v1243 = vld [vmem:[%s1237 + $0x10] sm:%s1230]
                %1244 = vst [vmem:[%s1238 + $0x40] sm:%s1230] %v1243
                %v1245 = vld [vmem:[%s1237 + $0x18] sm:%s1230]
                %1246 = vst [vmem:[%s1238 + $0x60] sm:%s1230] %v1245
              $region191: #{high_pass_forward.8} parent=185 // loop_footer
                %s1236 = sadd.s32 1, %s1232
              $region192: #{high_pass_forward.8} parent=185 // loop_footer_branch
                %1231 = sbr.rel target = $region188
              $region193: #{high_pass_forward.8} parent=185 // loop_exit
                _
            $region186: #{high_pass_forward.8} parent=177 // pred_fallthru
              _
          $region178: #{high_pass_forward.8} parent=173 // pred_fallthru
            _
          %1267 = vnop
        $region174: #{high_pass_forward.8} parent=157 // pred_fallthru
          _
      $region158: #{high_pass_forward.8} parent=5 // pred_fallthru
        _
      %p1268 = scmp.le.s32.totalorder 2, %s15
      // Predicated region
      $region209: #{high_pass_forward.8} parent=5 // pred_check
        %p1269 = pneg %p1268
      $region210: #{high_pass_forward.8} parent=5 // pred_check_branch
        %1271 = sbr.rel (%p1269) target = $region212
      $region211: #{high_pass_forward.8} parent=5 // pred_region
        %s1272 = ssub.s32 %s15, 2
        // Predicated region
        $region213: #{high_pass_forward.8} parent=211 // pred_check
          %p1273 = pneg %p280
        $region214: #{high_pass_forward.8} parent=211 // pred_check_branch
          %1275 = sbr.rel (%p1273) target = $region216
        $region215: #{high_pass_forward.8} parent=211 // pred_region
          %s1276 = sand.u32 %s265, 1
          %s1277 = sand.u32 %s265, 1
          %s1278 = smul.addr %s1277, 32
          %s1279 = scalar_lea.vmem [#allocation5], %s1278
        $region216: #{high_pass_forward.8} parent=211 // pred_fallthru
          _
      $region212: #{high_pass_forward.8} parent=5 // pred_fallthru
        _
    $region6: #{high_pass_forward.8} parent=1 // loop_footer
      %s19 = sadd.s32 1, %s15
    $region7: #{high_pass_forward.8} parent=1 // loop_footer_branch
      %14 = sbr.rel target = $region3
    $region8: #{high_pass_forward.8} parent=1 // loop_exit
      _

// kernel: high_pass_forward.9
$region0: #{high_pass_forward.9}
  #allocation0 [shape = 'u32[]', space=smem, size = 0x4, offset = 0x4, fixed_abs, tag = 'smem constant byte address 0x4 - core index']
  #allocation1 [shape = 'u32[144,128]{1,0:T(1,128)}', space=vmem, size = 0x12000, scoped, tag = 'internal scratch']
  %s0 = inlined_call_operand.vmem [shape: f32[2,32,512], index: 0, kind: input, shape index: {}, may-alias: {0,1,2}]
  %s1 = inlined_call_operand.vmem [shape: f32[2,32,512], index: 1, kind: input, shape index: {}, may-alias: {0,1,2}]
  %s2 = inlined_call_operand.vmem [shape: f32[2,32,512], index: 2, kind: input, shape index: {}, may-alias: {0,1,2}]
  %s3 = inlined_call_operand.vmem [shape: f32[4,224], index: 3, kind: input, shape index: {}]
  %s4 = inlined_call_operand.vmem [shape: f32[4,1], index: 4, kind: input, shape index: {}]
  %s5 = inlined_call_operand.hbm [shape: f32[2,4,512], index: 5, kind: output, shape index: {}]
  %s6 = sld [smem:[#allocation0]]
  $region167: #{high_pass_forward.9} parent=0
    _
  %s8 = ssub.s32 1, %s6
  %s9 = scalar_select 0, %s8, %s6
  $region1: #{high_pass_forward.9} parent=0
    #allocation2 [shape = 'u8[32768]{0}', space=vmem, size = 0x8000, scoped, tag = 'input window, operand 0']
    #allocation3 [shape = 'u8[32768]{0}', space=vmem, size = 0x8000, scoped, tag = 'input window, operand 1']
    #allocation4 [shape = 'u8[32768]{0}', space=vmem, size = 0x8000, scoped, tag = 'input window, operand 2']
    #allocation5 [shape = 'u8[4096]{0}', space=vmem, size = 0x1000, scoped, tag = 'output window, operand 0']
    #allocation6 [shape = 's32[2]{0}', space=sflag, size = 0x8, scoped, tag = 'scoped memory for high_pass_forward.9']
    %10 = vsyncpa [#allocation6], 0
    %s11 = scalar_lea.sflag [#allocation6], 1
    %12 = vsyncpa %s11, 0
    loop: start=0, step=1, limit=10
    $region2: #{high_pass_forward.9} parent=1 // loop_pre_header
      _
    $region3: #{high_pass_forward.9} parent=1 // loop_header
      %s14 = sphi 0, %s18
      %p15 = scmp.ge.s32.totalorder %s14, 10
      %s21 = sphi 0, %s33
      %s22 = sphi 0, %s29
      %s23 = sphi 0, %s21
      %s24 = sphi 0, %s22
      %s25 = sphi 0, %s23
      %s26 = sphi 0, %s24
      %s38 = sphi 0, %s40
      %s41 = sphi 0, %s38
      %s42 = sphi 0, %s41
      %s58 = sphi 0, %s42
      %s72 = sphi 0, %s74
      %s75 = sphi 0, %s72
      %s76 = sphi 0, %s75
      %s92 = sphi 0, %s76
      %s106 = sphi 0, %s108
      %s109 = sphi 0, %s106
      %s110 = sphi 0, %s109
      %s126 = sphi 0, %s110
      %s130 = sphi 0, %s130
      %s132 = sphi 0, %s130
      %s133 = sphi 0, %s132
      %s147 = sphi 0, %s133
      %s151 = sphi 0, %s151
      %s153 = sphi 0, %s151
      %s154 = sphi 0, %s153
      %s168 = sphi 0, %s154
      %s176 = sphi 0, %s178
      %s179 = sphi 0, %s176
      %s180 = sphi 0, %s179
      %s196 = sphi 0, %s180
    $region4: #{high_pass_forward.9} parent=1 // loop_header_branch
      %17 = sbr.rel (%p15) target = $region8
    $region5: #{high_pass_forward.9} parent=1 // loop_body
      %s19 = ssub.s32 %s14, 1
      %s20 = ssub.s32 %s14, 2
      %s27 = sadd.s32 1, %s22
      %p28 = scmp.ge.s32.totalorder %s27, 4
      %s29 = scalar_select %p28, 0, %s27
      %s30 = sadd.s32 1, %s21
      %s31 = scalar_select %p28, %s30, %s21
      %p32 = scmp.ge.s32.totalorder %s31, 2
      %s33 = scalar_select %p32, 0, %s31
      %s34 = ssub.s32 %s21, %s33
      %s35 = ssub.s32 %s22, %s29
      %s36 = sor.u32 %s34, %s35
      %p37 = scmp.eq.s32.totalorder %s36, 0
      %s39 = sadd.s32 %s38, 1
      %s40 = scalar_select %p37, %s38, %s39
      %p43 = pneg %p37
      %p44 = scmp.eq.s32.totalorder %s14, 7
      %p45 = por %p43, %p44
      %p46 = scmp.ne.s32.totalorder %s38, %s41
      %p47 = scmp.eq.s32.totalorder %s14, 0
      %p48 = por %p46, %p47
      %p49 = scmp.ne.s32.totalorder %s38, %s41
      %p50 = scmp.eq.s32.totalorder %s19, 7
      %p51 = por %p49, %p50
      %p52 = scmp.ne.s32.totalorder %s41, %s42
      %p53 = scmp.eq.s32.totalorder %s19, 0
      %p54 = por %p52, %p53
      %p55 = scmp.ne.s32.totalorder %s41, %s42
      %p56 = scmp.eq.s32.totalorder %s20, 7
      %p57 = por %p55, %p56
      %p59 = scmp.ne.s32.totalorder %s42, %s58
      %p60 = scmp.eq.s32.totalorder %s20, 0
      %p61 = por %p59, %p60
      %s62 = ssub.s32 %s22, 1
      %p63 = scmp.gt.s32.totalorder %s62, 0
      %s64 = scalar_select %p63, %s62, 0
      %s65 = ssub.s32 %s29, 1
      %p66 = scmp.gt.s32.totalorder %s65, 0
      %s67 = scalar_select %p66, %s65, 0
      %s68 = ssub.s32 %s21, %s33
      %s69 = ssub.s32 %s64, %s67
      %s70 = sor.u32 %s68, %s69
      %p71 = scmp.eq.s32.totalorder %s70, 0
      %s73 = sadd.s32 %s72, 1
      %s74 = scalar_select %p71, %s72, %s73
      %p77 = pneg %p71
      %p78 = scmp.eq.s32.totalorder %s14, 7
      %p79 = por %p77, %p78
      %p80 = scmp.ne.s32.totalorder %s72, %s75
      %p81 = scmp.eq.s32.totalorder %s14, 0
      %p82 = por %p80, %p81
      %p83 = scmp.ne.s32.totalorder %s72, %s75
      %p84 = scmp.eq.s32.totalorder %s19, 7
      %p85 = por %p83, %p84
      %p86 = scmp.ne.s32.totalorder %s75, %s76
      %p87 = scmp.eq.s32.totalorder %s19, 0
      %p88 = por %p86, %p87
      %p89 = scmp.ne.s32.totalorder %s75, %s76
      %p90 = scmp.eq.s32.totalorder %s20, 7
      %p91 = por %p89, %p90
      %p93 = scmp.ne.s32.totalorder %s76, %s92
      %p94 = scmp.eq.s32.totalorder %s20, 0
      %p95 = por %p93, %p94
      %s96 = sadd.s32 %s22, 1
      %p97 = scmp.lt.s32.totalorder %s96, 3
      %s98 = scalar_select %p97, %s96, 3
      %s99 = sadd.s32 %s29, 1
      %p100 = scmp.lt.s32.totalorder %s99, 3
      %s101 = scalar_select %p100, %s99, 3
      %s102 = ssub.s32 %s21, %s33
      %s103 = ssub.s32 %s98, %s101
      %s104 = sor.u32 %s102, %s103
      %p105 = scmp.eq.s32.totalorder %s104, 0
      %s107 = sadd.s32 %s106, 1
      %s108 = scalar_select %p105, %s106, %s107
      %p111 = pneg %p105
      %p112 = scmp.eq.s32.totalorder %s14, 7
      %p113 = por %p111, %p112
      %p114 = scmp.ne.s32.totalorder %s106, %s109
      %p115 = scmp.eq.s32.totalorder %s14, 0
      %p116 = por %p114, %p115
      %p117 = scmp.ne.s32.totalorder %s106, %s109
      %p118 = scmp.eq.s32.totalorder %s19, 7
      %p119 = por %p117, %p118
      %p120 = scmp.ne.s32.totalorder %s109, %s110
      %p121 = scmp.eq.s32.totalorder %s19, 0
      %p122 = por %p120, %p121
      %p123 = scmp.ne.s32.totalorder %s109, %s110
      %p124 = scmp.eq.s32.totalorder %s20, 7
      %p125 = por %p123, %p124
      %p127 = scmp.ne.s32.totalorder %s110, %s126
      %p128 = scmp.eq.s32.totalorder %s20, 0
      %p129 = por %p127, %p128
      %s131 = sadd.s32 %s130, 1
      %p134 = scmp.eq.s32.totalorder %s14, 7
      %p135 = scmp.ne.s32.totalorder %s130, %s132
      %p136 = scmp.eq.s32.totalorder %s14, 0
      %p137 = por %p135, %p136
      %p138 = scmp.ne.s32.totalorder %s130, %s132
      %p139 = scmp.eq.s32.totalorder %s19, 7
      %p140 = por %p138, %p139
      %p141 = scmp.ne.s32.totalorder %s132, %s133
      %p142 = scmp.eq.s32.totalorder %s19, 0
      %p143 = por %p141, %p142
      %p144 = scmp.ne.s32.totalorder %s132, %s133
      %p145 = scmp.eq.s32.totalorder %s20, 7
      %p146 = por %p144, %p145
      %p148 = scmp.ne.s32.totalorder %s133, %s147
      %p149 = scmp.eq.s32.totalorder %s20, 0
      %p150 = por %p148, %p149
      %s152 = sadd.s32 %s151, 1
      %p155 = scmp.eq.s32.totalorder %s14, 7
      %p156 = scmp.ne.s32.totalorder %s151, %s153
      %p157 = scmp.eq.s32.totalorder %s14, 0
      %p158 = por %p156, %p157
      %p159 = scmp.ne.s32.totalorder %s151, %s153
      %p160 = scmp.eq.s32.totalorder %s19, 7
      %p161 = por %p159, %p160
      %p162 = scmp.ne.s32.totalorder %s153, %s154
      %p163 = scmp.eq.s32.totalorder %s19, 0
      %p164 = por %p162, %p163
      %p165 = scmp.ne.s32.totalorder %s153, %s154
      %p166 = scmp.eq.s32.totalorder %s20, 7
      %p167 = por %p165, %p166
      %p169 = scmp.ne.s32.totalorder %s154, %s168
      %p170 = scmp.eq.s32.totalorder %s20, 0
      %p171 = por %p169, %p170
      %s172 = ssub.s32 %s21, %s33
      %s173 = ssub.s32 %s22, %s29
      %s174 = sor.u32 %s172, %s173
      %p175 = scmp.eq.s32.totalorder %s174, 0
      %s177 = sadd.s32 %s176, 1
      %s178 = scalar_select %p175, %s176, %s177
      %p181 = pneg %p175
      %p182 = scmp.eq.s32.totalorder %s14, 7
      %p183 = por %p181, %p182
      %p184 = scmp.ne.s32.totalorder %s176, %s179
      %p185 = scmp.eq.s32.totalorder %s14, 0
      %p186 = por %p184, %p185
      %p187 = scmp.ne.s32.totalorder %s176, %s179
      %p188 = scmp.eq.s32.totalorder %s19, 7
      %p189 = por %p187, %p188
      %p190 = scmp.ne.s32.totalorder %s179, %s180
      %p191 = scmp.eq.s32.totalorder %s19, 0
      %p192 = por %p190, %p191
      %p193 = scmp.ne.s32.totalorder %s179, %s180
      %p194 = scmp.eq.s32.totalorder %s20, 7
      %p195 = por %p193, %p194
      %p197 = scmp.ne.s32.totalorder %s180, %s196
      %p198 = scmp.eq.s32.totalorder %s20, 0
      %p199 = por %p197, %p198
      %p200 = scmp.le.s32.totalorder 1, %s14
      %p201 = scmp.lt.s32.totalorder %s14, 9
      %p202 = pnand %p200, %p201
      %p203 = pneg %p202
      // Predicated region
      $region9: #{high_pass_forward.9} parent=5 // pred_check
        _
      $region10: #{high_pass_forward.9} parent=5 // pred_check_branch
        %205 = sbr.rel (%p202) target = $region12
      $region11: #{high_pass_forward.9} parent=5 // pred_region
        %s206 = ssub.s32 %s14, 1
        // Predicated region
        $region13: #{high_pass_forward.9} parent=11 // pred_check
          %p207 = pneg %p143
        $region14: #{high_pass_forward.9} parent=11 // pred_check_branch
          %209 = sbr.rel (%p207) target = $region16
        $region15: #{high_pass_forward.9} parent=11 // pred_region
          _
        $region16: #{high_pass_forward.9} parent=11 // pred_fallthru
          _
        // Predicated region
        $region17: #{high_pass_forward.9} parent=11 // pred_check
          %p210 = pneg %p164
        $region18: #{high_pass_forward.9} parent=11 // pred_check_branch
          %212 = sbr.rel (%p210) target = $region20
        $region19: #{high_pass_forward.9} parent=11 // pred_region
          _
        $region20: #{high_pass_forward.9} parent=11 // pred_fallthru
          _
      $region12: #{high_pass_forward.9} parent=5 // pred_fallthru
        _
      %p213 = scmp.lt.s32.totalorder %s14, 8
      // Predicated region
      $region21: #{high_pass_forward.9} parent=5 // pred_check
        %p214 = pneg %p213
      $region22: #{high_pass_forward.9} parent=5 // pred_check_branch
        %216 = sbr.rel (%p214) target = $region24
      $region23: #{high_pass_forward.9} parent=5 // pred_region
        // Predicated region
        $region25: #{high_pass_forward.9} parent=23 // pred_check
          %p217 = pneg %p48
        $region26: #{high_pass_forward.9} parent=23 // pred_check_branch
          %219 = sbr.rel (%p217) target = $region28
        $region27: #{high_pass_forward.9} parent=23 // pred_region
          %s220 = sand.u32 %s38, 1
          %s221 = sand.u32 %s38, 1
          %s222 = smul.addr %s221, 32
          %s223 = scalar_lea.vmem [#allocation2], %s222
          %s224 = smul.addr %s21, 16
          %s225 = sadd.s32 %s22, %s224
          %s226 = smul.addr %s225, 8
          %s227 = scalar_lea.vmem %s0, %s226
          // Predicated region
          $region29: #{high_pass_forward.9} parent=27 // pred_check
            _
          $region30: #{high_pass_forward.9} parent=27 // pred_check_branch
            %229 = sbr.rel (0) target = $region32
          $region31: #{high_pass_forward.9} parent=27 // pred_region
            // Predicated region
            $region33: #{high_pass_forward.9} parent=31 // pred_check
              _
            $region34: #{high_pass_forward.9} parent=31 // pred_check_branch
              %231 = sbr.rel (0) target = $region36
            $region35: #{high_pass_forward.9} parent=31 // pred_region
              // Predicated region
              $region48: #{high_pass_forward.9} parent=35 // pred_check
                _
              $region49: #{high_pass_forward.9} parent=35 // pred_check_branch
                %253 = sbr.rel (0) target = $region51
              $region50: #{high_pass_forward.9} parent=35 // pred_region
                loop: start=0, step=1, limit=1
                $region52: #{high_pass_forward.9} parent=50 // loop_pre_header
                  _
                $region53: #{high_pass_forward.9} parent=50 // loop_header
                  %s255 = sphi 0, %s259
                  %p256 = scmp.ge.s32.totalorder %s255, 1
                  %s260 = sphi %s227, %s227
                  %s261 = sphi %s223, %s223
                $region54: #{high_pass_forward.9} parent=50 // loop_header_branch
                  %258 = sbr.rel (%p256) target = $region58
                $region55: #{high_pass_forward.9} parent=50 // loop_body
                  %v262 = vld [vmem:[%s260] sm:$0xff]
                  %263 = vst [vmem:[%s261] sm:$0xff] %v262
                  %v264 = vld [vmem:[%s260 + $0x20] sm:$0xff]
                  %265 = vst [vmem:[%s261 + $0x8] sm:$0xff] %v264
                  %v266 = vld [vmem:[%s260 + $0x40] sm:$0xff]
                  %267 = vst [vmem:[%s261 + $0x10] sm:$0xff] %v266
                  %v268 = vld [vmem:[%s260 + $0x60] sm:$0xff]
                  %269 = vst [vmem:[%s261 + $0x18] sm:$0xff] %v268
                $region56: #{high_pass_forward.9} parent=50 // loop_footer
                  %s259 = sadd.s32 1, %s255
                $region57: #{high_pass_forward.9} parent=50 // loop_footer_branch
                  %254 = sbr.rel target = $region53
                $region58: #{high_pass_forward.9} parent=50 // loop_exit
                  _
              $region51: #{high_pass_forward.9} parent=35 // pred_fallthru
                _
              // Predicated region
              $region59: #{high_pass_forward.9} parent=35 // pred_check
                _
              $region60: #{high_pass_forward.9} parent=35 // pred_check_branch
                %271 = sbr.rel target = $region62
              $region61: #{high_pass_forward.9} parent=35 // pred_region
                _
              $region62: #{high_pass_forward.9} parent=35 // pred_fallthru
                _
            $region36: #{high_pass_forward.9} parent=31 // pred_fallthru
              _
            // Predicated region
            $region37: #{high_pass_forward.9} parent=31 // pred_check
              _
            $region38: #{high_pass_forward.9} parent=31 // pred_check_branch
              %233 = sbr.rel target = $region40
            $region39: #{high_pass_forward.9} parent=31 // pred_region
              %s235 = ssub.s32 256, 1
              loop: start=0, step=1, limit=1
              $region41: #{high_pass_forward.9} parent=39 // loop_pre_header
                _
              $region42: #{high_pass_forward.9} parent=39 // loop_header
                %s237 = sphi 0, %s241
                %p238 = scmp.ge.s32.totalorder %s237, 1
                %s242 = sphi %s227, %s227
                %s243 = sphi %s223, %s223
              $region43: #{high_pass_forward.9} parent=39 // loop_header_branch
                %240 = sbr.rel (%p238) target = $region47
              $region44: #{high_pass_forward.9} parent=39 // loop_body
                %v244 = vld [vmem:[%s242] sm:%s235]
                %245 = vst [vmem:[%s243] sm:%s235] %v244
                %v246 = vld [vmem:[%s242 + $0x20] sm:%s235]
                %247 = vst [vmem:[%s243 + $0x8] sm:%s235] %v246
                %v248 = vld [vmem:[%s242 + $0x40] sm:%s235]
                %249 = vst [vmem:[%s243 + $0x10] sm:%s235] %v248
                %v250 = vld [vmem:[%s242 + $0x60] sm:%s235]
                %251 = vst [vmem:[%s243 + $0x18] sm:%s235] %v250
              $region45: #{high_pass_forward.9} parent=39 // loop_footer
                %s241 = sadd.s32 1, %s237
              $region46: #{high_pass_forward.9} parent=39 // loop_footer_branch
                %236 = sbr.rel target = $region42
              $region47: #{high_pass_forward.9} parent=39 // loop_exit
                _
            $region40: #{high_pass_forward.9} parent=31 // pred_fallthru
              _
          $region32: #{high_pass_forward.9} parent=27 // pred_fallthru
            _
          %272 = vnop
        $region28: #{high_pass_forward.9} parent=23 // pred_fallthru
          _
        // Predicated region
        $region63: #{high_pass_forward.9} parent=23 // pred_check
          %p273 = pneg %p82
        $region64: #{high_pass_forward.9} parent=23 // pred_check_branch
          %275 = sbr.rel (%p273) target = $region66
        $region65: #{high_pass_forward.9} parent=23 // pred_region
          %s276 = sand.u32 %s72, 1
          %s277 = sand.u32 %s72, 1
          %s278 = smul.addr %s277, 32
          %s279 = scalar_lea.vmem [#allocation3], %s278
          %s280 = ssub.s32 %s22, 1
          %p281 = scmp.gt.s32.totalorder %s280, 0
          %s282 = scalar_select %p281, %s280, 0
          %s283 = smul.addr %s21, 16
          %s284 = sadd.s32 %s282, %s283
          %s285 = smul.addr %s284, 8
          %s286 = scalar_lea.vmem %s1, %s285
          // Predicated region
          $region67: #{high_pass_forward.9} parent=65 // pred_check
            _
          $region68: #{high_pass_forward.9} parent=65 // pred_check_branch
            %288 = sbr.rel (0) target = $region70
          $region69: #{high_pass_forward.9} parent=65 // pred_region
            // Predicated region
            $region71: #{high_pass_forward.9} parent=69 // pred_check
              _
            $region72: #{high_pass_forward.9} parent=69 // pred_check_branch
              %290 = sbr.rel (0) target = $region74
            $region73: #{high_pass_forward.9} parent=69 // pred_region
              // Predicated region
              $region86: #{high_pass_forward.9} parent=73 // pred_check
                _
              $region87: #{high_pass_forward.9} parent=73 // pred_check_branch
                %312 = sbr.rel (0) target = $region89
              $region88: #{high_pass_forward.9} parent=73 // pred_region
                loop: start=0, step=1, limit=1
                $region90: #{high_pass_forward.9} parent=88 // loop_pre_header
                  _
                $region91: #{high_pass_forward.9} parent=88 // loop_header
                  %s314 = sphi 0, %s318
                  %p315 = scmp.ge.s32.totalorder %s314, 1
                  %s319 = sphi %s286, %s286
                  %s320 = sphi %s279, %s279
                $region92: #{high_pass_forward.9} parent=88 // loop_header_branch
                  %317 = sbr.rel (%p315) target = $region96
                $region93: #{high_pass_forward.9} parent=88 // loop_body
                  %v321 = vld [vmem:[%s319] sm:$0xff]
                  %322 = vst [vmem:[%s320] sm:$0xff] %v321
                  %v323 = vld [vmem:[%s319 + $0x20] sm:$0xff]
                  %324 = vst [vmem:[%s320 + $0x8] sm:$0xff] %v323
                  %v325 = vld [vmem:[%s319 + $0x40] sm:$0xff]
                  %326 = vst [vmem:[%s320 + $0x10] sm:$0xff] %v325
                  %v327 = vld [vmem:[%s319 + $0x60] sm:$0xff]
                  %328 = vst [vmem:[%s320 + $0x18] sm:$0xff] %v327
                $region94: #{high_pass_forward.9} parent=88 // loop_footer
                  %s318 = sadd.s32 1, %s314
                $region95: #{high_pass_forward.9} parent=88 // loop_footer_branch
                  %313 = sbr.rel target = $region91
                $region96: #{high_pass_forward.9} parent=88 // loop_exit
                  _
              $region89: #{high_pass_forward.9} parent=73 // pred_fallthru
                _
              // Predicated region
              $region97: #{high_pass_forward.9} parent=73 // pred_check
                _
              $region98: #{high_pass_forward.9} parent=73 // pred_check_branch
                %330 = sbr.rel target = $region100
              $region99: #{high_pass_forward.9} parent=73 // pred_region
                _
              $region100: #{high_pass_forward.9} parent=73 // pred_fallthru
                _
            $region74: #{high_pass_forward.9} parent=69 // pred_fallthru
              _
            // Predicated region
            $region75: #{high_pass_forward.9} parent=69 // pred_check
              _
            $region76: #{high_pass_forward.9} parent=69 // pred_check_branch
              %292 = sbr.rel target = $region78
            $region77: #{high_pass_forward.9} parent=69 // pred_region
              %s294 = ssub.s32 256, 1
              loop: start=0, step=1, limit=1
              $region79: #{high_pass_forward.9} parent=77 // loop_pre_header
                _
              $region80: #{high_pass_forward.9} parent=77 // loop_header
                %s296 = sphi 0, %s300
                %p297 = scmp.ge.s32.totalorder %s296, 1
                %s301 = sphi %s286, %s286
                %s302 = sphi %s279, %s279
              $region81: #{high_pass_forward.9} parent=77 // loop_header_branch
                %299 = sbr.rel (%p297) target = $region85
              $region82: #{high_pass_forward.9} parent=77 // loop_body
                %v303 = vld [vmem:[%s301] sm:%s294]
                %304 = vst [vmem:[%s302] sm:%s294] %v303
                %v305 = vld [vmem:[%s301 + $0x20] sm:%s294]
                %306 = vst [vmem:[%s302 + $0x8] sm:%s294] %v305
                %v307 = vld [vmem:[%s301 + $0x40] sm:%s294]
                %308 = vst [vmem:[%s302 + $0x10] sm:%s294] %v307
                %v309 = vld [vmem:[%s301 + $0x60] sm:%s294]
                %310 = vst [vmem:[%s302 + $0x18] sm:%s294] %v309
              $region83: #{high_pass_forward.9} parent=77 // loop_footer
                %s300 = sadd.s32 1, %s296
              $region84: #{high_pass_forward.9} parent=77 // loop_footer_branch
                %295 = sbr.rel target = $region80
              $region85: #{high_pass_forward.9} parent=77 // loop_exit
                _
            $region78: #{high_pass_forward.9} parent=69 // pred_fallthru
              _
          $region70: #{high_pass_forward.9} parent=65 // pred_fallthru
            _
          %331 = vnop
        $region66: #{high_pass_forward.9} parent=23 // pred_fallthru
          _
        // Predicated region
        $region101: #{high_pass_forward.9} parent=23 // pred_check
          %p332 = pneg %p116
        $region102: #{high_pass_forward.9} parent=23 // pred_check_branch
          %334 = sbr.rel (%p332) target = $region104
        $region103: #{high_pass_forward.9} parent=23 // pred_region
          %s335 = sand.u32 %s106, 1
          %s336 = sand.u32 %s106, 1
          %s337 = smul.addr %s336, 32
          %s338 = scalar_lea.vmem [#allocation4], %s337
          %s339 = sadd.s32 %s22, 1
          %p340 = scmp.lt.s32.totalorder %s339, 3
          %s341 = scalar_select %p340, %s339, 3
          %s342 = smul.addr %s21, 16
          %s343 = sadd.s32 %s341, %s342
          %s344 = smul.addr %s343, 8
          %s345 = scalar_lea.vmem %s2, %s344
          // Predicated region
          $region105: #{high_pass_forward.9} parent=103 // pred_check
            _
          $region106: #{high_pass_forward.9} parent=103 // pred_check_branch
            %347 = sbr.rel (0) target = $region108
          $region107: #{high_pass_forward.9} parent=103 // pred_region
            // Predicated region
            $region109: #{high_pass_forward.9} parent=107 // pred_check
              _
            $region110: #{high_pass_forward.9} parent=107 // pred_check_branch
              %349 = sbr.rel (0) target = $region112
            $region111: #{high_pass_forward.9} parent=107 // pred_region
              // Predicated region
              $region124: #{high_pass_forward.9} parent=111 // pred_check
                _
              $region125: #{high_pass_forward.9} parent=111 // pred_check_branch
                %371 = sbr.rel (0) target = $region127
              $region126: #{high_pass_forward.9} parent=111 // pred_region
                loop: start=0, step=1, limit=1
                $region128: #{high_pass_forward.9} parent=126 // loop_pre_header
                  _
                $region129: #{high_pass_forward.9} parent=126 // loop_header
                  %s373 = sphi 0, %s377
                  %p374 = scmp.ge.s32.totalorder %s373, 1
                  %s378 = sphi %s345, %s345
                  %s379 = sphi %s338, %s338
                $region130: #{high_pass_forward.9} parent=126 // loop_header_branch
                  %376 = sbr.rel (%p374) target = $region134
                $region131: #{high_pass_forward.9} parent=126 // loop_body
                  %v380 = vld [vmem:[%s378] sm:$0xff]
                  %381 = vst [vmem:[%s379] sm:$0xff] %v380
                  %v382 = vld [vmem:[%s378 + $0x20] sm:$0xff]
                  %383 = vst [vmem:[%s379 + $0x8] sm:$0xff] %v382
                  %v384 = vld [vmem:[%s378 + $0x40] sm:$0xff]
                  %385 = vst [vmem:[%s379 + $0x10] sm:$0xff] %v384
                  %v386 = vld [vmem:[%s378 + $0x60] sm:$0xff]
                  %387 = vst [vmem:[%s379 + $0x18] sm:$0xff] %v386
                $region132: #{high_pass_forward.9} parent=126 // loop_footer
                  %s377 = sadd.s32 1, %s373
                $region133: #{high_pass_forward.9} parent=126 // loop_footer_branch
                  %372 = sbr.rel target = $region129
                $region134: #{high_pass_forward.9} parent=126 // loop_exit
                  _
              $region127: #{high_pass_forward.9} parent=111 // pred_fallthru
                _
              // Predicated region
              $region135: #{high_pass_forward.9} parent=111 // pred_check
                _
              $region136: #{high_pass_forward.9} parent=111 // pred_check_branch
                %389 = sbr.rel target = $region138
              $region137: #{high_pass_forward.9} parent=111 // pred_region
                _
              $region138: #{high_pass_forward.9} parent=111 // pred_fallthru
                _
            $region112: #{high_pass_forward.9} parent=107 // pred_fallthru
              _
            // Predicated region
            $region113: #{high_pass_forward.9} parent=107 // pred_check
              _
            $region114: #{high_pass_forward.9} parent=107 // pred_check_branch
              %351 = sbr.rel target = $region116
            $region115: #{high_pass_forward.9} parent=107 // pred_region
              %s353 = ssub.s32 256, 1
              loop: start=0, step=1, limit=1
              $region117: #{high_pass_forward.9} parent=115 // loop_pre_header
                _
              $region118: #{high_pass_forward.9} parent=115 // loop_header
                %s355 = sphi 0, %s359
                %p356 = scmp.ge.s32.totalorder %s355, 1
                %s360 = sphi %s345, %s345
                %s361 = sphi %s338, %s338
              $region119: #{high_pass_forward.9} parent=115 // loop_header_branch
                %358 = sbr.rel (%p356) target = $region123
              $region120: #{high_pass_forward.9} parent=115 // loop_body
                %v362 = vld [vmem:[%s360] sm:%s353]
                %363 = vst [vmem:[%s361] sm:%s353] %v362
                %v364 = vld [vmem:[%s360 + $0x20] sm:%s353]
                %365 = vst [vmem:[%s361 + $0x8] sm:%s353] %v364
                %v366 = vld [vmem:[%s360 + $0x40] sm:%s353]
                %367 = vst [vmem:[%s361 + $0x10] sm:%s353] %v366
                %v368 = vld [vmem:[%s360 + $0x60] sm:%s353]
                %369 = vst [vmem:[%s361 + $0x18] sm:%s353] %v368
              $region121: #{high_pass_forward.9} parent=115 // loop_footer
                %s359 = sadd.s32 1, %s355
              $region122: #{high_pass_forward.9} parent=115 // loop_footer_branch
                %354 = sbr.rel target = $region118
              $region123: #{high_pass_forward.9} parent=115 // loop_exit
                _
            $region116: #{high_pass_forward.9} parent=107 // pred_fallthru
              _
          $region108: #{high_pass_forward.9} parent=103 // pred_fallthru
            _
          %390 = vnop
        $region104: #{high_pass_forward.9} parent=23 // pred_fallthru
          _
      $region24: #{high_pass_forward.9} parent=5 // pred_fallthru
        _
      %p391 = scmp.le.s32.totalorder 1, %s14
      %p392 = scmp.lt.s32.totalorder %s14, 9
      %p393 = pnand %p391, %p392
      %p394 = pneg %p393
      // Predicated region
      $region139: #{high_pass_forward.9} parent=5 // pred_check
        _
      $region140: #{high_pass_forward.9} parent=5 // pred_check_branch
        %396 = sbr.rel (%p393) target = $region142
      $region141: #{high_pass_forward.9} parent=5 // pred_region
        %s397 = ssub.s32 %s14, 1
        %s398 = sand.u32 %s41, 1
        %s399 = sand.u32 %s41, 1
        %s400 = smul.addr %s399, 32
        %s401 = scalar_lea.vmem [#allocation2], %s400
        // Predicated region
        $region143: #{high_pass_forward.9} parent=141 // pred_check
          %p402 = pneg %p54
        $region144: #{high_pass_forward.9} parent=141 // pred_check_branch
          %404 = sbr.rel (%p402) target = $region146
        $region145: #{high_pass_forward.9} parent=141 // pred_region
          _
        $region146: #{high_pass_forward.9} parent=141 // pred_fallthru
          _
        %s405 = sand.u32 %s75, 1
        %s406 = sand.u32 %s75, 1
        %s407 = smul.addr %s406, 32
        %s408 = scalar_lea.vmem [#allocation3], %s407
        // Predicated region
        $region147: #{high_pass_forward.9} parent=141 // pred_check
          %p409 = pneg %p88
        $region148: #{high_pass_forward.9} parent=141 // pred_check_branch
          %411 = sbr.rel (%p409) target = $region150
        $region149: #{high_pass_forward.9} parent=141 // pred_region
          _
        $region150: #{high_pass_forward.9} parent=141 // pred_fallthru
          _
        %s412 = sand.u32 %s109, 1
        %s413 = sand.u32 %s109, 1
        %s414 = smul.addr %s413, 32
        %s415 = scalar_lea.vmem [#allocation4], %s414
        // Predicated region
        $region151: #{high_pass_forward.9} parent=141 // pred_check
          %p416 = pneg %p122
        $region152: #{high_pass_forward.9} parent=141 // pred_check_branch
          %418 = sbr.rel (%p416) target = $region154
        $region153: #{high_pass_forward.9} parent=141 // pred_region
          _
        $region154: #{high_pass_forward.9} parent=141 // pred_fallthru
          _
        %s419 = sand.u32 %s41, 1
        %s420 = sand.u32 %s41, 1
        %s421 = smul.addr %s420, 32
        %s422 = scalar_lea.vmem [#allocation2], %s421
        %p423 = pneg %p54
        %p424 = pneg %p51
        %s425 = sand.u32 %s75, 1
        %s426 = sand.u32 %s75, 1
        %s427 = smul.addr %s426, 32
        %s428 = scalar_lea.vmem [#allocation3], %s427
        %p429 = pneg %p88
        %p430 = pneg %p85
        %s431 = sand.u32 %s109, 1
        %s432 = sand.u32 %s109, 1
        %s433 = smul.addr %s432, 32
        %s434 = scalar_lea.vmem [#allocation4], %s433
        %p435 = pneg %p122
        %p436 = pneg %p119
        %p437 = pneg %p143
        %p438 = pneg %p140
        %p439 = pneg %p164
        %p440 = pneg %p161
        %p441 = pneg %p192
        %p442 = pneg %p189
        %s443 = sand.u32 %s179, 1
        %s444 = scalar_lea.sflag [#allocation6], %s443
        %s445 = sand.u32 %s179, 1
        %s446 = smul.addr %s445, 4
        %s447 = scalar_lea.vmem [#allocation5], %s446
        %s448 = ssub.s32 %s24, 1
        %p449 = scmp.gt.s32.totalorder %s448, 0
        %s450 = scalar_select %p449, %s448, 0
        %s451 = sadd.s32 %s24, 1
        %p452 = scmp.lt.s32.totalorder %s451, 3
        %s453 = scalar_select %p452, %s451, 3
        %v454 = vld [vmem:[%s401] sm:$0xff]
        %v455 = vld [vmem:[%s401 + $0x8] sm:$0xff]
        %v456 = vld [vmem:[%s401 + $0x10] sm:$0xff]
        %v457 = vld [vmem:[%s401 + $0x18] sm:$0xff]
        %v458 = vld [vmem:[%s408] sm:$0xff]
        %v459 = vld [vmem:[%s408 + $0x8] sm:$0xff]
        %v460 = vld [vmem:[%s408 + $0x10] sm:$0xff]
        %v461 = vld [vmem:[%s408 + $0x18] sm:$0xff]
        %v462 = vld [vmem:[%s415] sm:$0xff]
        %v463 = vld [vmem:[%s415 + $0x8] sm:$0xff]
        %v464 = vld [vmem:[%s415 + $0x10] sm:$0xff]
        %v465 = vld [vmem:[%s415 + $0x18] sm:$0xff]
        %470 = vrot.lane.b32.xlu0 %v454, 125
        %v471 = vpop.permute.xlu0 %470
        %472 = vrot.lane.b32.xlu0 %v455, 125
        %v473 = vpop.permute.xlu0 %472
        %474 = vrot.lane.b32.xlu0 %v456, 125
        %v475 = vpop.permute.xlu0 %474
        %476 = vrot.lane.b32.xlu0 %v457, 125
        %v477 = vpop.permute.xlu0 %476
        %482 = vrot.lane.b32.xlu0 %v454, 127
        %v483 = vpop.permute.xlu0 %482
        %484 = vrot.lane.b32.xlu0 %v455, 127
        %v485 = vpop.permute.xlu0 %484
        %486 = vrot.lane.b32.xlu0 %v456, 127
        %v487 = vpop.permute.xlu0 %486
        %488 = vrot.lane.b32.xlu0 %v457, 127
        %v489 = vpop.permute.xlu0 %488
        %494 = vrot.lane.b32.xlu0 %v454, 1
        %v495 = vpop.permute.xlu0 %494
        %496 = vrot.lane.b32.xlu0 %v455, 1
        %v497 = vpop.permute.xlu0 %496
        %498 = vrot.lane.b32.xlu0 %v456, 1
        %v499 = vpop.permute.xlu0 %498
        %500 = vrot.lane.b32.xlu0 %v457, 1
        %v501 = vpop.permute.xlu0 %500
        %vm506 = vcmask 7168
        %v507 = vsel %vm506, %v471, %v483
        %v508 = vsel %vm506, %v473, %v485
        %v509 = vsel %vm506, %v475, %v487
        %v510 = vsel %vm506, %v477, %v489
        %vm511 = vcmask 15360
        %v512 = vsel %vm511, %v507, %v495
        %v513 = vsel %vm511, %v508, %v497
        %v514 = vsel %vm511, %v509, %v499
        %v515 = vsel %vm511, %v510, %v501
        %516 = vrot.lane.b32.xlu0 %v454, 2
        %v517 = vpop.permute.xlu0 %516
        %518 = vrot.lane.b32.xlu0 %v455, 2
        %v519 = vpop.permute.xlu0 %518
        %520 = vrot.lane.b32.xlu0 %v456, 2
        %v521 = vpop.permute.xlu0 %520
        %522 = vrot.lane.b32.xlu0 %v457, 2
        %v523 = vpop.permute.xlu0 %522
        %528 = vrot.lane.b32.xlu0 %v454, 4
        %v529 = vpop.permute.xlu0 %528
        %530 = vrot.lane.b32.xlu0 %v455, 4
        %v531 = vpop.permute.xlu0 %530
        %532 = vrot.lane.b32.xlu0 %v456, 4
        %v533 = vpop.permute.xlu0 %532
        %534 = vrot.lane.b32.xlu0 %v457, 4
        %v535 = vpop.permute.xlu0 %534
        %540 = vrot.lane.b32.xlu0 %v454, 6
        %v541 = vpop.permute.xlu0 %540
        %542 = vrot.lane.b32.xlu0 %v455, 6
        %v543 = vpop.permute.xlu0 %542
        %544 = vrot.lane.b32.xlu0 %v456, 6
        %v545 = vpop.permute.xlu0 %544
        %546 = vrot.lane.b32.xlu0 %v457, 6
        %v547 = vpop.permute.xlu0 %546
        %v552 = vsel %vm506, %v517, %v529
        %v553 = vsel %vm506, %v519, %v531
        %v554 = vsel %vm506, %v521, %v533
        %v555 = vsel %vm506, %v523, %v535
        %v556 = vsel %vm511, %v552, %v541
        %v557 = vsel %vm511, %v553, %v543
        %v558 = vsel %vm511, %v554, %v545
        %v559 = vsel %vm511, %v555, %v547
        %p560 = scmp.eq.s32.totalorder %s24, 0
        %s561 = scalar_select %p560, 1, 0
        %v562 = vstv %s561
        %vm563 = vcmp.eq.s32.totalorder %v562, 1
        %568 = vrot.lane.b32.xlu0 %v458, 3
        %v569 = vpop.permute.xlu0 %568
        %570 = vrot.lane.b32.xlu0 %v459, 3
        %v571 = vpop.permute.xlu0 %570
        %572 = vrot.lane.b32.xlu0 %v460, 3
        %v573 = vpop.permute.xlu0 %572
        %574 = vrot.lane.b32.xlu0 %v461, 3
        %v575 = vpop.permute.xlu0 %574
        %v580 = vsel %vm563, %v512, %v569
        %v581 = vsel %vm563, %v513, %v571
        %v582 = vsel %vm563, %v514, %v573
        %v583 = vsel %vm563, %v515, %v575
        %p584 = scmp.eq.s32.totalorder %s24, 3
        %s585 = scalar_select %p584, 1, 0
        %v586 = vstv %s585
        %vm587 = vcmp.eq.s32.totalorder %v586, 1
        %v588 = vsel %vm587, %v556, %v462
        %v589 = vsel %vm587, %v557, %v463
        %v590 = vsel %vm587, %v558, %v464
        %v591 = vsel %vm587, %v559, %v465
        %592 = vrot.lane.b32.xlu0 %v454, 3
        %v593 = vpop.permute.xlu0 %592
        %594 = vrot.lane.b32.xlu0 %v455, 3
        %v595 = vpop.permute.xlu0 %594
        %596 = vrot.lane.b32.xlu0 %v456, 3
        %v597 = vpop.permute.xlu0 %596
        %598 = vrot.lane.b32.xlu0 %v457, 3
        %v599 = vpop.permute.xlu0 %598
        %608 = vrot.lane.b32.xlu0 %v588, 3
        %v609 = vpop.permute.xlu0 %608
        %610 = vrot.lane.b32.xlu0 %v589, 3
        %v611 = vpop.permute.xlu0 %610
        %612 = vrot.lane.b32.xlu0 %v590, 3
        %v613 = vpop.permute.xlu0 %612
        %614 = vrot.lane.b32.xlu0 %v591, 3
        %v615 = vpop.permute.xlu0 %614
        %vm620 = vcmask 23552
        %v621 = vsel %vm620, %v580, %v593
        %v622 = vsel %vm620, %v581, %v595
        %v623 = vsel %vm620, %v582, %v597
        %v624 = vsel %vm620, %v583, %v599
        %v625 = vsel %vm620, %v593, %v609
        %v626 = vsel %vm620, %v595, %v611
        %v627 = vsel %vm620, %v597, %v613
        %v628 = vsel %vm620, %v599, %v615
        %vm629 = vcmp.ge.f32.partialorder %v621, 0.0
        %vm630 = vcmp.ge.f32.partialorder %v625, 0.0
        %vm631 = vcmp.ge.f32.partialorder %v622, 0.0
        %vm632 = vcmp.ge.f32.partialorder %v626, 0.0
        %vm633 = vcmp.ge.f32.partialorder %v623, 0.0
        %vm634 = vcmp.ge.f32.partialorder %v627, 0.0
        %vm635 = vcmp.ge.f32.partialorder %v624, 0.0
        %vm636 = vcmp.ge.f32.partialorder %v628, 0.0
        %v637 = vmul.f32 %v621, 0.2
        %v638 = vmul.f32 %v625, 0.2
        %v639 = vmul.f32 %v622, 0.2
        %v640 = vmul.f32 %v626, 0.2
        %v641 = vmul.f32 %v623, 0.2
        %v642 = vmul.f32 %v627, 0.2
        %v643 = vmul.f32 %v624, 0.2
        %v644 = vmul.f32 %v628, 0.2
        %v645 = vsel %vm629, %v621, %v637
        %v646 = vsel %vm630, %v625, %v638
        %v647 = vsel %vm631, %v622, %v639
        %v648 = vsel %vm632, %v626, %v640
        %v649 = vsel %vm633, %v623, %v641
        %v650 = vsel %vm634, %v627, %v642
        %v651 = vsel %vm635, %v624, %v643
        %v652 = vsel %vm636, %v628, %v644
        %661 = vrot.lane.b32.xlu0 %v645, 127
        %v662 = vpop.permute.xlu0 %661
        %663 = vrot.lane.b32.xlu0 %v646, 127
        %v664 = vpop.permute.xlu0 %663
        %665 = vrot.lane.b32.xlu0 %v647, 127
        %v666 = vpop.permute.xlu0 %665
        %667 = vrot.lane.b32.xlu0 %v648, 127
        %v668 = vpop.permute.xlu0 %667
        %669 = vrot.lane.b32.xlu0 %v649, 127
        %v670 = vpop.permute.xlu0 %669
        %671 = vrot.lane.b32.xlu0 %v650, 127
        %v672 = vpop.permute.xlu0 %671
        %673 = vrot.lane.b32.xlu0 %v651, 127
        %v674 = vpop.permute.xlu0 %673
        %675 = vrot.lane.b32.xlu0 %v652, 127
        %v676 = vpop.permute.xlu0 %675
        %vm677 = vcmask 1039360
        %v678 = vsel %vm677, %v662, %v664
        %v679 = vsel %vm677, %v666, %v668
        %v680 = vsel %vm677, %v670, %v672
        %v681 = vsel %vm677, %v674, %v676
        %686 = vrot.lane.b32.xlu0 %v645, 126
        %v687 = vpop.permute.xlu0 %686
        %688 = vrot.lane.b32.xlu0 %v646, 126
        %v689 = vpop.permute.xlu0 %688
        %690 = vrot.lane.b32.xlu0 %v647, 126
        %v691 = vpop.permute.xlu0 %690
        %692 = vrot.lane.b32.xlu0 %v648, 126
        %v693 = vpop.permute.xlu0 %692
        %694 = vrot.lane.b32.xlu0 %v649, 126
        %v695 = vpop.permute.xlu0 %694
        %696 = vrot.lane.b32.xlu0 %v650, 126
        %v697 = vpop.permute.xlu0 %696
        %698 = vrot.lane.b32.xlu0 %v651, 126
        %v699 = vpop.permute.xlu0 %698
        %700 = vrot.lane.b32.xlu0 %v652, 126
        %v701 = vpop.permute.xlu0 %700
        %vm702 = vcmask 1031168
        %v703 = vsel %vm702, %v687, %v689
        %v704 = vsel %vm702, %v691, %v693
        %v705 = vsel %vm702, %v695, %v697
        %v706 = vsel %vm702, %v699, %v701
        %711 = vrot.lane.b32.xlu0 %v645, 125
        %v712 = vpop.permute.xlu0 %711
        %713 = vrot.lane.b32.xlu0 %v646, 125
        %v714 = vpop.permute.xlu0 %713
        %715 = vrot.lane.b32.xlu0 %v647, 125
        %v716 = vpop.permute.xlu0 %715
        %717 = vrot.lane.b32.xlu0 %v648, 125
        %v718 = vpop.permute.xlu0 %717
        %719 = vrot.lane.b32.xlu0 %v649, 125
        %v720 = vpop.permute.xlu0 %719
        %721 = vrot.lane.b32.xlu0 %v650, 125
        %v722 = vpop.permute.xlu0 %721
        %723 = vrot.lane.b32.xlu0 %v651, 125
        %v724 = vpop.permute.xlu0 %723
        %725 = vrot.lane.b32.xlu0 %v652, 125
        %v726 = vpop.permute.xlu0 %725
        %vm727 = vcmask 1022976
        %v728 = vsel %vm727, %v712, %v714
        %v729 = vsel %vm727, %v716, %v718
        %v730 = vsel %vm727, %v720, %v722
        %v731 = vsel %vm727, %v724, %v726
        %736 = vrot.lane.b32.xlu0 %v645, 124
        %v737 = vpop.permute.xlu0 %736
        %738 = vrot.lane.b32.xlu0 %v646, 124
        %v739 = vpop.permute.xlu0 %738
        %740 = vrot.lane.b32.xlu0 %v647, 124
        %v741 = vpop.permute.xlu0 %740
        %742 = vrot.lane.b32.xlu0 %v648, 124
        %v743 = vpop.permute.xlu0 %742
        %744 = vrot.lane.b32.xlu0 %v649, 124
        %v745 = vpop.permute.xlu0 %744
        %746 = vrot.lane.b32.xlu0 %v650, 124
        %v747 = vpop.permute.xlu0 %746
        %748 = vrot.lane.b32.xlu0 %v651, 124
        %v749 = vpop.permute.xlu0 %748
        %750 = vrot.lane.b32.xlu0 %v652, 124
        %v751 = vpop.permute.xlu0 %750
        %vm752 = vcmask 1014784
        %v753 = vsel %vm752, %v737, %v739
        %v754 = vsel %vm752, %v741, %v743
        %v755 = vsel %vm752, %v745, %v747
        %v756 = vsel %vm752, %v749, %v751
        %761 = vrot.lane.b32.xlu0 %v645, 123
        %v762 = vpop.permute.xlu0 %761
        %763 = vrot.lane.b32.xlu0 %v646, 123
        %v764 = vpop.permute.xlu0 %763
        %765 = vrot.lane.b32.xlu0 %v647, 123
        %v766 = vpop.permute.xlu0 %765
        %767 = vrot.lane.b32.xlu0 %v648, 123
        %v768 = vpop.permute.xlu0 %767
        %769 = vrot.lane.b32.xlu0 %v649, 123
        %v770 = vpop.permute.xlu0 %769
        %771 = vrot.lane.b32.xlu0 %v650, 123
        %v772 = vpop.permute.xlu0 %771
        %773 = vrot.lane.b32.xlu0 %v651, 123
        %v774 = vpop.permute.xlu0 %773
        %775 = vrot.lane.b32.xlu0 %v652, 123
        %v776 = vpop.permute.xlu0 %775
        %vm777 = vcmask 1006592
        %v778 = vsel %vm777, %v762, %v764
        %v779 = vsel %vm777, %v766, %v768
        %v780 = vsel %vm777, %v770, %v772
        %v781 = vsel %vm777, %v774, %v776
        %786 = vrot.lane.b32.xlu0 %v645, 122
        %v787 = vpop.permute.xlu0 %786
        %788 = vrot.lane.b32.xlu0 %v646, 122
        %v789 = vpop.permute.xlu0 %788
        %790 = vrot.lane.b32.xlu0 %v647, 122
        %v791 = vpop.permute.xlu0 %790
        %792 = vrot.lane.b32.xlu0 %v648, 122
        %v793 = vpop.permute.xlu0 %792
        %794 = vrot.lane.b32.xlu0 %v649, 122
        %v795 = vpop.permute.xlu0 %794
        %796 = vrot.lane.b32.xlu0 %v650, 122
        %v797 = vpop.permute.xlu0 %796
        %798 = vrot.lane.b32.xlu0 %v651, 122
        %v799 = vpop.permute.xlu0 %798
        %800 = vrot.lane.b32.xlu0 %v652, 122
        %v801 = vpop.permute.xlu0 %800
        %vm802 = vcmask 998400
        %v803 = vsel %vm802, %v787, %v789
        %v804 = vsel %vm802, %v791, %v793
        %v805 = vsel %vm802, %v795, %v797
        %v806 = vsel %vm802, %v799, %v801
        %v811 = vld [vmem:[%s3] sm:$0xff]
        %v812 = vld [vmem:[%s4] sm:$0xf]
        %814 = vset.pattern.permute.xlu0 0
        %815 = vperm.xlu0 %814, %v812
        %v816 = vpop.permute.xlu0 %815
        %v819 = vcombine.high %v811, %v811
        %vm820 = vcmask 785408
        %v821 = vsel %vm820, %v819, 0
        %823 = vmatprep.subr.mxu0 0.0
        %824 = vmatpush1.msra.mxu0 %v731
        %825 = vmatprep.subr.mxu0 0.0
        %826 = vmatpush1.msra.mxu0 %v730
        %827 = vmatprep.subr.mxu0 0.0
        %828 = vmatpush1.msra.mxu0 %v729
        %829 = vmatprep.subr.mxu0 0.0
        %830 = vmatpush1.msra.mxu0 %v728
        %831 = vmatprep.subr.mxu0 0.0
        %832 = vmatpush1.msra.mxu0 %v706
        %833 = vmatprep.subr.mxu0 0.0
        %834 = vmatpush1.msra.mxu0 %v705
        %835 = vmatprep.subr.mxu0 0.0
        %836 = vmatpush1.msra.mxu0 %v704
        %837 = vmatprep.subr.mxu0 0.0
        %838 = vmatpush1.msra.mxu0 %v703
        %839 = vmatprep.subr.mxu0 0.0
        %840 = vmatpush1.msra.mxu0 %v681
        %841 = vmatprep.subr.mxu0 0.0
        %842 = vmatpush1.msra.mxu0 %v680
        %843 = vmatprep.subr.mxu0 0.0
        %844 = vmatpush1.msra.mxu0 %v679
        %845 = vmatprep.subr.mxu0 0.0
        %846 = vmatpush1.msra.mxu0 %v678
        %847 = vmatprep.subr.mxu0 0.0
        %848 = vmatpush1.msra.mxu0 %v651
        %849 = vmatprep.subr.mxu0 0.0
        %850 = vmatpush1.msra.mxu0 %v649
        %851 = vmatprep.subr.mxu0 0.0
        %852 = vmatpush1.msra.mxu0 %v647
        %853 = vmatprep.subr.mxu0 0.0
        %854 = vmatpush1.msra.mxu0 %v645
        %855 = vmatprep.subr.mxu0 0.0
        %856 = vmatpush2.msra.mxu0 0.0
        %857 = vmatprep.subr.mxu0 0.0
        %858 = vmatpush2.msra.mxu0 0.0
        %859 = vmatprep.subr.mxu0 0.0
        %860 = vmatpush2.msra.mxu0 0.0
        %861 = vmatprep.subr.mxu0 0.0
        %862 = vmatpush2.msra.mxu0 0.0
        %863 = vmatprep.subr.mxu0 0.0
        %864 = vmatpush2.msra.mxu0 %v806
        %865 = vmatprep.subr.mxu0 0.0
        %866 = vmatpush2.msra.mxu0 %v805
        %867 = vmatprep.subr.mxu0 0.0
        %868 = vmatpush2.msra.mxu0 %v804
        %869 = vmatprep.subr.mxu0 0.0
        %870 = vmatpush2.msra.mxu0 %v803
        %871 = vmatprep.subr.mxu0 0.0
        %872 = vmatpush2.msra.mxu0 %v781
        %873 = vmatprep.subr.mxu0 0.0
        %874 = vmatpush2.msra.mxu0 %v780
        %875 = vmatprep.subr.mxu0 0.0
        %876 = vmatpush2.msra.mxu0 %v779
        %877 = vmatprep.subr.mxu0 0.0
        %878 = vmatpush2.msra.mxu0 %v778
        %879 = vmatprep.subr.mxu0 0.0
        %880 = vmatpush2.msra.mxu0 %v756
        %881 = vmatprep.subr.mxu0 0.0
        %882 = vmatpush2.msra.mxu0 %v755
        %883 = vmatprep.subr.mxu0 0.0
        %884 = vmatpush2.msra.mxu0 %v754
        %885 = vmatprep.subr.mxu0 0.0
        %886 = vmatpush2.msra.mxu0 %v753
        %887 = vmatprep.mubr.f32.mxu0 %v821
        %888 = vmatmul.mubr.f32.gmra.mxu0 %v811
        %v889 = vpop.f32.mrf.mxu0
        %v890 = vadd.f32 %v816, %v889
        %v891 = vpop.f32.mrf.mxu0
        %892 = vdwg.mxu0
        %893 = vst [vmem:[%s447] sm:$0xf] %v890
        %s894 = sand.u32 %s179, 1
        %s895 = scalar_lea.sflag [#allocation6], %s894
        %s896 = sand.u32 %s179, 1
        %s897 = smul.addr %s896, 4
        %s898 = scalar_lea.vmem [#allocation5], %s897
        // Predicated region
        $region155: #{high_pass_forward.9} parent=141 // pred_check
          %p899 = pneg %p189
        $region156: #{high_pass_forward.9} parent=141 // pred_check_branch
          %901 = sbr.rel (%p899) target = $region158
        $region157: #{high_pass_forward.9} parent=141 // pred_region
          %s903 = ssub.s32 64, 64
          %904 = vsyncadd %s895, %s903
          %s905 = smul.addr %s23, 4
          %s906 = sadd.s32 %s24, %s905
          %s907 = smul.addr %s906, 64
          %s908 = scalar_lea.hbm %s5, %s907
          %s910 = sshll.u32 %s898, 4
          %s911 = int_to_ptr.vmem [resolvable:$true] %s910
          %913 = dma.vmem_to_hbm [thread:$0]  %s911, 64, %s908, %s895
        $region158: #{high_pass_forward.9} parent=141 // pred_fallthru
          _
      $region142: #{high_pass_forward.9} parent=5 // pred_fallthru
        _
      %p914 = scmp.le.s32.totalorder 2, %s14
      // Predicated region
      $region159: #{high_pass_forward.9} parent=5 // pred_check
        %p915 = pneg %p914
      $region160: #{high_pass_forward.9} parent=5 // pred_check_branch
        %917 = sbr.rel (%p915) target = $region162
      $region161: #{high_pass_forward.9} parent=5 // pred_region
        %s918 = ssub.s32 %s14, 2
        // Predicated region
        $region163: #{high_pass_forward.9} parent=161 // pred_check
          %p919 = pneg %p195
        $region164: #{high_pass_forward.9} parent=161 // pred_check_branch
          %921 = sbr.rel (%p919) target = $region166
        $region165: #{high_pass_forward.9} parent=161 // pred_region
          %s922 = sand.u32 %s180, 1
          %s923 = scalar_lea.sflag [#allocation6], %s922
          %s924 = sand.u32 %s180, 1
          %s925 = smul.addr %s924, 4
          %s926 = scalar_lea.vmem [#allocation5], %s925
          %927 = dma.done %s923, 64
        $region166: #{high_pass_forward.9} parent=161 // pred_fallthru
          _
      $region162: #{high_pass_forward.9} parent=5 // pred_fallthru
        _
    $region6: #{high_pass_forward.9} parent=1 // loop_footer
      %s18 = sadd.s32 1, %s14
    $region7: #{high_pass_forward.9} parent=1 // loop_footer_branch
      %13 = sbr.rel target = $region3
    $region8: #{high_pass_forward.9} parent=1 // loop_exit
      _
    %928 = vsyncpa [#allocation6], 1
    %s929 = scalar_lea.sflag [#allocation6], 1
    %930 = vsyncpa %s929, 1

</llo_original>
